<compile_context>
chip_gen: v6e
topology: v6e:2x2x1
jax: 0.10.0
libtpu: 0.0.40
codegen_flags: <defaults>
</compile_context>

<pallas_src>
import math

import numpy as np
import jax
import jax.numpy as jnp
from jax.experimental import pallas as pl
from jax.experimental.pallas import tpu as pltpu

# ----------------------------- configuration --------------------------------
LAYERS = [1, 1]          # small UNet: two resolution levels
NK = 8                   # base channel count (small demo)
CIN = 3
COUT = 3
K1 = 7                   # first conv kernel size
K = 3                    # body conv kernel size
G = 2                    # channel growth factor
SKIP = True
PRELU_ALPHA = 0.25       # nn.PReLU() default init

# Conv matmuls run in f32 (kernel is overhead-bound at 16x16 and this keeps the
# result near-exact).  Switch to jnp.bfloat16 for larger H/W/channel configs.
MATMUL_DTYPE = jnp.float32


# ----------------------- host-side constant builders ------------------------
def _make_tap_masks(k, h, w):
    """(k*k, h*w) f32 border-validity masks for 'same' zero padding."""
    p = k // 2
    hh, ww = np.meshgrid(np.arange(h), np.arange(w), indexing="ij")
    hh = hh.reshape(-1)
    ww = ww.reshape(-1)
    masks = np.zeros((k * k, h * w), np.float32)
    for kh in range(k):
        for kw in range(k):
            valid = ((hh + kh - p >= 0) & (hh + kh - p < h) &
                     (ww + kw - p >= 0) & (ww + kw - p < w))
            masks[kh * k + kw] = valid.astype(np.float32)
    return masks


def _make_pool_matrix(h, w):
    """(h*w, (h//2)*(w//2)) 0/1 matrix selecting the top-left of each 2x2 cell."""
    ho, wo = h // 2, w // 2
    m = np.zeros((h * w, ho * wo), np.float32)
    for i in range(ho):
        for j in range(wo):
            m[(2 * i) * w + 2 * j, i * wo + j] = 1.0
    return m


def _make_up_matrix(hc, wc):
    """(hc*wc, (2hc)*(2wc)) 0/1 matrix implementing nearest 2x upsampling."""
    h, w = 2 * hc, 2 * wc
    m = np.zeros((hc * wc, h * w), np.float32)
    for i in range(h):
        for j in range(w):
            m[(i // 2) * wc + (j // 2), i * w + j] = 1.0
    return m


def _flatten_conv_weight(w_oihw):
    """(Cout, Cin, kh, kw) -> (Cout, kh*kw*Cin); contraction idx = (kh*K+kw)*Cin+ci."""
    co, ci, kh, kw = w_oihw.shape
    return jnp.transpose(w_oihw, (0, 2, 3, 1)).reshape(co, kh * kw * ci)


# --------------------------- in-kernel primitives ----------------------------
def _conv_im2col(x, w_flat, masks, k, h, w):
    """'same' conv, stride 1.  x: (Cin, h*w); w_flat: (Cout, k*k*Cin);
    masks: (k*k, h*w) border masks (None for k==1).  One MXU matmul."""
    cin, hw = x.shape
    if k == 1:
        return jnp.dot(w_flat.astype(MATMUL_DTYPE), x.astype(MATMUL_DTYPE),
                       preferred_element_type=jnp.float32)
    p = k // 2
    m = p * w + p                                    # max |flat shift|
    pad = jnp.zeros((cin, m), x.dtype)
    xe = jnp.concatenate([pad, x, pad], axis=1)      # (cin, hw + 2m)
    taps = []
    for kh in range(k):
        for kw in range(k):
            t = kh * k + kw
            s = (kh - p) * w + (kw - p)
            shifted = xe[:, m + s:m + s + hw]        # static lane slice
            taps.append(shifted * masks[t:t + 1, :]) # zero the wrapped border
    patches = jnp.concatenate(taps, axis=0)          # (k*k*cin, hw) im2col
    return jnp.dot(w_flat.astype(MATMUL_DTYPE), patches.astype(MATMUL_DTYPE),
                   preferred_element_type=jnp.float32)


def _maxpool_flat(u, h, w, pool_mat):
    """2x2 max-pool, stride 2.  u: (C, h*w) -> (C, (h//2)*(w//2)).
    Two shifted maxima + a 0/1 selection matmul (values feeding unselected
    odd rows/cols are irrelevant)."""
    r1 = jnp.concatenate([u[:, 1:], u[:, -1:]], axis=1)    # shift left by 1
    m1 = jnp.maximum(u, r1)
    r2 = jnp.concatenate([m1[:, w:], m1[:, -w:]], axis=1)  # shift up by one row
    m2 = jnp.maximum(m1, r2)
    return jnp.dot(m2, pool_mat, preferred_element_type=jnp.float32)


# ------------------------------ fused kernel ---------------------------------
def _make_kernel(steps, n_w, n_aux):
    """Generate the fused UNet kernel body from the symbolic plan."""

    def kernel(*refs):
        x_ref = refs[0]
        w_refs = refs[1:1 + n_w]
        a_refs = refs[1 + n_w:1 + n_w + n_aux]
        o_ref = refs[1 + n_w + n_aux]

        x = x_ref[0]                      # (CIN, H*W), lane-dense
        u = x
        skips = []
        for step in steps:
            op = step[0]
            if op == "conv":
                _, widx, aidx, k, h, w, alpha, has_res = step
                res = u if has_res else None
                masks = a_refs[aidx][...] if aidx >= 0 else None
                u = _conv_im2col(u, w_refs[widx][...], masks, k, h, w)
                if alpha is not None:                 # fused PReLU
                    u = jnp.where(u >= 0, u, alpha * u)
                if res is not None:                   # fused block residual
                    u = u + res
            elif op == "save":
                skips.append(u)
            elif op == "pool":
                _, aidx, h, w = step
                u = _maxpool_flat(u, h, w, a_refs[aidx][...])
            elif op == "up":
                _, aidx = step
                u = jnp.dot(u, a_refs[aidx][...],
                            preferred_element_type=jnp.float32)
            elif op == "cat":
                u = jnp.concatenate([u, skips.pop()], axis=0)
        o_ref[0] = (u + x).astype(o_ref.dtype)        # fused final identity add

    return kernel


# ------------------------------ parameters -----------------------------------
def _kaiming_uniform(key, shape_oihw):
    cout, _, kh, kw = shape_oihw
    fan_out = kh * kw * cout                          # mode='fan_out'
    bound = math.sqrt(3.0) * math.sqrt(2.0) / math.sqrt(fan_out)
    return jax.random.uniform(key, shape_oihw, jnp.float32, -bound, bound)


def build_params(key):
    chs = [(NK, NK)] + [(round(G ** i * NK), round(G ** (i + 1) * NK))
                        for i in range(len(LAYERS) - 1)]
    params = {}

    key, k = jax.random.split(key)
    params['conv1'] = _kaiming_uniform(k, (NK, CIN, K1, K1))

    enc = []
    for i in range(len(LAYERS)):
        c1, c2 = chs[i]
        blocks = []
        for j in range(LAYERS[i]):
            ci, co = (c1, c2) if j == 0 else (c2, c2)
            key, k = jax.random.split(key)
            blocks.append({'w': _kaiming_uniform(k, (co, ci, K, K)),
                           'cin': ci, 'cout': co})
        enc.append({'blocks': blocks})
    params['enc'] = enc

    chs_r = chs[::-1]
    layers_r = LAYERS[-2::-1]
    c2 = chs_r[0][1]
    dec = [{'blocks': [], 'up_after': True}]          # dec[0] = UpBlock only
    for i in range(len(layers_r)):
        c2_ = c2
        c2 = chs_r[i + 1][1]
        blocks = []
        for j in range(layers_r[i]):
            ci, co = (c2 + c2_, c2) if j == 0 else (c2, c2)
            key, k = jax.random.split(key)
            blocks.append({'w': _kaiming_uniform(k, (co, ci, K, K)),
                           'cin': ci, 'cout': co})
        dec.append({'blocks': blocks, 'up_after': i < len(layers_r) - 1})
    params['dec'] = dec

    key, k = jax.random.split(key)
    w2 = _kaiming_uniform(k, (COUT, NK, 1, 1))
    params['conv2'] = w2 / math.sqrt(sum(LAYERS + LAYERS[:-1]))
    return params


# ------------------------------ forward plan ----------------------------------
def _build_plan(params, H, W):
    """Walk the UNet forward symbolically; return (steps, flat weights, aux)."""
    steps, weights, aux, aux_key = [], [], [], {}

    def aux_index(keyv, builder):
        if keyv not in aux_key:
            aux_key[keyv] = len(aux)
            aux.append(builder())
        return aux_key[keyv]

    def conv_step(wt, k, h, w, act, has_res):
        widx = len(weights)
        weights.append(_flatten_conv_weight(wt))
        aidx = (aux_index(("mask", k, h, w), lambda: _make_tap_masks(k, h, w))
                if k > 1 else -1)
        steps.append(("conv", widx, aidx, k, h, w, act, has_res))

    def block_steps(blocks, h, w):
        for blk in blocks:
            conv_step(blk['w'], K, h, w, PRELU_ALPHA,
                      SKIP and blk['cin'] == blk['cout'])

    h, w = H, W
    conv_step(params['conv1'], K1, h, w, None, False)       # conv1 (no act)
    block_steps(params['enc'][0]['blocks'], h, w)
    for i in range(1, len(params['enc'])):
        steps.append(("save",))
        pidx = aux_index(("pool", h, w),
                         lambda hh=h, ww=w: _make_pool_matrix(hh, ww))
        steps.append(("pool", pidx, h, w))
        h, w = h // 2, w // 2
        block_steps(params['enc'][i]['blocks'], h, w)
    for i, stage in enumerate(params['dec']):
        if i > 0:
            steps.append(("cat",))
        block_steps(stage['blocks'], h, w)
        if stage['up_after']:
            uidx = aux_index(("up", h, w),
                             lambda hh=h, ww=w: _make_up_matrix(hh, ww))
            steps.append(("up", uidx))
            h, w = 2 * h, 2 * w
    conv_step(params['conv2'], 1, h, w, None, False)         # 1x1 output conv
    return steps, weights, aux


def _compute_pad(h, w, n_levels):
    w1 = ((w - 1) | (2 ** n_levels - 1)) + 1
    h1 = ((h - 1) | (2 ** n_levels - 1)) + 1
    dw = (w1 - w) / 2
    dh = (h1 - h) / 2
    if dw == 0 and dh == 0:
        return (0, 0, 0, 0)
    return (math.floor(dw), math.ceil(dw), math.floor(dh), math.ceil(dh))


# --------------------------------- wrapper ------------------------------------
def unet_forward(x_nchw, params):
    N, C, H0, W0 = x_nchw.shape
    pads = _compute_pad(H0, W0, len(LAYERS) - 1)
    x = x_nchw
    if pads != (0, 0, 0, 0):
        x = jnp.pad(x, ((0, 0), (0, 0), (pads[2], pads[3]), (pads[0], pads[1])))
    N, C, H, W = x.shape
    HW = H * W

    steps, weights, aux = _build_plan(params, H, W)
    kernel = _make_kernel(steps, len(weights), len(aux))

    # NCHW -> (N, C, H*W) is a free row-major reshape: the kernel works in a
    # lane-dense (C, H*W) layout with no transposes anywhere.
    x_flat = x.reshape(N, C, HW)

    in_specs = [pl.BlockSpec((1, C, HW), lambda n: (n, 0, 0))]
    args = [x_flat]
    for wgt in weights:                               # resident across the grid
        in_specs.append(pl.BlockSpec(wgt.shape, lambda n: (0, 0)))
        args.append(wgt)
    for a in aux:                                     # masks / pool / upsample
        in_specs.append(pl.BlockSpec(a.shape, lambda n: (0, 0)))
        args.append(jnp.asarray(a))

    # Grid over batch only; with N=2 both v7x TensorCores get one image each.
    # (Spatial tiling is not applicable to a fully fused multi-resolution net.)
    out_flat = pl.pallas_call(
        kernel,
        out_shape=jax.ShapeDtypeStruct((N, COUT, HW), x.dtype),
        grid=(N,),
        in_specs=in_specs,
        out_specs=pl.BlockSpec((1, COUT, HW), lambda n: (n, 0, 0)),
        compiler_params=pltpu.CompilerParams(
            dimension_semantics=("parallel",)),
    )(*args)

    out = out_flat.reshape(N, COUT, H, W)
    if pads != (0, 0, 0, 0):
        out = out[:, :, pads[2]:H - pads[3], pads[0]:W - pads[1]]
    # The identity residual was added in-kernel using the (zero-)padded input,
    # whose interior equals the original image, so slicing above is sufficient.
    return out


# ------------------------- pure-JAX reference (check) -------------------------
_REF_PREC = jax.lax.Precision.HIGHEST


def _prelu(v):
    return jnp.where(v >= 0, v, PRELU_ALPHA * v)


def _conv_ref(x, w, k):
    p = k // 2
    return jax.lax.conv_general_dilated(
        x, w, window_strides=(1, 1), padding=((p, p), (p, p)),
        dimension_numbers=("NCHW", "OIHW", "NCHW"), precision=_REF_PREC)


def unet_reference(x_nchw, params):
    identity = x_nchw
    N, C, H0, W0 = x_nchw.shape
    pads = _compute_pad(H0, W0, len(LAYERS) - 1)
    x = x_nchw
    if pads != (0, 0, 0, 0):
        x = jnp.pad(x, ((0, 0), (0, 0), (pads[2], pads[3]), (pads[0], pads[1])))

    def run_blocks(u, blocks):
        for blk in blocks:
            res = u if (SKIP and blk['cin'] == blk['cout']) else None
            u = _prelu(_conv_ref(u, blk['w'], K))
            if res is not None:
                u = u + res
        return u

    u = _conv_ref(x, params['conv1'], K1)
    u = run_blocks(u, params['enc'][0]['blocks'])
    es = []
    for i in range(1, len(params['enc'])):
        es.append(u)
        nb, cc, hh, ww = u.shape
        u = jnp.max(u.reshape(nb, cc, hh // 2, 2, ww // 2, 2), axis=(3, 5))
        u = run_blocks(u, params['enc'][i]['blocks'])
    for i, stage in enumerate(params['dec']):
        if i > 0:
            u = jnp.concatenate([u, es.pop()], axis=1)
        u = run_blocks(u, stage['blocks'])
        if stage['up_after']:
            u = jnp.repeat(jnp.repeat(u, 2, axis=2), 2, axis=3)
    u = _conv_ref(u, params['conv2'], 1)
    if pads != (0, 0, 0, 0):
        hh, ww = u.shape[2], u.shape[3]
        u = u[:, :, pads[2]:hh - pads[3], pads[0]:ww - pads[1]]
    return u + identity


# ----------------------------------- main --------------------------------------
if __name__ == "__main__":
    key = jax.random.PRNGKey(0)
    pkey, xkey = jax.random.split(key)
    params = build_params(pkey)
    x = jax.random.normal(xkey, (2, CIN, 16, 16), dtype=jnp.float32)

    out = unet_forward(x, params)
    out = jax.block_until_ready(out)
    assert out.shape == (2, COUT, 16, 16), out.shape
    assert bool(jnp.all(jnp.isfinite(out)))

    ref = unet_reference(x, params)
    err = float(jnp.max(jnp.abs(out - ref)))
    assert err < 1e-1, f"kernel vs reference max abs err = {err}"

    print("KERNEL_OK")
</pallas_src>

<mosaic_0001>
module attributes {stable_mosaic.version = 11 : i64} {
  func.func @kernel(%arg0: i32, %arg1: memref<1x3x256xf32, #tpu.memory_space<vmem>>, %arg2: memref<8x147xf32, #tpu.memory_space<vmem>>, %arg3: memref<8x72xf32, #tpu.memory_space<vmem>>, %arg4: memref<16x72xf32, #tpu.memory_space<vmem>>, %arg5: memref<8x216xf32, #tpu.memory_space<vmem>>, %arg6: memref<3x8xf32, #tpu.memory_space<vmem>>, %arg7: memref<49x256xf32, #tpu.memory_space<vmem>>, %arg8: memref<9x256xf32, #tpu.memory_space<vmem>>, %arg9: memref<256x64xf32, #tpu.memory_space<vmem>>, %arg10: memref<9x64xf32, #tpu.memory_space<vmem>>, %arg11: memref<64x256xf32, #tpu.memory_space<vmem>>, %arg12: memref<1x3x256xf32, #tpu.memory_space<vmem>>) attributes {dimension_semantics = [#tpu.dimension_semantics<parallel>], iteration_bounds = array<i64: 2>, scalar_prefetch = 0 : i64, scratch_operands = 0 : i64, tpu.core_type = #tpu.core_type<tc>, window_params = [{transform_indices = @transform_0, window_bounds = array<i64: 1, 3, 256>}, {pipeline_mode = #tpu.pipeline_mode<synchronous>, transform_indices = @transform_1, window_bounds = array<i64: 8, 147>}, {pipeline_mode = #tpu.pipeline_mode<synchronous>, transform_indices = @transform_2, window_bounds = array<i64: 8, 72>}, {pipeline_mode = #tpu.pipeline_mode<synchronous>, transform_indices = @transform_3, window_bounds = array<i64: 16, 72>}, {pipeline_mode = #tpu.pipeline_mode<synchronous>, transform_indices = @transform_4, window_bounds = array<i64: 8, 216>}, {pipeline_mode = #tpu.pipeline_mode<synchronous>, transform_indices = @transform_5, window_bounds = array<i64: 3, 8>}, {pipeline_mode = #tpu.pipeline_mode<synchronous>, transform_indices = @transform_6, window_bounds = array<i64: 49, 256>}, {pipeline_mode = #tpu.pipeline_mode<synchronous>, transform_indices = @transform_7, window_bounds = array<i64: 9, 256>}, {pipeline_mode = #tpu.pipeline_mode<synchronous>, transform_indices = @transform_8, window_bounds = array<i64: 256, 64>}, {pipeline_mode = #tpu.pipeline_mode<synchronous>, transform_indices = @transform_9, window_bounds = array<i64: 9, 64>}, {pipeline_mode = #tpu.pipeline_mode<synchronous>, transform_indices = @transform_10, window_bounds = array<i64: 64, 256>}, {transform_indices = @transform_11, window_bounds = array<i64: 1, 3, 256>}]} {
    %c0 = arith.constant 0 : index
    %c0_0 = arith.constant 0 : index
    %c0_1 = arith.constant 0 : index
    %0 = vector.load %arg1[%c0, %c0_0, %c0_1] : memref<1x3x256xf32, #tpu.memory_space<vmem>>, vector<1x3x256xf32>
    %1 = vector.shape_cast %0 : vector<1x3x256xf32> to vector<3x256xf32>
    %c0_2 = arith.constant 0 : index
    %c0_3 = arith.constant 0 : index
    %2 = vector.load %arg7[%c0_2, %c0_3] : memref<49x256xf32, #tpu.memory_space<vmem>>, vector<49x256xf32>
    %c0_4 = arith.constant 0 : index
    %c0_5 = arith.constant 0 : index
    %3 = vector.load %arg2[%c0_4, %c0_5] : memref<8x147xf32, #tpu.memory_space<vmem>>, vector<8x147xf32>
    %cst = arith.constant 0.000000e+00 : f32
    %4 = vector.broadcast %cst : f32 to vector<3x51xf32>
    %5 = tpu.concatenate %4, %1, %4 in 1 : vector<3x51xf32>, vector<3x256xf32>, vector<3x51xf32> -> vector<3x358xf32>
    %6 = vector.extract_strided_slice %5 {offsets = [0, 0], sizes = [3, 256], strides = [1, 1]} : vector<3x358xf32> to vector<3x256xf32>
    %7 = vector.extract_strided_slice %2 {offsets = [0, 0], sizes = [1, 256], strides = [1, 1]} : vector<49x256xf32> to vector<1x256xf32>
    %8 = vector.broadcast %7 : vector<1x256xf32> to vector<3x256xf32>
    %9 = arith.mulf %6, %8 : vector<3x256xf32>
    %10 = vector.extract_strided_slice %5 {offsets = [0, 1], sizes = [3, 256], strides = [1, 1]} : vector<3x358xf32> to vector<3x256xf32>
    %11 = vector.extract_strided_slice %2 {offsets = [1, 0], sizes = [1, 256], strides = [1, 1]} : vector<49x256xf32> to vector<1x256xf32>
    %12 = vector.broadcast %11 : vector<1x256xf32> to vector<3x256xf32>
    %13 = arith.mulf %10, %12 : vector<3x256xf32>
    %14 = vector.extract_strided_slice %5 {offsets = [0, 2], sizes = [3, 256], strides = [1, 1]} : vector<3x358xf32> to vector<3x256xf32>
    %15 = vector.extract_strided_slice %2 {offsets = [2, 0], sizes = [1, 256], strides = [1, 1]} : vector<49x256xf32> to vector<1x256xf32>
    %16 = vector.broadcast %15 : vector<1x256xf32> to vector<3x256xf32>
    %17 = arith.mulf %14, %16 : vector<3x256xf32>
    %18 = vector.extract_strided_slice %5 {offsets = [0, 3], sizes = [3, 256], strides = [1, 1]} : vector<3x358xf32> to vector<3x256xf32>
    %19 = vector.extract_strided_slice %2 {offsets = [3, 0], sizes = [1, 256], strides = [1, 1]} : vector<49x256xf32> to vector<1x256xf32>
    %20 = vector.broadcast %19 : vector<1x256xf32> to vector<3x256xf32>
    %21 = arith.mulf %18, %20 : vector<3x256xf32>
    %22 = vector.extract_strided_slice %5 {offsets = [0, 4], sizes = [3, 256], strides = [1, 1]} : vector<3x358xf32> to vector<3x256xf32>
    %23 = vector.extract_strided_slice %2 {offsets = [4, 0], sizes = [1, 256], strides = [1, 1]} : vector<49x256xf32> to vector<1x256xf32>
    %24 = vector.broadcast %23 : vector<1x256xf32> to vector<3x256xf32>
    %25 = arith.mulf %22, %24 : vector<3x256xf32>
    %26 = vector.extract_strided_slice %5 {offsets = [0, 5], sizes = [3, 256], strides = [1, 1]} : vector<3x358xf32> to vector<3x256xf32>
    %27 = vector.extract_strided_slice %2 {offsets = [5, 0], sizes = [1, 256], strides = [1, 1]} : vector<49x256xf32> to vector<1x256xf32>
    %28 = vector.broadcast %27 : vector<1x256xf32> to vector<3x256xf32>
    %29 = arith.mulf %26, %28 : vector<3x256xf32>
    %30 = vector.extract_strided_slice %5 {offsets = [0, 6], sizes = [3, 256], strides = [1, 1]} : vector<3x358xf32> to vector<3x256xf32>
    %31 = vector.extract_strided_slice %2 {offsets = [6, 0], sizes = [1, 256], strides = [1, 1]} : vector<49x256xf32> to vector<1x256xf32>
    %32 = vector.broadcast %31 : vector<1x256xf32> to vector<3x256xf32>
    %33 = arith.mulf %30, %32 : vector<3x256xf32>
    %34 = vector.extract_strided_slice %5 {offsets = [0, 16], sizes = [3, 256], strides = [1, 1]} : vector<3x358xf32> to vector<3x256xf32>
    %35 = vector.extract_strided_slice %2 {offsets = [7, 0], sizes = [1, 256], strides = [1, 1]} : vector<49x256xf32> to vector<1x256xf32>
    %36 = vector.broadcast %35 : vector<1x256xf32> to vector<3x256xf32>
    %37 = arith.mulf %34, %36 : vector<3x256xf32>
    %38 = vector.extract_strided_slice %5 {offsets = [0, 17], sizes = [3, 256], strides = [1, 1]} : vector<3x358xf32> to vector<3x256xf32>
    %39 = vector.extract_strided_slice %2 {offsets = [8, 0], sizes = [1, 256], strides = [1, 1]} : vector<49x256xf32> to vector<1x256xf32>
    %40 = vector.broadcast %39 : vector<1x256xf32> to vector<3x256xf32>
    %41 = arith.mulf %38, %40 : vector<3x256xf32>
    %42 = vector.extract_strided_slice %5 {offsets = [0, 18], sizes = [3, 256], strides = [1, 1]} : vector<3x358xf32> to vector<3x256xf32>
    %43 = vector.extract_strided_slice %2 {offsets = [9, 0], sizes = [1, 256], strides = [1, 1]} : vector<49x256xf32> to vector<1x256xf32>
    %44 = vector.broadcast %43 : vector<1x256xf32> to vector<3x256xf32>
    %45 = arith.mulf %42, %44 : vector<3x256xf32>
    %46 = vector.extract_strided_slice %5 {offsets = [0, 19], sizes = [3, 256], strides = [1, 1]} : vector<3x358xf32> to vector<3x256xf32>
    %47 = vector.extract_strided_slice %2 {offsets = [10, 0], sizes = [1, 256], strides = [1, 1]} : vector<49x256xf32> to vector<1x256xf32>
    %48 = vector.broadcast %47 : vector<1x256xf32> to vector<3x256xf32>
    %49 = arith.mulf %46, %48 : vector<3x256xf32>
    %50 = vector.extract_strided_slice %5 {offsets = [0, 20], sizes = [3, 256], strides = [1, 1]} : vector<3x358xf32> to vector<3x256xf32>
    %51 = vector.extract_strided_slice %2 {offsets = [11, 0], sizes = [1, 256], strides = [1, 1]} : vector<49x256xf32> to vector<1x256xf32>
    %52 = vector.broadcast %51 : vector<1x256xf32> to vector<3x256xf32>
    %53 = arith.mulf %50, %52 : vector<3x256xf32>
    %54 = vector.extract_strided_slice %5 {offsets = [0, 21], sizes = [3, 256], strides = [1, 1]} : vector<3x358xf32> to vector<3x256xf32>
    %55 = vector.extract_strided_slice %2 {offsets = [12, 0], sizes = [1, 256], strides = [1, 1]} : vector<49x256xf32> to vector<1x256xf32>
    %56 = vector.broadcast %55 : vector<1x256xf32> to vector<3x256xf32>
    %57 = arith.mulf %54, %56 : vector<3x256xf32>
    %58 = vector.extract_strided_slice %5 {offsets = [0, 22], sizes = [3, 256], strides = [1, 1]} : vector<3x358xf32> to vector<3x256xf32>
    %59 = vector.extract_strided_slice %2 {offsets = [13, 0], sizes = [1, 256], strides = [1, 1]} : vector<49x256xf32> to vector<1x256xf32>
    %60 = vector.broadcast %59 : vector<1x256xf32> to vector<3x256xf32>
    %61 = arith.mulf %58, %60 : vector<3x256xf32>
    %62 = vector.extract_strided_slice %5 {offsets = [0, 32], sizes = [3, 256], strides = [1, 1]} : vector<3x358xf32> to vector<3x256xf32>
    %63 = vector.extract_strided_slice %2 {offsets = [14, 0], sizes = [1, 256], strides = [1, 1]} : vector<49x256xf32> to vector<1x256xf32>
    %64 = vector.broadcast %63 : vector<1x256xf32> to vector<3x256xf32>
    %65 = arith.mulf %62, %64 : vector<3x256xf32>
    %66 = vector.extract_strided_slice %5 {offsets = [0, 33], sizes = [3, 256], strides = [1, 1]} : vector<3x358xf32> to vector<3x256xf32>
    %67 = vector.extract_strided_slice %2 {offsets = [15, 0], sizes = [1, 256], strides = [1, 1]} : vector<49x256xf32> to vector<1x256xf32>
    %68 = vector.broadcast %67 : vector<1x256xf32> to vector<3x256xf32>
    %69 = arith.mulf %66, %68 : vector<3x256xf32>
    %70 = vector.extract_strided_slice %5 {offsets = [0, 34], sizes = [3, 256], strides = [1, 1]} : vector<3x358xf32> to vector<3x256xf32>
    %71 = vector.extract_strided_slice %2 {offsets = [16, 0], sizes = [1, 256], strides = [1, 1]} : vector<49x256xf32> to vector<1x256xf32>
    %72 = vector.broadcast %71 : vector<1x256xf32> to vector<3x256xf32>
    %73 = arith.mulf %70, %72 : vector<3x256xf32>
    %74 = vector.extract_strided_slice %5 {offsets = [0, 35], sizes = [3, 256], strides = [1, 1]} : vector<3x358xf32> to vector<3x256xf32>
    %75 = vector.extract_strided_slice %2 {offsets = [17, 0], sizes = [1, 256], strides = [1, 1]} : vector<49x256xf32> to vector<1x256xf32>
    %76 = vector.broadcast %75 : vector<1x256xf32> to vector<3x256xf32>
    %77 = arith.mulf %74, %76 : vector<3x256xf32>
    %78 = vector.extract_strided_slice %5 {offsets = [0, 36], sizes = [3, 256], strides = [1, 1]} : vector<3x358xf32> to vector<3x256xf32>
    %79 = vector.extract_strided_slice %2 {offsets = [18, 0], sizes = [1, 256], strides = [1, 1]} : vector<49x256xf32> to vector<1x256xf32>
    %80 = vector.broadcast %79 : vector<1x256xf32> to vector<3x256xf32>
    %81 = arith.mulf %78, %80 : vector<3x256xf32>
    %82 = vector.extract_strided_slice %5 {offsets = [0, 37], sizes = [3, 256], strides = [1, 1]} : vector<3x358xf32> to vector<3x256xf32>
    %83 = vector.extract_strided_slice %2 {offsets = [19, 0], sizes = [1, 256], strides = [1, 1]} : vector<49x256xf32> to vector<1x256xf32>
    %84 = vector.broadcast %83 : vector<1x256xf32> to vector<3x256xf32>
    %85 = arith.mulf %82, %84 : vector<3x256xf32>
    %86 = vector.extract_strided_slice %5 {offsets = [0, 38], sizes = [3, 256], strides = [1, 1]} : vector<3x358xf32> to vector<3x256xf32>
    %87 = vector.extract_strided_slice %2 {offsets = [20, 0], sizes = [1, 256], strides = [1, 1]} : vector<49x256xf32> to vector<1x256xf32>
    %88 = vector.broadcast %87 : vector<1x256xf32> to vector<3x256xf32>
    %89 = arith.mulf %86, %88 : vector<3x256xf32>
    %90 = vector.extract_strided_slice %5 {offsets = [0, 48], sizes = [3, 256], strides = [1, 1]} : vector<3x358xf32> to vector<3x256xf32>
    %91 = vector.extract_strided_slice %2 {offsets = [21, 0], sizes = [1, 256], strides = [1, 1]} : vector<49x256xf32> to vector<1x256xf32>
    %92 = vector.broadcast %91 : vector<1x256xf32> to vector<3x256xf32>
    %93 = arith.mulf %90, %92 : vector<3x256xf32>
    %94 = vector.extract_strided_slice %5 {offsets = [0, 49], sizes = [3, 256], strides = [1, 1]} : vector<3x358xf32> to vector<3x256xf32>
    %95 = vector.extract_strided_slice %2 {offsets = [22, 0], sizes = [1, 256], strides = [1, 1]} : vector<49x256xf32> to vector<1x256xf32>
    %96 = vector.broadcast %95 : vector<1x256xf32> to vector<3x256xf32>
    %97 = arith.mulf %94, %96 : vector<3x256xf32>
    %98 = vector.extract_strided_slice %5 {offsets = [0, 50], sizes = [3, 256], strides = [1, 1]} : vector<3x358xf32> to vector<3x256xf32>
    %99 = vector.extract_strided_slice %2 {offsets = [23, 0], sizes = [1, 256], strides = [1, 1]} : vector<49x256xf32> to vector<1x256xf32>
    %100 = vector.broadcast %99 : vector<1x256xf32> to vector<3x256xf32>
    %101 = arith.mulf %98, %100 : vector<3x256xf32>
    %102 = vector.extract_strided_slice %5 {offsets = [0, 51], sizes = [3, 256], strides = [1, 1]} : vector<3x358xf32> to vector<3x256xf32>
    %103 = vector.extract_strided_slice %2 {offsets = [24, 0], sizes = [1, 256], strides = [1, 1]} : vector<49x256xf32> to vector<1x256xf32>
    %104 = vector.broadcast %103 : vector<1x256xf32> to vector<3x256xf32>
    %105 = arith.mulf %102, %104 : vector<3x256xf32>
    %106 = vector.extract_strided_slice %5 {offsets = [0, 52], sizes = [3, 256], strides = [1, 1]} : vector<3x358xf32> to vector<3x256xf32>
    %107 = vector.extract_strided_slice %2 {offsets = [25, 0], sizes = [1, 256], strides = [1, 1]} : vector<49x256xf32> to vector<1x256xf32>
    %108 = vector.broadcast %107 : vector<1x256xf32> to vector<3x256xf32>
    %109 = arith.mulf %106, %108 : vector<3x256xf32>
    %110 = vector.extract_strided_slice %5 {offsets = [0, 53], sizes = [3, 256], strides = [1, 1]} : vector<3x358xf32> to vector<3x256xf32>
    %111 = vector.extract_strided_slice %2 {offsets = [26, 0], sizes = [1, 256], strides = [1, 1]} : vector<49x256xf32> to vector<1x256xf32>
    %112 = vector.broadcast %111 : vector<1x256xf32> to vector<3x256xf32>
    %113 = arith.mulf %110, %112 : vector<3x256xf32>
    %114 = vector.extract_strided_slice %5 {offsets = [0, 54], sizes = [3, 256], strides = [1, 1]} : vector<3x358xf32> to vector<3x256xf32>
    %115 = vector.extract_strided_slice %2 {offsets = [27, 0], sizes = [1, 256], strides = [1, 1]} : vector<49x256xf32> to vector<1x256xf32>
    %116 = vector.broadcast %115 : vector<1x256xf32> to vector<3x256xf32>
    %117 = arith.mulf %114, %116 : vector<3x256xf32>
    %118 = vector.extract_strided_slice %5 {offsets = [0, 64], sizes = [3, 256], strides = [1, 1]} : vector<3x358xf32> to vector<3x256xf32>
    %119 = vector.extract_strided_slice %2 {offsets = [28, 0], sizes = [1, 256], strides = [1, 1]} : vector<49x256xf32> to vector<1x256xf32>
    %120 = vector.broadcast %119 : vector<1x256xf32> to vector<3x256xf32>
    %121 = arith.mulf %118, %120 : vector<3x256xf32>
    %122 = vector.extract_strided_slice %5 {offsets = [0, 65], sizes = [3, 256], strides = [1, 1]} : vector<3x358xf32> to vector<3x256xf32>
    %123 = vector.extract_strided_slice %2 {offsets = [29, 0], sizes = [1, 256], strides = [1, 1]} : vector<49x256xf32> to vector<1x256xf32>
    %124 = vector.broadcast %123 : vector<1x256xf32> to vector<3x256xf32>
    %125 = arith.mulf %122, %124 : vector<3x256xf32>
    %126 = vector.extract_strided_slice %5 {offsets = [0, 66], sizes = [3, 256], strides = [1, 1]} : vector<3x358xf32> to vector<3x256xf32>
    %127 = vector.extract_strided_slice %2 {offsets = [30, 0], sizes = [1, 256], strides = [1, 1]} : vector<49x256xf32> to vector<1x256xf32>
    %128 = vector.broadcast %127 : vector<1x256xf32> to vector<3x256xf32>
    %129 = arith.mulf %126, %128 : vector<3x256xf32>
    %130 = vector.extract_strided_slice %5 {offsets = [0, 67], sizes = [3, 256], strides = [1, 1]} : vector<3x358xf32> to vector<3x256xf32>
    %131 = vector.extract_strided_slice %2 {offsets = [31, 0], sizes = [1, 256], strides = [1, 1]} : vector<49x256xf32> to vector<1x256xf32>
    %132 = vector.broadcast %131 : vector<1x256xf32> to vector<3x256xf32>
    %133 = arith.mulf %130, %132 : vector<3x256xf32>
    %134 = vector.extract_strided_slice %5 {offsets = [0, 68], sizes = [3, 256], strides = [1, 1]} : vector<3x358xf32> to vector<3x256xf32>
    %135 = vector.extract_strided_slice %2 {offsets = [32, 0], sizes = [1, 256], strides = [1, 1]} : vector<49x256xf32> to vector<1x256xf32>
    %136 = vector.broadcast %135 : vector<1x256xf32> to vector<3x256xf32>
    %137 = arith.mulf %134, %136 : vector<3x256xf32>
    %138 = vector.extract_strided_slice %5 {offsets = [0, 69], sizes = [3, 256], strides = [1, 1]} : vector<3x358xf32> to vector<3x256xf32>
    %139 = vector.extract_strided_slice %2 {offsets = [33, 0], sizes = [1, 256], strides = [1, 1]} : vector<49x256xf32> to vector<1x256xf32>
    %140 = vector.broadcast %139 : vector<1x256xf32> to vector<3x256xf32>
    %141 = arith.mulf %138, %140 : vector<3x256xf32>
    %142 = vector.extract_strided_slice %5 {offsets = [0, 70], sizes = [3, 256], strides = [1, 1]} : vector<3x358xf32> to vector<3x256xf32>
    %143 = vector.extract_strided_slice %2 {offsets = [34, 0], sizes = [1, 256], strides = [1, 1]} : vector<49x256xf32> to vector<1x256xf32>
    %144 = vector.broadcast %143 : vector<1x256xf32> to vector<3x256xf32>
    %145 = arith.mulf %142, %144 : vector<3x256xf32>
    %146 = vector.extract_strided_slice %5 {offsets = [0, 80], sizes = [3, 256], strides = [1, 1]} : vector<3x358xf32> to vector<3x256xf32>
    %147 = vector.extract_strided_slice %2 {offsets = [35, 0], sizes = [1, 256], strides = [1, 1]} : vector<49x256xf32> to vector<1x256xf32>
    %148 = vector.broadcast %147 : vector<1x256xf32> to vector<3x256xf32>
    %149 = arith.mulf %146, %148 : vector<3x256xf32>
    %150 = vector.extract_strided_slice %5 {offsets = [0, 81], sizes = [3, 256], strides = [1, 1]} : vector<3x358xf32> to vector<3x256xf32>
    %151 = vector.extract_strided_slice %2 {offsets = [36, 0], sizes = [1, 256], strides = [1, 1]} : vector<49x256xf32> to vector<1x256xf32>
    %152 = vector.broadcast %151 : vector<1x256xf32> to vector<3x256xf32>
    %153 = arith.mulf %150, %152 : vector<3x256xf32>
    %154 = vector.extract_strided_slice %5 {offsets = [0, 82], sizes = [3, 256], strides = [1, 1]} : vector<3x358xf32> to vector<3x256xf32>
    %155 = vector.extract_strided_slice %2 {offsets = [37, 0], sizes = [1, 256], strides = [1, 1]} : vector<49x256xf32> to vector<1x256xf32>
    %156 = vector.broadcast %155 : vector<1x256xf32> to vector<3x256xf32>
    %157 = arith.mulf %154, %156 : vector<3x256xf32>
    %158 = vector.extract_strided_slice %5 {offsets = [0, 83], sizes = [3, 256], strides = [1, 1]} : vector<3x358xf32> to vector<3x256xf32>
    %159 = vector.extract_strided_slice %2 {offsets = [38, 0], sizes = [1, 256], strides = [1, 1]} : vector<49x256xf32> to vector<1x256xf32>
    %160 = vector.broadcast %159 : vector<1x256xf32> to vector<3x256xf32>
    %161 = arith.mulf %158, %160 : vector<3x256xf32>
    %162 = vector.extract_strided_slice %5 {offsets = [0, 84], sizes = [3, 256], strides = [1, 1]} : vector<3x358xf32> to vector<3x256xf32>
    %163 = vector.extract_strided_slice %2 {offsets = [39, 0], sizes = [1, 256], strides = [1, 1]} : vector<49x256xf32> to vector<1x256xf32>
    %164 = vector.broadcast %163 : vector<1x256xf32> to vector<3x256xf32>
    %165 = arith.mulf %162, %164 : vector<3x256xf32>
    %166 = vector.extract_strided_slice %5 {offsets = [0, 85], sizes = [3, 256], strides = [1, 1]} : vector<3x358xf32> to vector<3x256xf32>
    %167 = vector.extract_strided_slice %2 {offsets = [40, 0], sizes = [1, 256], strides = [1, 1]} : vector<49x256xf32> to vector<1x256xf32>
    %168 = vector.broadcast %167 : vector<1x256xf32> to vector<3x256xf32>
    %169 = arith.mulf %166, %168 : vector<3x256xf32>
    %170 = vector.extract_strided_slice %5 {offsets = [0, 86], sizes = [3, 256], strides = [1, 1]} : vector<3x358xf32> to vector<3x256xf32>
    %171 = vector.extract_strided_slice %2 {offsets = [41, 0], sizes = [1, 256], strides = [1, 1]} : vector<49x256xf32> to vector<1x256xf32>
    %172 = vector.broadcast %171 : vector<1x256xf32> to vector<3x256xf32>
    %173 = arith.mulf %170, %172 : vector<3x256xf32>
    %174 = vector.extract_strided_slice %5 {offsets = [0, 96], sizes = [3, 256], strides = [1, 1]} : vector<3x358xf32> to vector<3x256xf32>
    %175 = vector.extract_strided_slice %2 {offsets = [42, 0], sizes = [1, 256], strides = [1, 1]} : vector<49x256xf32> to vector<1x256xf32>
    %176 = vector.broadcast %175 : vector<1x256xf32> to vector<3x256xf32>
    %177 = arith.mulf %174, %176 : vector<3x256xf32>
    %178 = vector.extract_strided_slice %5 {offsets = [0, 97], sizes = [3, 256], strides = [1, 1]} : vector<3x358xf32> to vector<3x256xf32>
    %179 = vector.extract_strided_slice %2 {offsets = [43, 0], sizes = [1, 256], strides = [1, 1]} : vector<49x256xf32> to vector<1x256xf32>
    %180 = vector.broadcast %179 : vector<1x256xf32> to vector<3x256xf32>
    %181 = arith.mulf %178, %180 : vector<3x256xf32>
    %182 = vector.extract_strided_slice %5 {offsets = [0, 98], sizes = [3, 256], strides = [1, 1]} : vector<3x358xf32> to vector<3x256xf32>
    %183 = vector.extract_strided_slice %2 {offsets = [44, 0], sizes = [1, 256], strides = [1, 1]} : vector<49x256xf32> to vector<1x256xf32>
    %184 = vector.broadcast %183 : vector<1x256xf32> to vector<3x256xf32>
    %185 = arith.mulf %182, %184 : vector<3x256xf32>
    %186 = vector.extract_strided_slice %5 {offsets = [0, 99], sizes = [3, 256], strides = [1, 1]} : vector<3x358xf32> to vector<3x256xf32>
    %187 = vector.extract_strided_slice %2 {offsets = [45, 0], sizes = [1, 256], strides = [1, 1]} : vector<49x256xf32> to vector<1x256xf32>
    %188 = vector.broadcast %187 : vector<1x256xf32> to vector<3x256xf32>
    %189 = arith.mulf %186, %188 : vector<3x256xf32>
    %190 = vector.extract_strided_slice %5 {offsets = [0, 100], sizes = [3, 256], strides = [1, 1]} : vector<3x358xf32> to vector<3x256xf32>
    %191 = vector.extract_strided_slice %2 {offsets = [46, 0], sizes = [1, 256], strides = [1, 1]} : vector<49x256xf32> to vector<1x256xf32>
    %192 = vector.broadcast %191 : vector<1x256xf32> to vector<3x256xf32>
    %193 = arith.mulf %190, %192 : vector<3x256xf32>
    %194 = vector.extract_strided_slice %5 {offsets = [0, 101], sizes = [3, 256], strides = [1, 1]} : vector<3x358xf32> to vector<3x256xf32>
    %195 = vector.extract_strided_slice %2 {offsets = [47, 0], sizes = [1, 256], strides = [1, 1]} : vector<49x256xf32> to vector<1x256xf32>
    %196 = vector.broadcast %195 : vector<1x256xf32> to vector<3x256xf32>
    %197 = arith.mulf %194, %196 : vector<3x256xf32>
    %198 = vector.extract_strided_slice %5 {offsets = [0, 102], sizes = [3, 256], strides = [1, 1]} : vector<3x358xf32> to vector<3x256xf32>
    %199 = vector.extract_strided_slice %2 {offsets = [48, 0], sizes = [1, 256], strides = [1, 1]} : vector<49x256xf32> to vector<1x256xf32>
    %200 = vector.broadcast %199 : vector<1x256xf32> to vector<3x256xf32>
    %201 = arith.mulf %198, %200 : vector<3x256xf32>
    %202 = tpu.concatenate %9, %13, %17, %21, %25, %29, %33, %37, %41, %45, %49, %53, %57, %61, %65, %69 in 0 : vector<3x256xf32>, vector<3x256xf32>, vector<3x256xf32>, vector<3x256xf32>, vector<3x256xf32>, vector<3x256xf32>, vector<3x256xf32>, vector<3x256xf32>, vector<3x256xf32>, vector<3x256xf32>, vector<3x256xf32>, vector<3x256xf32>, vector<3x256xf32>, vector<3x256xf32>, vector<3x256xf32>, vector<3x256xf32> -> vector<48x256xf32>
    %203 = tpu.concatenate %73, %77, %81, %85, %89, %93, %97, %101, %105, %109, %113, %117, %121, %125, %129, %133 in 0 : vector<3x256xf32>, vector<3x256xf32>, vector<3x256xf32>, vector<3x256xf32>, vector<3x256xf32>, vector<3x256xf32>, vector<3x256xf32>, vector<3x256xf32>, vector<3x256xf32>, vector<3x256xf32>, vector<3x256xf32>, vector<3x256xf32>, vector<3x256xf32>, vector<3x256xf32>, vector<3x256xf32>, vector<3x256xf32> -> vector<48x256xf32>
    %204 = tpu.concatenate %137, %141, %145, %149, %153, %157, %161, %165, %169, %173, %177, %181, %185, %189, %193, %197 in 0 : vector<3x256xf32>, vector<3x256xf32>, vector<3x256xf32>, vector<3x256xf32>, vector<3x256xf32>, vector<3x256xf32>, vector<3x256xf32>, vector<3x256xf32>, vector<3x256xf32>, vector<3x256xf32>, vector<3x256xf32>, vector<3x256xf32>, vector<3x256xf32>, vector<3x256xf32>, vector<3x256xf32>, vector<3x256xf32> -> vector<48x256xf32>
    %205 = tpu.concatenate %202, %203, %204, %201 in 0 : vector<48x256xf32>, vector<48x256xf32>, vector<48x256xf32>, vector<3x256xf32> -> vector<147x256xf32>
    %cst_6 = arith.constant dense<0.000000e+00> : vector<8x256xf32>
    %206 = tpu.matmul %3, %205, %cst_6 {dimension_numbers = #tpu.dot_dimension_numbers<[1], [0], [0], [1], [0, 0, 1, 1], [], []>} : vector<8x147xf32>, vector<147x256xf32>, vector<8x256xf32> -> vector<8x256xf32>
    %c0_7 = arith.constant 0 : index
    %c0_8 = arith.constant 0 : index
    %207 = vector.load %arg8[%c0_7, %c0_8] : memref<9x256xf32, #tpu.memory_space<vmem>>, vector<9x256xf32>
    %c0_9 = arith.constant 0 : index
    %c0_10 = arith.constant 0 : index
    %208 = vector.load %arg3[%c0_9, %c0_10] : memref<8x72xf32, #tpu.memory_space<vmem>>, vector<8x72xf32>
    %cst_11 = arith.constant 0.000000e+00 : f32
    %209 = vector.broadcast %cst_11 : f32 to vector<8x17xf32>
    %210 = tpu.concatenate %209, %206, %209 in 1 : vector<8x17xf32>, vector<8x256xf32>, vector<8x17xf32> -> vector<8x290xf32>
    %211 = vector.extract_strided_slice %210 {offsets = [0, 0], sizes = [8, 256], strides = [1, 1]} : vector<8x290xf32> to vector<8x256xf32>
    %212 = vector.extract_strided_slice %207 {offsets = [0, 0], sizes = [1, 256], strides = [1, 1]} : vector<9x256xf32> to vector<1x256xf32>
    %213 = vector.broadcast %212 : vector<1x256xf32> to vector<8x256xf32>
    %214 = arith.mulf %211, %213 : vector<8x256xf32>
    %215 = vector.extract_strided_slice %210 {offsets = [0, 1], sizes = [8, 256], strides = [1, 1]} : vector<8x290xf32> to vector<8x256xf32>
    %216 = vector.extract_strided_slice %207 {offsets = [1, 0], sizes = [1, 256], strides = [1, 1]} : vector<9x256xf32> to vector<1x256xf32>
    %217 = vector.broadcast %216 : vector<1x256xf32> to vector<8x256xf32>
    %218 = arith.mulf %215, %217 : vector<8x256xf32>
    %219 = vector.extract_strided_slice %210 {offsets = [0, 2], sizes = [8, 256], strides = [1, 1]} : vector<8x290xf32> to vector<8x256xf32>
    %220 = vector.extract_strided_slice %207 {offsets = [2, 0], sizes = [1, 256], strides = [1, 1]} : vector<9x256xf32> to vector<1x256xf32>
    %221 = vector.broadcast %220 : vector<1x256xf32> to vector<8x256xf32>
    %222 = arith.mulf %219, %221 : vector<8x256xf32>
    %223 = vector.extract_strided_slice %210 {offsets = [0, 16], sizes = [8, 256], strides = [1, 1]} : vector<8x290xf32> to vector<8x256xf32>
    %224 = vector.extract_strided_slice %207 {offsets = [3, 0], sizes = [1, 256], strides = [1, 1]} : vector<9x256xf32> to vector<1x256xf32>
    %225 = vector.broadcast %224 : vector<1x256xf32> to vector<8x256xf32>
    %226 = arith.mulf %223, %225 : vector<8x256xf32>
    %227 = vector.extract_strided_slice %210 {offsets = [0, 17], sizes = [8, 256], strides = [1, 1]} : vector<8x290xf32> to vector<8x256xf32>
    %228 = vector.extract_strided_slice %207 {offsets = [4, 0], sizes = [1, 256], strides = [1, 1]} : vector<9x256xf32> to vector<1x256xf32>
    %229 = vector.broadcast %228 : vector<1x256xf32> to vector<8x256xf32>
    %230 = arith.mulf %227, %229 : vector<8x256xf32>
    %231 = vector.extract_strided_slice %210 {offsets = [0, 18], sizes = [8, 256], strides = [1, 1]} : vector<8x290xf32> to vector<8x256xf32>
    %232 = vector.extract_strided_slice %207 {offsets = [5, 0], sizes = [1, 256], strides = [1, 1]} : vector<9x256xf32> to vector<1x256xf32>
    %233 = vector.broadcast %232 : vector<1x256xf32> to vector<8x256xf32>
    %234 = arith.mulf %231, %233 : vector<8x256xf32>
    %235 = vector.extract_strided_slice %210 {offsets = [0, 32], sizes = [8, 256], strides = [1, 1]} : vector<8x290xf32> to vector<8x256xf32>
    %236 = vector.extract_strided_slice %207 {offsets = [6, 0], sizes = [1, 256], strides = [1, 1]} : vector<9x256xf32> to vector<1x256xf32>
    %237 = vector.broadcast %236 : vector<1x256xf32> to vector<8x256xf32>
    %238 = arith.mulf %235, %237 : vector<8x256xf32>
    %239 = vector.extract_strided_slice %210 {offsets = [0, 33], sizes = [8, 256], strides = [1, 1]} : vector<8x290xf32> to vector<8x256xf32>
    %240 = vector.extract_strided_slice %207 {offsets = [7, 0], sizes = [1, 256], strides = [1, 1]} : vector<9x256xf32> to vector<1x256xf32>
    %241 = vector.broadcast %240 : vector<1x256xf32> to vector<8x256xf32>
    %242 = arith.mulf %239, %241 : vector<8x256xf32>
    %243 = vector.extract_strided_slice %210 {offsets = [0, 34], sizes = [8, 256], strides = [1, 1]} : vector<8x290xf32> to vector<8x256xf32>
    %244 = vector.extract_strided_slice %207 {offsets = [8, 0], sizes = [1, 256], strides = [1, 1]} : vector<9x256xf32> to vector<1x256xf32>
    %245 = vector.broadcast %244 : vector<1x256xf32> to vector<8x256xf32>
    %246 = arith.mulf %243, %245 : vector<8x256xf32>
    %247 = tpu.concatenate %214, %218, %222, %226, %230, %234, %238, %242, %246 in 0 : vector<8x256xf32>, vector<8x256xf32>, vector<8x256xf32>, vector<8x256xf32>, vector<8x256xf32>, vector<8x256xf32>, vector<8x256xf32>, vector<8x256xf32>, vector<8x256xf32> -> vector<72x256xf32>
    %cst_12 = arith.constant dense<0.000000e+00> : vector<8x256xf32>
    %248 = tpu.matmul %208, %247, %cst_12 {dimension_numbers = #tpu.dot_dimension_numbers<[1], [0], [0], [1], [0, 0, 1, 1], [], []>} : vector<8x72xf32>, vector<72x256xf32>, vector<8x256xf32> -> vector<8x256xf32>
    %cst_13 = arith.constant 0.000000e+00 : f32
    %249 = vector.broadcast %cst_13 : f32 to vector<8x256xf32>
    %250 = arith.cmpf oge, %248, %249 : vector<8x256xf32>
    %cst_14 = arith.constant 2.500000e-01 : f32
    %251 = vector.broadcast %cst_14 : f32 to vector<8x256xf32>
    %252 = arith.mulf %251, %248 : vector<8x256xf32>
    %253 = arith.select %250, %248, %252 : vector<8x256xi1>, vector<8x256xf32>
    %254 = arith.addf %253, %206 : vector<8x256xf32>
    %c0_15 = arith.constant 0 : index
    %c0_16 = arith.constant 0 : index
    %255 = vector.load %arg9[%c0_15, %c0_16] : memref<256x64xf32, #tpu.memory_space<vmem>>, vector<256x64xf32>
    %256 = vector.extract_strided_slice %254 {offsets = [0, 1], sizes = [8, 255], strides = [1, 1]} : vector<8x256xf32> to vector<8x255xf32>
    %257 = vector.extract_strided_slice %254 {offsets = [0, 255], sizes = [8, 1], strides = [1, 1]} : vector<8x256xf32> to vector<8x1xf32>
    %258 = tpu.concatenate %256, %257 in 1 : vector<8x255xf32>, vector<8x1xf32> -> vector<8x256xf32>
    %259 = arith.maximumf %254, %258 : vector<8x256xf32>
    %260 = vector.extract_strided_slice %259 {offsets = [0, 16], sizes = [8, 240], strides = [1, 1]} : vector<8x256xf32> to vector<8x240xf32>
    %261 = vector.extract_strided_slice %259 {offsets = [0, 240], sizes = [8, 16], strides = [1, 1]} : vector<8x256xf32> to vector<8x16xf32>
    %262 = tpu.concatenate %260, %261 in 1 : vector<8x240xf32>, vector<8x16xf32> -> vector<8x256xf32>
    %263 = arith.maximumf %259, %262 : vector<8x256xf32>
    %cst_17 = arith.constant dense<0.000000e+00> : vector<8x64xf32>
    %264 = tpu.matmul %263, %255, %cst_17 {dimension_numbers = #tpu.dot_dimension_numbers<[1], [0], [0], [1], [0, 0, 1, 1], [], []>} : vector<8x256xf32>, vector<256x64xf32>, vector<8x64xf32> -> vector<8x64xf32>
    %c0_18 = arith.constant 0 : index
    %c0_19 = arith.constant 0 : index
    %265 = vector.load %arg10[%c0_18, %c0_19] : memref<9x64xf32, #tpu.memory_space<vmem>>, vector<9x64xf32>
    %c0_20 = arith.constant 0 : index
    %c0_21 = arith.constant 0 : index
    %266 = vector.load %arg4[%c0_20, %c0_21] : memref<16x72xf32, #tpu.memory_space<vmem>>, vector<16x72xf32>
    %cst_22 = arith.constant 0.000000e+00 : f32
    %267 = vector.broadcast %cst_22 : f32 to vector<8x9xf32>
    %268 = tpu.concatenate %267, %264, %267 in 1 : vector<8x9xf32>, vector<8x64xf32>, vector<8x9xf32> -> vector<8x82xf32>
    %269 = vector.extract_strided_slice %268 {offsets = [0, 0], sizes = [8, 64], strides = [1, 1]} : vector<8x82xf32> to vector<8x64xf32>
    %270 = vector.extract_strided_slice %265 {offsets = [0, 0], sizes = [1, 64], strides = [1, 1]} : vector<9x64xf32> to vector<1x64xf32>
    %271 = vector.broadcast %270 : vector<1x64xf32> to vector<8x64xf32>
    %272 = arith.mulf %269, %271 : vector<8x64xf32>
    %273 = vector.extract_strided_slice %268 {offsets = [0, 1], sizes = [8, 64], strides = [1, 1]} : vector<8x82xf32> to vector<8x64xf32>
    %274 = vector.extract_strided_slice %265 {offsets = [1, 0], sizes = [1, 64], strides = [1, 1]} : vector<9x64xf32> to vector<1x64xf32>
    %275 = vector.broadcast %274 : vector<1x64xf32> to vector<8x64xf32>
    %276 = arith.mulf %273, %275 : vector<8x64xf32>
    %277 = vector.extract_strided_slice %268 {offsets = [0, 2], sizes = [8, 64], strides = [1, 1]} : vector<8x82xf32> to vector<8x64xf32>
    %278 = vector.extract_strided_slice %265 {offsets = [2, 0], sizes = [1, 64], strides = [1, 1]} : vector<9x64xf32> to vector<1x64xf32>
    %279 = vector.broadcast %278 : vector<1x64xf32> to vector<8x64xf32>
    %280 = arith.mulf %277, %279 : vector<8x64xf32>
    %281 = vector.extract_strided_slice %268 {offsets = [0, 8], sizes = [8, 64], strides = [1, 1]} : vector<8x82xf32> to vector<8x64xf32>
    %282 = vector.extract_strided_slice %265 {offsets = [3, 0], sizes = [1, 64], strides = [1, 1]} : vector<9x64xf32> to vector<1x64xf32>
    %283 = vector.broadcast %282 : vector<1x64xf32> to vector<8x64xf32>
    %284 = arith.mulf %281, %283 : vector<8x64xf32>
    %285 = vector.extract_strided_slice %268 {offsets = [0, 9], sizes = [8, 64], strides = [1, 1]} : vector<8x82xf32> to vector<8x64xf32>
    %286 = vector.extract_strided_slice %265 {offsets = [4, 0], sizes = [1, 64], strides = [1, 1]} : vector<9x64xf32> to vector<1x64xf32>
    %287 = vector.broadcast %286 : vector<1x64xf32> to vector<8x64xf32>
    %288 = arith.mulf %285, %287 : vector<8x64xf32>
    %289 = vector.extract_strided_slice %268 {offsets = [0, 10], sizes = [8, 64], strides = [1, 1]} : vector<8x82xf32> to vector<8x64xf32>
    %290 = vector.extract_strided_slice %265 {offsets = [5, 0], sizes = [1, 64], strides = [1, 1]} : vector<9x64xf32> to vector<1x64xf32>
    %291 = vector.broadcast %290 : vector<1x64xf32> to vector<8x64xf32>
    %292 = arith.mulf %289, %291 : vector<8x64xf32>
    %293 = vector.extract_strided_slice %268 {offsets = [0, 16], sizes = [8, 64], strides = [1, 1]} : vector<8x82xf32> to vector<8x64xf32>
    %294 = vector.extract_strided_slice %265 {offsets = [6, 0], sizes = [1, 64], strides = [1, 1]} : vector<9x64xf32> to vector<1x64xf32>
    %295 = vector.broadcast %294 : vector<1x64xf32> to vector<8x64xf32>
    %296 = arith.mulf %293, %295 : vector<8x64xf32>
    %297 = vector.extract_strided_slice %268 {offsets = [0, 17], sizes = [8, 64], strides = [1, 1]} : vector<8x82xf32> to vector<8x64xf32>
    %298 = vector.extract_strided_slice %265 {offsets = [7, 0], sizes = [1, 64], strides = [1, 1]} : vector<9x64xf32> to vector<1x64xf32>
    %299 = vector.broadcast %298 : vector<1x64xf32> to vector<8x64xf32>
    %300 = arith.mulf %297, %299 : vector<8x64xf32>
    %301 = vector.extract_strided_slice %268 {offsets = [0, 18], sizes = [8, 64], strides = [1, 1]} : vector<8x82xf32> to vector<8x64xf32>
    %302 = vector.extract_strided_slice %265 {offsets = [8, 0], sizes = [1, 64], strides = [1, 1]} : vector<9x64xf32> to vector<1x64xf32>
    %303 = vector.broadcast %302 : vector<1x64xf32> to vector<8x64xf32>
    %304 = arith.mulf %301, %303 : vector<8x64xf32>
    %305 = tpu.concatenate %272, %276, %280, %284, %288, %292, %296, %300, %304 in 0 : vector<8x64xf32>, vector<8x64xf32>, vector<8x64xf32>, vector<8x64xf32>, vector<8x64xf32>, vector<8x64xf32>, vector<8x64xf32>, vector<8x64xf32>, vector<8x64xf32> -> vector<72x64xf32>
    %cst_23 = arith.constant dense<0.000000e+00> : vector<16x64xf32>
    %306 = tpu.matmul %266, %305, %cst_23 {dimension_numbers = #tpu.dot_dimension_numbers<[1], [0], [0], [1], [0, 0, 1, 1], [], []>} : vector<16x72xf32>, vector<72x64xf32>, vector<16x64xf32> -> vector<16x64xf32>
    %cst_24 = arith.constant 0.000000e+00 : f32
    %307 = vector.broadcast %cst_24 : f32 to vector<16x64xf32>
    %308 = arith.cmpf oge, %306, %307 : vector<16x64xf32>
    %cst_25 = arith.constant 2.500000e-01 : f32
    %309 = vector.broadcast %cst_25 : f32 to vector<16x64xf32>
    %310 = arith.mulf %309, %306 : vector<16x64xf32>
    %311 = arith.select %308, %306, %310 : vector<16x64xi1>, vector<16x64xf32>
    %c0_26 = arith.constant 0 : index
    %c0_27 = arith.constant 0 : index
    %312 = vector.load %arg11[%c0_26, %c0_27] : memref<64x256xf32, #tpu.memory_space<vmem>>, vector<64x256xf32>
    %cst_28 = arith.constant dense<0.000000e+00> : vector<16x256xf32>
    %313 = tpu.matmul %311, %312, %cst_28 {dimension_numbers = #tpu.dot_dimension_numbers<[1], [0], [0], [1], [0, 0, 1, 1], [], []>} : vector<16x64xf32>, vector<64x256xf32>, vector<16x256xf32> -> vector<16x256xf32>
    %314 = tpu.concatenate %313, %254 in 0 : vector<16x256xf32>, vector<8x256xf32> -> vector<24x256xf32>
    %c0_29 = arith.constant 0 : index
    %c0_30 = arith.constant 0 : index
    %315 = vector.load %arg8[%c0_29, %c0_30] : memref<9x256xf32, #tpu.memory_space<vmem>>, vector<9x256xf32>
    %c0_31 = arith.constant 0 : index
    %c0_32 = arith.constant 0 : index
    %316 = vector.load %arg5[%c0_31, %c0_32] : memref<8x216xf32, #tpu.memory_space<vmem>>, vector<8x216xf32>
    %cst_33 = arith.constant 0.000000e+00 : f32
    %317 = vector.broadcast %cst_33 : f32 to vector<24x17xf32>
    %318 = tpu.concatenate %317, %314, %317 in 1 : vector<24x17xf32>, vector<24x256xf32>, vector<24x17xf32> -> vector<24x290xf32>
    %319 = vector.extract_strided_slice %318 {offsets = [0, 0], sizes = [24, 256], strides = [1, 1]} : vector<24x290xf32> to vector<24x256xf32>
    %320 = vector.extract_strided_slice %315 {offsets = [0, 0], sizes = [1, 256], strides = [1, 1]} : vector<9x256xf32> to vector<1x256xf32>
    %321 = vector.broadcast %320 : vector<1x256xf32> to vector<24x256xf32>
    %322 = arith.mulf %319, %321 : vector<24x256xf32>
    %323 = vector.extract_strided_slice %318 {offsets = [0, 1], sizes = [24, 256], strides = [1, 1]} : vector<24x290xf32> to vector<24x256xf32>
    %324 = vector.extract_strided_slice %315 {offsets = [1, 0], sizes = [1, 256], strides = [1, 1]} : vector<9x256xf32> to vector<1x256xf32>
    %325 = vector.broadcast %324 : vector<1x256xf32> to vector<24x256xf32>
    %326 = arith.mulf %323, %325 : vector<24x256xf32>
    %327 = vector.extract_strided_slice %318 {offsets = [0, 2], sizes = [24, 256], strides = [1, 1]} : vector<24x290xf32> to vector<24x256xf32>
    %328 = vector.extract_strided_slice %315 {offsets = [2, 0], sizes = [1, 256], strides = [1, 1]} : vector<9x256xf32> to vector<1x256xf32>
    %329 = vector.broadcast %328 : vector<1x256xf32> to vector<24x256xf32>
    %330 = arith.mulf %327, %329 : vector<24x256xf32>
    %331 = vector.extract_strided_slice %318 {offsets = [0, 16], sizes = [24, 256], strides = [1, 1]} : vector<24x290xf32> to vector<24x256xf32>
    %332 = vector.extract_strided_slice %315 {offsets = [3, 0], sizes = [1, 256], strides = [1, 1]} : vector<9x256xf32> to vector<1x256xf32>
    %333 = vector.broadcast %332 : vector<1x256xf32> to vector<24x256xf32>
    %334 = arith.mulf %331, %333 : vector<24x256xf32>
    %335 = vector.extract_strided_slice %318 {offsets = [0, 17], sizes = [24, 256], strides = [1, 1]} : vector<24x290xf32> to vector<24x256xf32>
    %336 = vector.extract_strided_slice %315 {offsets = [4, 0], sizes = [1, 256], strides = [1, 1]} : vector<9x256xf32> to vector<1x256xf32>
    %337 = vector.broadcast %336 : vector<1x256xf32> to vector<24x256xf32>
    %338 = arith.mulf %335, %337 : vector<24x256xf32>
    %339 = vector.extract_strided_slice %318 {offsets = [0, 18], sizes = [24, 256], strides = [1, 1]} : vector<24x290xf32> to vector<24x256xf32>
    %340 = vector.extract_strided_slice %315 {offsets = [5, 0], sizes = [1, 256], strides = [1, 1]} : vector<9x256xf32> to vector<1x256xf32>
    %341 = vector.broadcast %340 : vector<1x256xf32> to vector<24x256xf32>
    %342 = arith.mulf %339, %341 : vector<24x256xf32>
    %343 = vector.extract_strided_slice %318 {offsets = [0, 32], sizes = [24, 256], strides = [1, 1]} : vector<24x290xf32> to vector<24x256xf32>
    %344 = vector.extract_strided_slice %315 {offsets = [6, 0], sizes = [1, 256], strides = [1, 1]} : vector<9x256xf32> to vector<1x256xf32>
    %345 = vector.broadcast %344 : vector<1x256xf32> to vector<24x256xf32>
    %346 = arith.mulf %343, %345 : vector<24x256xf32>
    %347 = vector.extract_strided_slice %318 {offsets = [0, 33], sizes = [24, 256], strides = [1, 1]} : vector<24x290xf32> to vector<24x256xf32>
    %348 = vector.extract_strided_slice %315 {offsets = [7, 0], sizes = [1, 256], strides = [1, 1]} : vector<9x256xf32> to vector<1x256xf32>
    %349 = vector.broadcast %348 : vector<1x256xf32> to vector<24x256xf32>
    %350 = arith.mulf %347, %349 : vector<24x256xf32>
    %351 = vector.extract_strided_slice %318 {offsets = [0, 34], sizes = [24, 256], strides = [1, 1]} : vector<24x290xf32> to vector<24x256xf32>
    %352 = vector.extract_strided_slice %315 {offsets = [8, 0], sizes = [1, 256], strides = [1, 1]} : vector<9x256xf32> to vector<1x256xf32>
    %353 = vector.broadcast %352 : vector<1x256xf32> to vector<24x256xf32>
    %354 = arith.mulf %351, %353 : vector<24x256xf32>
    %355 = tpu.concatenate %322, %326, %330, %334, %338, %342, %346, %350, %354 in 0 : vector<24x256xf32>, vector<24x256xf32>, vector<24x256xf32>, vector<24x256xf32>, vector<24x256xf32>, vector<24x256xf32>, vector<24x256xf32>, vector<24x256xf32>, vector<24x256xf32> -> vector<216x256xf32>
    %cst_34 = arith.constant dense<0.000000e+00> : vector<8x256xf32>
    %356 = tpu.matmul %316, %355, %cst_34 {dimension_numbers = #tpu.dot_dimension_numbers<[1], [0], [0], [1], [0, 0, 1, 1], [], []>} : vector<8x216xf32>, vector<216x256xf32>, vector<8x256xf32> -> vector<8x256xf32>
    %cst_35 = arith.constant 0.000000e+00 : f32
    %357 = vector.broadcast %cst_35 : f32 to vector<8x256xf32>
    %358 = arith.cmpf oge, %356, %357 : vector<8x256xf32>
    %cst_36 = arith.constant 2.500000e-01 : f32
    %359 = vector.broadcast %cst_36 : f32 to vector<8x256xf32>
    %360 = arith.mulf %359, %356 : vector<8x256xf32>
    %361 = arith.select %358, %356, %360 : vector<8x256xi1>, vector<8x256xf32>
    %c0_37 = arith.constant 0 : index
    %c0_38 = arith.constant 0 : index
    %362 = vector.load %arg6[%c0_37, %c0_38] : memref<3x8xf32, #tpu.memory_space<vmem>>, vector<3x8xf32>
    %cst_39 = arith.constant dense<0.000000e+00> : vector<3x256xf32>
    %363 = tpu.matmul %362, %361, %cst_39 {dimension_numbers = #tpu.dot_dimension_numbers<[1], [0], [0], [1], [0, 0, 1, 1], [], []>} : vector<3x8xf32>, vector<8x256xf32>, vector<3x256xf32> -> vector<3x256xf32>
    %364 = arith.addf %363, %1 : vector<3x256xf32>
    %c0_40 = arith.constant 0 : index
    %c0_41 = arith.constant 0 : index
    %c0_42 = arith.constant 0 : index
    %365 = vector.load %arg12[%c0_40, %c0_41, %c0_42] : memref<1x3x256xf32, #tpu.memory_space<vmem>>, vector<1x3x256xf32>
    %366 = vector.shape_cast %365 : vector<1x3x256xf32> to vector<3x256xf32>
    %367 = vector.shape_cast %364 : vector<3x256xf32> to vector<1x3x256xf32>
    tpu.vector_store %arg12[%c0_40, %c0_41, %c0_42], %367 {strides = array<i32>} : memref<1x3x256xf32, #tpu.memory_space<vmem>>, vector<1x3x256xf32>,
    return
  }
  func.func @transform_0(%arg0: i32) -> (i32, i32, i32) {
    %c0_i32 = arith.constant 0 : i32
    %c0_i32_0 = arith.constant 0 : i32
    %c0_i32_1 = arith.constant 0 : i32
    return %arg0, %c0_i32, %c0_i32_0 : i32, i32, i32
  }
  func.func @transform_1(%arg0: i32) -> (i32, i32) {
    %c0_i32 = arith.constant 0 : i32
    %c0_i32_0 = arith.constant 0 : i32
    %c0_i32_1 = arith.constant 0 : i32
    return %c0_i32, %c0_i32_0 : i32, i32
  }
  func.func @transform_2(%arg0: i32) -> (i32, i32) {
    %c0_i32 = arith.constant 0 : i32
    %c0_i32_0 = arith.constant 0 : i32
    %c0_i32_1 = arith.constant 0 : i32
    return %c0_i32, %c0_i32_0 : i32, i32
  }
  func.func @transform_3(%arg0: i32) -> (i32, i32) {
    %c0_i32 = arith.constant 0 : i32
    %c0_i32_0 = arith.constant 0 : i32
    %c0_i32_1 = arith.constant 0 : i32
    return %c0_i32, %c0_i32_0 : i32, i32
  }
  func.func @transform_4(%arg0: i32) -> (i32, i32) {
    %c0_i32 = arith.constant 0 : i32
    %c0_i32_0 = arith.constant 0 : i32
    %c0_i32_1 = arith.constant 0 : i32
    return %c0_i32, %c0_i32_0 : i32, i32
  }
  func.func @transform_5(%arg0: i32) -> (i32, i32) {
    %c0_i32 = arith.constant 0 : i32
    %c0_i32_0 = arith.constant 0 : i32
    %c0_i32_1 = arith.constant 0 : i32
    return %c0_i32, %c0_i32_0 : i32, i32
  }
  func.func @transform_6(%arg0: i32) -> (i32, i32) {
    %c0_i32 = arith.constant 0 : i32
    %c0_i32_0 = arith.constant 0 : i32
    %c0_i32_1 = arith.constant 0 : i32
    return %c0_i32, %c0_i32_0 : i32, i32
  }
  func.func @transform_7(%arg0: i32) -> (i32, i32) {
    %c0_i32 = arith.constant 0 : i32
    %c0_i32_0 = arith.constant 0 : i32
    %c0_i32_1 = arith.constant 0 : i32
    return %c0_i32, %c0_i32_0 : i32, i32
  }
  func.func @transform_8(%arg0: i32) -> (i32, i32) {
    %c0_i32 = arith.constant 0 : i32
    %c0_i32_0 = arith.constant 0 : i32
    %c0_i32_1 = arith.constant 0 : i32
    return %c0_i32, %c0_i32_0 : i32, i32
  }
  func.func @transform_9(%arg0: i32) -> (i32, i32) {
    %c0_i32 = arith.constant 0 : i32
    %c0_i32_0 = arith.constant 0 : i32
    %c0_i32_1 = arith.constant 0 : i32
    return %c0_i32, %c0_i32_0 : i32, i32
  }
  func.func @transform_10(%arg0: i32) -> (i32, i32) {
    %c0_i32 = arith.constant 0 : i32
    %c0_i32_0 = arith.constant 0 : i32
    %c0_i32_1 = arith.constant 0 : i32
    return %c0_i32, %c0_i32_0 : i32, i32
  }
  func.func @transform_11(%arg0: i32) -> (i32, i32, i32) {
    %c0_i32 = arith.constant 0 : i32
    %c0_i32_0 = arith.constant 0 : i32
    %c0_i32_1 = arith.constant 0 : i32
    return %arg0, %c0_i32, %c0_i32_0 : i32, i32, i32
  }
}

</mosaic_0001>

<llo_original>
// kernel: tpu_custom_call.1
$region0: #{tpu_custom_call.1}
  #allocation0 [shape = 'u32[]', space=smem, size = 0x4, offset = 0x4, fixed_abs, tag = 'smem constant byte address 0x4 - core index']
  #allocation1 [shape = 'u32[144,128]{1,0:T(1,128)}', space=vmem, size = 0x12000, scoped, tag = 'internal scratch']
  %s0 = inlined_call_operand.vmem [shape: f32[2,3,256], index: 0, kind: input, shape index: {}]
  %s1 = inlined_call_operand.vmem [shape: f32[8,147], index: 1, kind: input, shape index: {}]
  %s2 = inlined_call_operand.vmem [shape: f32[8,72], index: 2, kind: input, shape index: {}]
  %s3 = inlined_call_operand.vmem [shape: f32[16,72], index: 3, kind: input, shape index: {}]
  %s4 = inlined_call_operand.vmem [shape: f32[8,216], index: 4, kind: input, shape index: {}]
  %s5 = inlined_call_operand.vmem [shape: f32[3,8], index: 5, kind: input, shape index: {}]
  %s6 = inlined_call_operand.vmem [shape: f32[49,256], index: 6, kind: input, shape index: {}]
  %s7 = inlined_call_operand.vmem [shape: f32[9,256], index: 7, kind: input, shape index: {}]
  %s8 = inlined_call_operand.vmem [shape: f32[256,64], index: 8, kind: input, shape index: {}]
  %s9 = inlined_call_operand.vmem [shape: f32[9,64], index: 9, kind: input, shape index: {}]
  %s10 = inlined_call_operand.vmem [shape: f32[64,256], index: 10, kind: input, shape index: {}]
  %s11 = inlined_call_operand.vmem [shape: f32[2,3,256], index: 11, kind: output, shape index: {}]
  %s12 = sld [smem:[#allocation0]]
  $region77: #{tpu_custom_call.1} parent=0
    _
  %s14 = ssub.s32 1, %s12
  %s15 = scalar_select 0, %s14, %s12
  loop: start=0, step=1, limit=4
  $region2: #{tpu_custom_call.1} parent=0 // loop_pre_header
    _
  $region3: #{tpu_custom_call.1} parent=0 // loop_header
    %s17 = sphi 0, %s21
    %p18 = scmp.ge.s32.totalorder %s17, 4
    %s27 = sphi 0, %s29
    %s30 = sphi 0, %s27
    %s31 = sphi 0, %s30
    %s47 = sphi 0, %s31
    %s51 = sphi 0, %s51
    %s53 = sphi 0, %s51
    %s54 = sphi 0, %s53
    %s68 = sphi 0, %s54
    %s72 = sphi 0, %s72
    %s74 = sphi 0, %s72
    %s75 = sphi 0, %s74
    %s89 = sphi 0, %s75
    %s93 = sphi 0, %s93
    %s95 = sphi 0, %s93
    %s96 = sphi 0, %s95
    %s110 = sphi 0, %s96
    %s114 = sphi 0, %s114
    %s116 = sphi 0, %s114
    %s117 = sphi 0, %s116
    %s131 = sphi 0, %s117
    %s135 = sphi 0, %s135
    %s137 = sphi 0, %s135
    %s138 = sphi 0, %s137
    %s152 = sphi 0, %s138
    %s156 = sphi 0, %s156
    %s158 = sphi 0, %s156
    %s159 = sphi 0, %s158
    %s173 = sphi 0, %s159
    %s177 = sphi 0, %s177
    %s179 = sphi 0, %s177
    %s180 = sphi 0, %s179
    %s194 = sphi 0, %s180
    %s198 = sphi 0, %s198
    %s200 = sphi 0, %s198
    %s201 = sphi 0, %s200
    %s215 = sphi 0, %s201
    %s219 = sphi 0, %s219
    %s221 = sphi 0, %s219
    %s222 = sphi 0, %s221
    %s236 = sphi 0, %s222
    %s240 = sphi 0, %s240
    %s242 = sphi 0, %s240
    %s243 = sphi 0, %s242
    %s257 = sphi 0, %s243
    %s263 = sphi 0, %s265
    %s266 = sphi 0, %s263
    %s267 = sphi 0, %s266
    %s283 = sphi 0, %s267
  $region4: #{tpu_custom_call.1} parent=0 // loop_header_branch
    %20 = sbr.rel (%p18) target = $region8
  $region5: #{tpu_custom_call.1} parent=0 // loop_body
    %s22 = ssub.s32 %s17, 1
    %s23 = ssub.s32 %s17, 2
    %s24 = sadd.s32 %s17, 1
    %s25 = ssub.s32 %s17, %s24
    %p26 = scmp.eq.s32.totalorder %s25, 0
    %s28 = sadd.s32 %s27, 1
    %s29 = scalar_select %p26, %s27, %s28
    %p32 = pneg %p26
    %p33 = scmp.eq.s32.totalorder %s17, 1
    %p34 = por %p32, %p33
    %p35 = scmp.ne.s32.totalorder %s27, %s30
    %p36 = scmp.eq.s32.totalorder %s17, 0
    %p37 = por %p35, %p36
    %p38 = scmp.ne.s32.totalorder %s27, %s30
    %p39 = scmp.eq.s32.totalorder %s22, 1
    %p40 = por %p38, %p39
    %p41 = scmp.ne.s32.totalorder %s30, %s31
    %p42 = scmp.eq.s32.totalorder %s22, 0
    %p43 = por %p41, %p42
    %p44 = scmp.ne.s32.totalorder %s30, %s31
    %p45 = scmp.eq.s32.totalorder %s23, 1
    %p46 = por %p44, %p45
    %p48 = scmp.ne.s32.totalorder %s31, %s47
    %p49 = scmp.eq.s32.totalorder %s23, 0
    %p50 = por %p48, %p49
    %s52 = sadd.s32 %s51, 1
    %p55 = scmp.eq.s32.totalorder %s17, 1
    %p56 = scmp.ne.s32.totalorder %s51, %s53
    %p57 = scmp.eq.s32.totalorder %s17, 0
    %p58 = por %p56, %p57
    %p59 = scmp.ne.s32.totalorder %s51, %s53
    %p60 = scmp.eq.s32.totalorder %s22, 1
    %p61 = por %p59, %p60
    %p62 = scmp.ne.s32.totalorder %s53, %s54
    %p63 = scmp.eq.s32.totalorder %s22, 0
    %p64 = por %p62, %p63
    %p65 = scmp.ne.s32.totalorder %s53, %s54
    %p66 = scmp.eq.s32.totalorder %s23, 1
    %p67 = por %p65, %p66
    %p69 = scmp.ne.s32.totalorder %s54, %s68
    %p70 = scmp.eq.s32.totalorder %s23, 0
    %p71 = por %p69, %p70
    %s73 = sadd.s32 %s72, 1
    %p76 = scmp.eq.s32.totalorder %s17, 1
    %p77 = scmp.ne.s32.totalorder %s72, %s74
    %p78 = scmp.eq.s32.totalorder %s17, 0
    %p79 = por %p77, %p78
    %p80 = scmp.ne.s32.totalorder %s72, %s74
    %p81 = scmp.eq.s32.totalorder %s22, 1
    %p82 = por %p80, %p81
    %p83 = scmp.ne.s32.totalorder %s74, %s75
    %p84 = scmp.eq.s32.totalorder %s22, 0
    %p85 = por %p83, %p84
    %p86 = scmp.ne.s32.totalorder %s74, %s75
    %p87 = scmp.eq.s32.totalorder %s23, 1
    %p88 = por %p86, %p87
    %p90 = scmp.ne.s32.totalorder %s75, %s89
    %p91 = scmp.eq.s32.totalorder %s23, 0
    %p92 = por %p90, %p91
    %s94 = sadd.s32 %s93, 1
    %p97 = scmp.eq.s32.totalorder %s17, 1
    %p98 = scmp.ne.s32.totalorder %s93, %s95
    %p99 = scmp.eq.s32.totalorder %s17, 0
    %p100 = por %p98, %p99
    %p101 = scmp.ne.s32.totalorder %s93, %s95
    %p102 = scmp.eq.s32.totalorder %s22, 1
    %p103 = por %p101, %p102
    %p104 = scmp.ne.s32.totalorder %s95, %s96
    %p105 = scmp.eq.s32.totalorder %s22, 0
    %p106 = por %p104, %p105
    %p107 = scmp.ne.s32.totalorder %s95, %s96
    %p108 = scmp.eq.s32.totalorder %s23, 1
    %p109 = por %p107, %p108
    %p111 = scmp.ne.s32.totalorder %s96, %s110
    %p112 = scmp.eq.s32.totalorder %s23, 0
    %p113 = por %p111, %p112
    %s115 = sadd.s32 %s114, 1
    %p118 = scmp.eq.s32.totalorder %s17, 1
    %p119 = scmp.ne.s32.totalorder %s114, %s116
    %p120 = scmp.eq.s32.totalorder %s17, 0
    %p121 = por %p119, %p120
    %p122 = scmp.ne.s32.totalorder %s114, %s116
    %p123 = scmp.eq.s32.totalorder %s22, 1
    %p124 = por %p122, %p123
    %p125 = scmp.ne.s32.totalorder %s116, %s117
    %p126 = scmp.eq.s32.totalorder %s22, 0
    %p127 = por %p125, %p126
    %p128 = scmp.ne.s32.totalorder %s116, %s117
    %p129 = scmp.eq.s32.totalorder %s23, 1
    %p130 = por %p128, %p129
    %p132 = scmp.ne.s32.totalorder %s117, %s131
    %p133 = scmp.eq.s32.totalorder %s23, 0
    %p134 = por %p132, %p133
    %s136 = sadd.s32 %s135, 1
    %p139 = scmp.eq.s32.totalorder %s17, 1
    %p140 = scmp.ne.s32.totalorder %s135, %s137
    %p141 = scmp.eq.s32.totalorder %s17, 0
    %p142 = por %p140, %p141
    %p143 = scmp.ne.s32.totalorder %s135, %s137
    %p144 = scmp.eq.s32.totalorder %s22, 1
    %p145 = por %p143, %p144
    %p146 = scmp.ne.s32.totalorder %s137, %s138
    %p147 = scmp.eq.s32.totalorder %s22, 0
    %p148 = por %p146, %p147
    %p149 = scmp.ne.s32.totalorder %s137, %s138
    %p150 = scmp.eq.s32.totalorder %s23, 1
    %p151 = por %p149, %p150
    %p153 = scmp.ne.s32.totalorder %s138, %s152
    %p154 = scmp.eq.s32.totalorder %s23, 0
    %p155 = por %p153, %p154
    %s157 = sadd.s32 %s156, 1
    %p160 = scmp.eq.s32.totalorder %s17, 1
    %p161 = scmp.ne.s32.totalorder %s156, %s158
    %p162 = scmp.eq.s32.totalorder %s17, 0
    %p163 = por %p161, %p162
    %p164 = scmp.ne.s32.totalorder %s156, %s158
    %p165 = scmp.eq.s32.totalorder %s22, 1
    %p166 = por %p164, %p165
    %p167 = scmp.ne.s32.totalorder %s158, %s159
    %p168 = scmp.eq.s32.totalorder %s22, 0
    %p169 = por %p167, %p168
    %p170 = scmp.ne.s32.totalorder %s158, %s159
    %p171 = scmp.eq.s32.totalorder %s23, 1
    %p172 = por %p170, %p171
    %p174 = scmp.ne.s32.totalorder %s159, %s173
    %p175 = scmp.eq.s32.totalorder %s23, 0
    %p176 = por %p174, %p175
    %s178 = sadd.s32 %s177, 1
    %p181 = scmp.eq.s32.totalorder %s17, 1
    %p182 = scmp.ne.s32.totalorder %s177, %s179
    %p183 = scmp.eq.s32.totalorder %s17, 0
    %p184 = por %p182, %p183
    %p185 = scmp.ne.s32.totalorder %s177, %s179
    %p186 = scmp.eq.s32.totalorder %s22, 1
    %p187 = por %p185, %p186
    %p188 = scmp.ne.s32.totalorder %s179, %s180
    %p189 = scmp.eq.s32.totalorder %s22, 0
    %p190 = por %p188, %p189
    %p191 = scmp.ne.s32.totalorder %s179, %s180
    %p192 = scmp.eq.s32.totalorder %s23, 1
    %p193 = por %p191, %p192
    %p195 = scmp.ne.s32.totalorder %s180, %s194
    %p196 = scmp.eq.s32.totalorder %s23, 0
    %p197 = por %p195, %p196
    %s199 = sadd.s32 %s198, 1
    %p202 = scmp.eq.s32.totalorder %s17, 1
    %p203 = scmp.ne.s32.totalorder %s198, %s200
    %p204 = scmp.eq.s32.totalorder %s17, 0
    %p205 = por %p203, %p204
    %p206 = scmp.ne.s32.totalorder %s198, %s200
    %p207 = scmp.eq.s32.totalorder %s22, 1
    %p208 = por %p206, %p207
    %p209 = scmp.ne.s32.totalorder %s200, %s201
    %p210 = scmp.eq.s32.totalorder %s22, 0
    %p211 = por %p209, %p210
    %p212 = scmp.ne.s32.totalorder %s200, %s201
    %p213 = scmp.eq.s32.totalorder %s23, 1
    %p214 = por %p212, %p213
    %p216 = scmp.ne.s32.totalorder %s201, %s215
    %p217 = scmp.eq.s32.totalorder %s23, 0
    %p218 = por %p216, %p217
    %s220 = sadd.s32 %s219, 1
    %p223 = scmp.eq.s32.totalorder %s17, 1
    %p224 = scmp.ne.s32.totalorder %s219, %s221
    %p225 = scmp.eq.s32.totalorder %s17, 0
    %p226 = por %p224, %p225
    %p227 = scmp.ne.s32.totalorder %s219, %s221
    %p228 = scmp.eq.s32.totalorder %s22, 1
    %p229 = por %p227, %p228
    %p230 = scmp.ne.s32.totalorder %s221, %s222
    %p231 = scmp.eq.s32.totalorder %s22, 0
    %p232 = por %p230, %p231
    %p233 = scmp.ne.s32.totalorder %s221, %s222
    %p234 = scmp.eq.s32.totalorder %s23, 1
    %p235 = por %p233, %p234
    %p237 = scmp.ne.s32.totalorder %s222, %s236
    %p238 = scmp.eq.s32.totalorder %s23, 0
    %p239 = por %p237, %p238
    %s241 = sadd.s32 %s240, 1
    %p244 = scmp.eq.s32.totalorder %s17, 1
    %p245 = scmp.ne.s32.totalorder %s240, %s242
    %p246 = scmp.eq.s32.totalorder %s17, 0
    %p247 = por %p245, %p246
    %p248 = scmp.ne.s32.totalorder %s240, %s242
    %p249 = scmp.eq.s32.totalorder %s22, 1
    %p250 = por %p248, %p249
    %p251 = scmp.ne.s32.totalorder %s242, %s243
    %p252 = scmp.eq.s32.totalorder %s22, 0
    %p253 = por %p251, %p252
    %p254 = scmp.ne.s32.totalorder %s242, %s243
    %p255 = scmp.eq.s32.totalorder %s23, 1
    %p256 = por %p254, %p255
    %p258 = scmp.ne.s32.totalorder %s243, %s257
    %p259 = scmp.eq.s32.totalorder %s23, 0
    %p260 = por %p258, %p259
    %s261 = ssub.s32 %s17, %s24
    %p262 = scmp.eq.s32.totalorder %s261, 0
    %s264 = sadd.s32 %s263, 1
    %s265 = scalar_select %p262, %s263, %s264
    %p268 = pneg %p262
    %p269 = scmp.eq.s32.totalorder %s17, 1
    %p270 = por %p268, %p269
    %p271 = scmp.ne.s32.totalorder %s263, %s266
    %p272 = scmp.eq.s32.totalorder %s17, 0
    %p273 = por %p271, %p272
    %p274 = scmp.ne.s32.totalorder %s263, %s266
    %p275 = scmp.eq.s32.totalorder %s22, 1
    %p276 = por %p274, %p275
    %p277 = scmp.ne.s32.totalorder %s266, %s267
    %p278 = scmp.eq.s32.totalorder %s22, 0
    %p279 = por %p277, %p278
    %p280 = scmp.ne.s32.totalorder %s266, %s267
    %p281 = scmp.eq.s32.totalorder %s23, 1
    %p282 = por %p280, %p281
    %p284 = scmp.ne.s32.totalorder %s267, %s283
    %p285 = scmp.eq.s32.totalorder %s23, 0
    %p286 = por %p284, %p285
    %p287 = scmp.le.s32.totalorder 1, %s17
    %p288 = scmp.lt.s32.totalorder %s17, 3
    %p289 = pnand %p287, %p288
    %p290 = pneg %p289
    // Predicated region
    $region9: #{tpu_custom_call.1} parent=5 // pred_check
      _
    $region10: #{tpu_custom_call.1} parent=5 // pred_check_branch
      %292 = sbr.rel (%p289) target = $region12
    $region11: #{tpu_custom_call.1} parent=5 // pred_region
      %s293 = ssub.s32 %s17, 1
      // Predicated region
      $region13: #{tpu_custom_call.1} parent=11 // pred_check
        %p294 = pneg %p64
      $region14: #{tpu_custom_call.1} parent=11 // pred_check_branch
        %296 = sbr.rel (%p294) target = $region16
      $region15: #{tpu_custom_call.1} parent=11 // pred_region
        _
      $region16: #{tpu_custom_call.1} parent=11 // pred_fallthru
        _
      // Predicated region
      $region17: #{tpu_custom_call.1} parent=11 // pred_check
        %p297 = pneg %p85
      $region18: #{tpu_custom_call.1} parent=11 // pred_check_branch
        %299 = sbr.rel (%p297) target = $region20
      $region19: #{tpu_custom_call.1} parent=11 // pred_region
        _
      $region20: #{tpu_custom_call.1} parent=11 // pred_fallthru
        _
      // Predicated region
      $region21: #{tpu_custom_call.1} parent=11 // pred_check
        %p300 = pneg %p106
      $region22: #{tpu_custom_call.1} parent=11 // pred_check_branch
        %302 = sbr.rel (%p300) target = $region24
      $region23: #{tpu_custom_call.1} parent=11 // pred_region
        _
      $region24: #{tpu_custom_call.1} parent=11 // pred_fallthru
        _
      // Predicated region
      $region25: #{tpu_custom_call.1} parent=11 // pred_check
        %p303 = pneg %p127
      $region26: #{tpu_custom_call.1} parent=11 // pred_check_branch
        %305 = sbr.rel (%p303) target = $region28
      $region27: #{tpu_custom_call.1} parent=11 // pred_region
        _
      $region28: #{tpu_custom_call.1} parent=11 // pred_fallthru
        _
      // Predicated region
      $region29: #{tpu_custom_call.1} parent=11 // pred_check
        %p306 = pneg %p148
      $region30: #{tpu_custom_call.1} parent=11 // pred_check_branch
        %308 = sbr.rel (%p306) target = $region32
      $region31: #{tpu_custom_call.1} parent=11 // pred_region
        _
      $region32: #{tpu_custom_call.1} parent=11 // pred_fallthru
        _
      // Predicated region
      $region33: #{tpu_custom_call.1} parent=11 // pred_check
        %p309 = pneg %p169
      $region34: #{tpu_custom_call.1} parent=11 // pred_check_branch
        %311 = sbr.rel (%p309) target = $region36
      $region35: #{tpu_custom_call.1} parent=11 // pred_region
        _
      $region36: #{tpu_custom_call.1} parent=11 // pred_fallthru
        _
      // Predicated region
      $region37: #{tpu_custom_call.1} parent=11 // pred_check
        %p312 = pneg %p190
      $region38: #{tpu_custom_call.1} parent=11 // pred_check_branch
        %314 = sbr.rel (%p312) target = $region40
      $region39: #{tpu_custom_call.1} parent=11 // pred_region
        _
      $region40: #{tpu_custom_call.1} parent=11 // pred_fallthru
        _
      // Predicated region
      $region41: #{tpu_custom_call.1} parent=11 // pred_check
        %p315 = pneg %p211
      $region42: #{tpu_custom_call.1} parent=11 // pred_check_branch
        %317 = sbr.rel (%p315) target = $region44
      $region43: #{tpu_custom_call.1} parent=11 // pred_region
        _
      $region44: #{tpu_custom_call.1} parent=11 // pred_fallthru
        _
      // Predicated region
      $region45: #{tpu_custom_call.1} parent=11 // pred_check
        %p318 = pneg %p232
      $region46: #{tpu_custom_call.1} parent=11 // pred_check_branch
        %320 = sbr.rel (%p318) target = $region48
      $region47: #{tpu_custom_call.1} parent=11 // pred_region
        _
      $region48: #{tpu_custom_call.1} parent=11 // pred_fallthru
        _
      // Predicated region
      $region49: #{tpu_custom_call.1} parent=11 // pred_check
        %p321 = pneg %p253
      $region50: #{tpu_custom_call.1} parent=11 // pred_check_branch
        %323 = sbr.rel (%p321) target = $region52
      $region51: #{tpu_custom_call.1} parent=11 // pred_region
        _
      $region52: #{tpu_custom_call.1} parent=11 // pred_fallthru
        _
    $region12: #{tpu_custom_call.1} parent=5 // pred_fallthru
      _
    %p324 = scmp.lt.s32.totalorder %s17, 2
    // Predicated region
    $region53: #{tpu_custom_call.1} parent=5 // pred_check
      %p325 = pneg %p324
    $region54: #{tpu_custom_call.1} parent=5 // pred_check_branch
      %327 = sbr.rel (%p325) target = $region56
    $region55: #{tpu_custom_call.1} parent=5 // pred_region
      // Predicated region
      $region57: #{tpu_custom_call.1} parent=55 // pred_check
        %p328 = pneg %p37
      $region58: #{tpu_custom_call.1} parent=55 // pred_check_branch
        %330 = sbr.rel (%p328) target = $region60
      $region59: #{tpu_custom_call.1} parent=55 // pred_region
        %p331 = scmp.lt.s32.totalorder %s17, 1
        %s332 = scalar_select %p331, %s17, 1
        %s333 = smul.addr %s332, 2
        %s334 = smul.addr %s333, 4
        %s335 = scalar_lea.vmem %s0, %s334
      $region60: #{tpu_custom_call.1} parent=55 // pred_fallthru
        _
    $region56: #{tpu_custom_call.1} parent=5 // pred_fallthru
      _
    %p336 = scmp.le.s32.totalorder 1, %s17
    %p337 = scmp.lt.s32.totalorder %s17, 3
    %p338 = pnand %p336, %p337
    %p339 = pneg %p338
    // Predicated region
    $region61: #{tpu_custom_call.1} parent=5 // pred_check
      _
    $region62: #{tpu_custom_call.1} parent=5 // pred_check_branch
      %341 = sbr.rel (%p338) target = $region64
    $region63: #{tpu_custom_call.1} parent=5 // pred_region
      %s342 = ssub.s32 %s17, 1
      %p343 = scmp.lt.s32.totalorder %s22, 1
      %s344 = scalar_select %p343, %s22, 1
      %s345 = smul.addr %s344, 2
      %s346 = smul.addr %s345, 4
      %s347 = scalar_lea.vmem %s0, %s346
      %p348 = pneg %p43
      %p349 = pneg %p40
      %p350 = pneg %p64
      %p351 = pneg %p61
      %p352 = pneg %p85
      %p353 = pneg %p82
      %p354 = pneg %p106
      %p355 = pneg %p103
      %p356 = pneg %p127
      %p357 = pneg %p124
      %p358 = pneg %p148
      %p359 = pneg %p145
      %p360 = pneg %p169
      %p361 = pneg %p166
      %p362 = pneg %p190
      %p363 = pneg %p187
      %p364 = pneg %p211
      %p365 = pneg %p208
      %p366 = pneg %p232
      %p367 = pneg %p229
      %p368 = pneg %p253
      %p369 = pneg %p250
      %p370 = pneg %p279
      %p371 = pneg %p276
      %p372 = scmp.lt.s32.totalorder %s22, 1
      %s373 = scalar_select %p372, %s22, 1
      %s374 = smul.addr %s373, 2
      %s375 = smul.addr %s374, 4
      %s376 = scalar_lea.vmem %s11, %s375
      %p377 = scmp.lt.s32.totalorder %s22, 1
      %s378 = scalar_select %p377, %s22, 1
      %s379 = smul.addr %s378, 2
      %s380 = smul.addr %s379, 4
      %s381 = scalar_lea.vmem %s0, %s380
      %p382 = scmp.lt.s32.totalorder %s22, 1
      %s383 = scalar_select %p382, %s22, 1
      %s384 = smul.addr %s383, 2
      %s385 = smul.addr %s384, 4
      %s386 = scalar_lea.vmem %s11, %s385
      %v387 = vld [vmem:[%s381] sm:$0x77]
      %v388 = vld [vmem:[%s6] sm:$0xff]
      %v389 = vld [vmem:[%s6 + $0x8] sm:$0xff]
      %v390 = vld [vmem:[%s6 + $0x10] sm:$0xff]
      %v391 = vld [vmem:[%s6 + $0x18] sm:$0xff]
      %v392 = vld [vmem:[%s6 + $0x20] sm:$0xff]
      %v393 = vld [vmem:[%s6 + $0x28] sm:$0xff]
      %v394 = vld [vmem:[%s6 + $0x30] sm:$0xff]
      %v395 = vld [vmem:[%s6 + $0x38] sm:$0xff]
      %v396 = vld [vmem:[%s6 + $0x40] sm:$0xff]
      %v397 = vld [vmem:[%s6 + $0x48] sm:$0xff]
      %v398 = vld [vmem:[%s6 + $0x50] sm:$0xff]
      %v399 = vld [vmem:[%s6 + $0x58] sm:$0xff]
      %v400 = vld [vmem:[%s6 + $0x60] sm:$0x1]
      %v401 = vld [vmem:[%s6 + $0x68] sm:$0x1]
      %v402 = vld [vmem:[%s1] sm:$0xff]
      %v403 = vld [vmem:[%s1 + $0x8] sm:$0xff]
      %v405 = vcombine.high %v387, %v387
      %406 = vrot.lane.b32.xlu0 %v387, 51
      %v407 = vpop.permute.xlu0 %406
      %408 = vrot.lane.b32.xlu0 %v405, 51
      %v409 = vpop.permute.xlu0 %408
      %vm410 = vcmask 416768
      %v411 = vsel %vm410, %v407, %v409
      %v415 = vsel %vm410, 0.0, %v407
      %v416 = vsel %vm410, %v409, 0.0
      %v417 = vlaneseq
      %v418 = vshrl.u32 %v417, 7
      %v419 = vsub.s32 0, %v418
      %v420 = vrot.slane %v388, %v419
      %v421 = vlaneseq
      %v422 = vshrl.u32 %v421, 7
      %v423 = vsub.s32 0, %v422
      %v424 = vrot.slane %v389, %v423
      %v425 = vmul.f32 %v415, %v420
      %v426 = vmul.f32 %v411, %v424
      %v427 = vlaneseq
      %v428 = vshrl.u32 %v427, 7
      %v429 = vsub.s32 1, %v428
      %v430 = vrot.slane %v388, %v429
      %v431 = vlaneseq
      %v432 = vshrl.u32 %v431, 7
      %v433 = vsub.s32 1, %v432
      %v434 = vrot.slane %v389, %v433
      %437 = vrot.lane.b32.xlu0 %v430, 1
      %v438 = vpop.permute.xlu0 %437
      %439 = vrot.lane.b32.xlu0 %v434, 1
      %v440 = vpop.permute.xlu0 %439
      %vm441 = vcmask 7168
      %v442 = vsel %vm441, %v438, %v440
      %v446 = vmul.f32 %v415, %v438
      %v447 = vmul.f32 %v411, %v442
      %v448 = vmul.f32 %v416, %v440
      %v449 = vlaneseq
      %v450 = vshrl.u32 %v449, 7
      %v451 = vsub.s32 2, %v450
      %v452 = vrot.slane %v388, %v451
      %v453 = vlaneseq
      %v454 = vshrl.u32 %v453, 7
      %v455 = vsub.s32 2, %v454
      %v456 = vrot.slane %v389, %v455
      %459 = vrot.lane.b32.xlu0 %v452, 2
      %v460 = vpop.permute.xlu0 %459
      %461 = vrot.lane.b32.xlu0 %v456, 2
      %v462 = vpop.permute.xlu0 %461
      %vm463 = vcmask 15360
      %v464 = vsel %vm463, %v460, %v462
      %v468 = vmul.f32 %v415, %v460
      %v469 = vmul.f32 %v411, %v464
      %v470 = vmul.f32 %v416, %v462
      %v471 = vlaneseq
      %v472 = vshrl.u32 %v471, 7
      %v473 = vsub.s32 3, %v472
      %v474 = vrot.slane %v388, %v473
      %v475 = vlaneseq
      %v476 = vshrl.u32 %v475, 7
      %v477 = vsub.s32 3, %v476
      %v478 = vrot.slane %v389, %v477
      %481 = vrot.lane.b32.xlu0 %v474, 3
      %v482 = vpop.permute.xlu0 %481
      %483 = vrot.lane.b32.xlu0 %v478, 3
      %v484 = vpop.permute.xlu0 %483
      %vm485 = vcmask 23552
      %v486 = vsel %vm485, %v482, %v484
      %v490 = vmul.f32 %v415, %v482
      %v491 = vmul.f32 %v411, %v486
      %v492 = vmul.f32 %v416, %v484
      %v493 = vlaneseq
      %v494 = vshrl.u32 %v493, 7
      %v495 = vsub.s32 4, %v494
      %v496 = vrot.slane %v388, %v495
      %v497 = vlaneseq
      %v498 = vshrl.u32 %v497, 7
      %v499 = vsub.s32 4, %v498
      %v500 = vrot.slane %v389, %v499
      %503 = vrot.lane.b32.xlu0 %v496, 4
      %v504 = vpop.permute.xlu0 %503
      %505 = vrot.lane.b32.xlu0 %v500, 4
      %v506 = vpop.permute.xlu0 %505
      %vm507 = vcmask 31744
      %v508 = vsel %vm507, %v504, %v506
      %v512 = vmul.f32 %v415, %v504
      %v513 = vmul.f32 %v411, %v508
      %v514 = vmul.f32 %v416, %v506
      %v515 = vlaneseq
      %v516 = vshrl.u32 %v515, 7
      %v517 = vsub.s32 5, %v516
      %v518 = vrot.slane %v388, %v517
      %v519 = vlaneseq
      %v520 = vshrl.u32 %v519, 7
      %v521 = vsub.s32 5, %v520
      %v522 = vrot.slane %v389, %v521
      %525 = vrot.lane.b32.xlu0 %v518, 5
      %v526 = vpop.permute.xlu0 %525
      %527 = vrot.lane.b32.xlu0 %v522, 5
      %v528 = vpop.permute.xlu0 %527
      %vm529 = vcmask 39936
      %v530 = vsel %vm529, %v526, %v528
      %v534 = vmul.f32 %v415, %v526
      %v535 = vmul.f32 %v411, %v530
      %v536 = vmul.f32 %v416, %v528
      %v537 = vlaneseq
      %v538 = vshrl.u32 %v537, 7
      %v539 = vsub.s32 6, %v538
      %v540 = vrot.slane %v388, %v539
      %v541 = vlaneseq
      %v542 = vshrl.u32 %v541, 7
      %v543 = vsub.s32 6, %v542
      %v544 = vrot.slane %v389, %v543
      %547 = vrot.lane.b32.xlu0 %v540, 6
      %v548 = vpop.permute.xlu0 %547
      %549 = vrot.lane.b32.xlu0 %v544, 6
      %v550 = vpop.permute.xlu0 %549
      %vm551 = vcmask 48128
      %v552 = vsel %vm551, %v548, %v550
      %v556 = vmul.f32 %v415, %v548
      %v557 = vmul.f32 %v411, %v552
      %v558 = vmul.f32 %v416, %v550
      %v559 = vlaneseq
      %v560 = vshrl.u32 %v559, 7
      %v561 = vsub.s32 7, %v560
      %v562 = vrot.slane %v388, %v561
      %v563 = vlaneseq
      %v564 = vshrl.u32 %v563, 7
      %v565 = vsub.s32 7, %v564
      %v566 = vrot.slane %v389, %v565
      %569 = vrot.lane.b32.xlu0 %v562, 16
      %v570 = vpop.permute.xlu0 %569
      %571 = vrot.lane.b32.xlu0 %v566, 16
      %v572 = vpop.permute.xlu0 %571
      %vm573 = vcmask 130048
      %v574 = vsel %vm573, %v570, %v572
      %v578 = vmul.f32 %v415, %v570
      %v579 = vmul.f32 %v411, %v574
      %v580 = vmul.f32 %v416, %v572
      %v581 = vlaneseq
      %v582 = vshrl.u32 %v581, 7
      %v583 = vsub.s32 0, %v582
      %v584 = vrot.slane %v390, %v583
      %v585 = vlaneseq
      %v586 = vshrl.u32 %v585, 7
      %v587 = vsub.s32 0, %v586
      %v588 = vrot.slane %v391, %v587
      %591 = vrot.lane.b32.xlu0 %v584, 17
      %v592 = vpop.permute.xlu0 %591
      %593 = vrot.lane.b32.xlu0 %v588, 17
      %v594 = vpop.permute.xlu0 %593
      %vm595 = vcmask 138240
      %v596 = vsel %vm595, %v592, %v594
      %v600 = vmul.f32 %v415, %v592
      %v601 = vmul.f32 %v411, %v596
      %v602 = vmul.f32 %v416, %v594
      %v603 = vlaneseq
      %v604 = vshrl.u32 %v603, 7
      %v605 = vsub.s32 1, %v604
      %v606 = vrot.slane %v390, %v605
      %v607 = vlaneseq
      %v608 = vshrl.u32 %v607, 7
      %v609 = vsub.s32 1, %v608
      %v610 = vrot.slane %v391, %v609
      %613 = vrot.lane.b32.xlu0 %v606, 18
      %v614 = vpop.permute.xlu0 %613
      %615 = vrot.lane.b32.xlu0 %v610, 18
      %v616 = vpop.permute.xlu0 %615
      %vm617 = vcmask 146432
      %v618 = vsel %vm617, %v614, %v616
      %v622 = vmul.f32 %v415, %v614
      %v623 = vmul.f32 %v411, %v618
      %v624 = vmul.f32 %v416, %v616
      %v625 = vlaneseq
      %v626 = vshrl.u32 %v625, 7
      %v627 = vsub.s32 2, %v626
      %v628 = vrot.slane %v390, %v627
      %v629 = vlaneseq
      %v630 = vshrl.u32 %v629, 7
      %v631 = vsub.s32 2, %v630
      %v632 = vrot.slane %v391, %v631
      %635 = vrot.lane.b32.xlu0 %v628, 19
      %v636 = vpop.permute.xlu0 %635
      %637 = vrot.lane.b32.xlu0 %v632, 19
      %v638 = vpop.permute.xlu0 %637
      %vm639 = vcmask 154624
      %v640 = vsel %vm639, %v636, %v638
      %v644 = vmul.f32 %v415, %v636
      %v645 = vmul.f32 %v411, %v640
      %v646 = vmul.f32 %v416, %v638
      %v647 = vlaneseq
      %v648 = vshrl.u32 %v647, 7
      %v649 = vsub.s32 3, %v648
      %v650 = vrot.slane %v390, %v649
      %v651 = vlaneseq
      %v652 = vshrl.u32 %v651, 7
      %v653 = vsub.s32 3, %v652
      %v654 = vrot.slane %v391, %v653
      %657 = vrot.lane.b32.xlu0 %v650, 20
      %v658 = vpop.permute.xlu0 %657
      %659 = vrot.lane.b32.xlu0 %v654, 20
      %v660 = vpop.permute.xlu0 %659
      %vm661 = vcmask 162816
      %v662 = vsel %vm661, %v658, %v660
      %v666 = vmul.f32 %v415, %v658
      %v667 = vmul.f32 %v411, %v662
      %v668 = vmul.f32 %v416, %v660
      %v669 = vlaneseq
      %v670 = vshrl.u32 %v669, 7
      %v671 = vsub.s32 4, %v670
      %v672 = vrot.slane %v390, %v671
      %v673 = vlaneseq
      %v674 = vshrl.u32 %v673, 7
      %v675 = vsub.s32 4, %v674
      %v676 = vrot.slane %v391, %v675
      %679 = vrot.lane.b32.xlu0 %v672, 21
      %v680 = vpop.permute.xlu0 %679
      %681 = vrot.lane.b32.xlu0 %v676, 21
      %v682 = vpop.permute.xlu0 %681
      %vm683 = vcmask 171008
      %v684 = vsel %vm683, %v680, %v682
      %v688 = vmul.f32 %v415, %v680
      %v689 = vmul.f32 %v411, %v684
      %v690 = vmul.f32 %v416, %v682
      %v691 = vlaneseq
      %v692 = vshrl.u32 %v691, 7
      %v693 = vsub.s32 5, %v692
      %v694 = vrot.slane %v390, %v693
      %v695 = vlaneseq
      %v696 = vshrl.u32 %v695, 7
      %v697 = vsub.s32 5, %v696
      %v698 = vrot.slane %v391, %v697
      %701 = vrot.lane.b32.xlu0 %v694, 22
      %v702 = vpop.permute.xlu0 %701
      %703 = vrot.lane.b32.xlu0 %v698, 22
      %v704 = vpop.permute.xlu0 %703
      %vm705 = vcmask 179200
      %v706 = vsel %vm705, %v702, %v704
      %v710 = vmul.f32 %v415, %v702
      %v711 = vmul.f32 %v411, %v706
      %v712 = vmul.f32 %v416, %v704
      %v713 = vlaneseq
      %v714 = vshrl.u32 %v713, 7
      %v715 = vsub.s32 6, %v714
      %v716 = vrot.slane %v390, %v715
      %v717 = vlaneseq
      %v718 = vshrl.u32 %v717, 7
      %v719 = vsub.s32 6, %v718
      %v720 = vrot.slane %v391, %v719
      %723 = vrot.lane.b32.xlu0 %v716, 32
      %v724 = vpop.permute.xlu0 %723
      %725 = vrot.lane.b32.xlu0 %v720, 32
      %v726 = vpop.permute.xlu0 %725
      %vm727 = vcmask 261120
      %v728 = vsel %vm727, %v724, %v726
      %v732 = vmul.f32 %v415, %v724
      %v733 = vmul.f32 %v411, %v728
      %v734 = vmul.f32 %v416, %v726
      %v735 = vlaneseq
      %v736 = vshrl.u32 %v735, 7
      %v737 = vsub.s32 7, %v736
      %v738 = vrot.slane %v390, %v737
      %v739 = vlaneseq
      %v740 = vshrl.u32 %v739, 7
      %v741 = vsub.s32 7, %v740
      %v742 = vrot.slane %v391, %v741
      %745 = vrot.lane.b32.xlu0 %v738, 33
      %v746 = vpop.permute.xlu0 %745
      %747 = vrot.lane.b32.xlu0 %v742, 33
      %v748 = vpop.permute.xlu0 %747
      %vm749 = vcmask 269312
      %v750 = vsel %vm749, %v746, %v748
      %v754 = vmul.f32 %v415, %v746
      %v755 = vmul.f32 %v411, %v750
      %v756 = vmul.f32 %v416, %v748
      %v757 = vlaneseq
      %v758 = vshrl.u32 %v757, 7
      %v759 = vsub.s32 0, %v758
      %v760 = vrot.slane %v392, %v759
      %v761 = vlaneseq
      %v762 = vshrl.u32 %v761, 7
      %v763 = vsub.s32 0, %v762
      %v764 = vrot.slane %v393, %v763
      %767 = vrot.lane.b32.xlu0 %v760, 34
      %v768 = vpop.permute.xlu0 %767
      %769 = vrot.lane.b32.xlu0 %v764, 34
      %v770 = vpop.permute.xlu0 %769
      %vm771 = vcmask 277504
      %v772 = vsel %vm771, %v768, %v770
      %v776 = vmul.f32 %v415, %v768
      %v777 = vmul.f32 %v411, %v772
      %v778 = vmul.f32 %v416, %v770
      %v779 = vlaneseq
      %v780 = vshrl.u32 %v779, 7
      %v781 = vsub.s32 1, %v780
      %v782 = vrot.slane %v392, %v781
      %v783 = vlaneseq
      %v784 = vshrl.u32 %v783, 7
      %v785 = vsub.s32 1, %v784
      %v786 = vrot.slane %v393, %v785
      %789 = vrot.lane.b32.xlu0 %v782, 35
      %v790 = vpop.permute.xlu0 %789
      %791 = vrot.lane.b32.xlu0 %v786, 35
      %v792 = vpop.permute.xlu0 %791
      %vm793 = vcmask 285696
      %v794 = vsel %vm793, %v790, %v792
      %v798 = vmul.f32 %v415, %v790
      %v799 = vmul.f32 %v411, %v794
      %v800 = vmul.f32 %v416, %v792
      %v801 = vlaneseq
      %v802 = vshrl.u32 %v801, 7
      %v803 = vsub.s32 2, %v802
      %v804 = vrot.slane %v392, %v803
      %v805 = vlaneseq
      %v806 = vshrl.u32 %v805, 7
      %v807 = vsub.s32 2, %v806
      %v808 = vrot.slane %v393, %v807
      %811 = vrot.lane.b32.xlu0 %v804, 36
      %v812 = vpop.permute.xlu0 %811
      %813 = vrot.lane.b32.xlu0 %v808, 36
      %v814 = vpop.permute.xlu0 %813
      %vm815 = vcmask 293888
      %v816 = vsel %vm815, %v812, %v814
      %v820 = vmul.f32 %v415, %v812
      %v821 = vmul.f32 %v411, %v816
      %v822 = vmul.f32 %v416, %v814
      %v823 = vlaneseq
      %v824 = vshrl.u32 %v823, 7
      %v825 = vsub.s32 3, %v824
      %v826 = vrot.slane %v392, %v825
      %v827 = vlaneseq
      %v828 = vshrl.u32 %v827, 7
      %v829 = vsub.s32 3, %v828
      %v830 = vrot.slane %v393, %v829
      %833 = vrot.lane.b32.xlu0 %v826, 37
      %v834 = vpop.permute.xlu0 %833
      %835 = vrot.lane.b32.xlu0 %v830, 37
      %v836 = vpop.permute.xlu0 %835
      %vm837 = vcmask 302080
      %v838 = vsel %vm837, %v834, %v836
      %v842 = vmul.f32 %v415, %v834
      %v843 = vmul.f32 %v411, %v838
      %v844 = vmul.f32 %v416, %v836
      %v845 = vlaneseq
      %v846 = vshrl.u32 %v845, 7
      %v847 = vsub.s32 4, %v846
      %v848 = vrot.slane %v392, %v847
      %v849 = vlaneseq
      %v850 = vshrl.u32 %v849, 7
      %v851 = vsub.s32 4, %v850
      %v852 = vrot.slane %v393, %v851
      %855 = vrot.lane.b32.xlu0 %v848, 38
      %v856 = vpop.permute.xlu0 %855
      %857 = vrot.lane.b32.xlu0 %v852, 38
      %v858 = vpop.permute.xlu0 %857
      %vm859 = vcmask 310272
      %v860 = vsel %vm859, %v856, %v858
      %v864 = vmul.f32 %v415, %v856
      %v865 = vmul.f32 %v411, %v860
      %v866 = vmul.f32 %v416, %v858
      %v867 = vlaneseq
      %v868 = vshrl.u32 %v867, 7
      %v869 = vsub.s32 5, %v868
      %v870 = vrot.slane %v392, %v869
      %v871 = vlaneseq
      %v872 = vshrl.u32 %v871, 7
      %v873 = vsub.s32 5, %v872
      %v874 = vrot.slane %v393, %v873
      %877 = vrot.lane.b32.xlu0 %v870, 48
      %v878 = vpop.permute.xlu0 %877
      %879 = vrot.lane.b32.xlu0 %v874, 48
      %v880 = vpop.permute.xlu0 %879
      %vm881 = vcmask 392192
      %v882 = vsel %vm881, %v878, %v880
      %v886 = vmul.f32 %v415, %v878
      %v887 = vmul.f32 %v411, %v882
      %v888 = vmul.f32 %v416, %v880
      %v889 = vlaneseq
      %v890 = vshrl.u32 %v889, 7
      %v891 = vsub.s32 6, %v890
      %v892 = vrot.slane %v392, %v891
      %v893 = vlaneseq
      %v894 = vshrl.u32 %v893, 7
      %v895 = vsub.s32 6, %v894
      %v896 = vrot.slane %v393, %v895
      %899 = vrot.lane.b32.xlu0 %v892, 49
      %v900 = vpop.permute.xlu0 %899
      %901 = vrot.lane.b32.xlu0 %v896, 49
      %v902 = vpop.permute.xlu0 %901
      %vm903 = vcmask 400384
      %v904 = vsel %vm903, %v900, %v902
      %v908 = vmul.f32 %v415, %v900
      %v909 = vmul.f32 %v411, %v904
      %v910 = vmul.f32 %v416, %v902
      %v911 = vlaneseq
      %v912 = vshrl.u32 %v911, 7
      %v913 = vsub.s32 7, %v912
      %v914 = vrot.slane %v392, %v913
      %v915 = vlaneseq
      %v916 = vshrl.u32 %v915, 7
      %v917 = vsub.s32 7, %v916
      %v918 = vrot.slane %v393, %v917
      %921 = vrot.lane.b32.xlu0 %v914, 50
      %v922 = vpop.permute.xlu0 %921
      %923 = vrot.lane.b32.xlu0 %v918, 50
      %v924 = vpop.permute.xlu0 %923
      %vm925 = vcmask 408576
      %v926 = vsel %vm925, %v922, %v924
      %v930 = vmul.f32 %v415, %v922
      %v931 = vmul.f32 %v411, %v926
      %v932 = vmul.f32 %v416, %v924
      %v933 = vlaneseq
      %v934 = vshrl.u32 %v933, 7
      %v935 = vsub.s32 0, %v934
      %v936 = vrot.slane %v394, %v935
      %v937 = vlaneseq
      %v938 = vshrl.u32 %v937, 7
      %v939 = vsub.s32 0, %v938
      %v940 = vrot.slane %v395, %v939
      %943 = vrot.lane.b32.xlu0 %v936, 51
      %v944 = vpop.permute.xlu0 %943
      %945 = vrot.lane.b32.xlu0 %v940, 51
      %v946 = vpop.permute.xlu0 %945
      %v947 = vsel %vm410, %v944, %v946
      %v951 = vmul.f32 %v415, %v944
      %v952 = vmul.f32 %v411, %v947
      %v953 = vmul.f32 %v416, %v946
      %v954 = vlaneseq
      %v955 = vshrl.u32 %v954, 7
      %v956 = vsub.s32 1, %v955
      %v957 = vrot.slane %v394, %v956
      %v958 = vlaneseq
      %v959 = vshrl.u32 %v958, 7
      %v960 = vsub.s32 1, %v959
      %v961 = vrot.slane %v395, %v960
      %964 = vrot.lane.b32.xlu0 %v957, 52
      %v965 = vpop.permute.xlu0 %964
      %966 = vrot.lane.b32.xlu0 %v961, 52
      %v967 = vpop.permute.xlu0 %966
      %vm968 = vcmask 424960
      %v969 = vsel %vm968, %v965, %v967
      %v973 = vmul.f32 %v415, %v965
      %v974 = vmul.f32 %v411, %v969
      %v975 = vmul.f32 %v416, %v967
      %v976 = vlaneseq
      %v977 = vshrl.u32 %v976, 7
      %v978 = vsub.s32 2, %v977
      %v979 = vrot.slane %v394, %v978
      %v980 = vlaneseq
      %v981 = vshrl.u32 %v980, 7
      %v982 = vsub.s32 2, %v981
      %v983 = vrot.slane %v395, %v982
      %986 = vrot.lane.b32.xlu0 %v979, 53
      %v987 = vpop.permute.xlu0 %986
      %988 = vrot.lane.b32.xlu0 %v983, 53
      %v989 = vpop.permute.xlu0 %988
      %vm990 = vcmask 433152
      %v991 = vsel %vm990, %v987, %v989
      %v995 = vmul.f32 %v415, %v987
      %v996 = vmul.f32 %v411, %v991
      %v997 = vmul.f32 %v416, %v989
      %v998 = vlaneseq
      %v999 = vshrl.u32 %v998, 7
      %v1000 = vsub.s32 3, %v999
      %v1001 = vrot.slane %v394, %v1000
      %v1002 = vlaneseq
      %v1003 = vshrl.u32 %v1002, 7
      %v1004 = vsub.s32 3, %v1003
      %v1005 = vrot.slane %v395, %v1004
      %1008 = vrot.lane.b32.xlu0 %v1001, 54
      %v1009 = vpop.permute.xlu0 %1008
      %1010 = vrot.lane.b32.xlu0 %v1005, 54
      %v1011 = vpop.permute.xlu0 %1010
      %vm1012 = vcmask 441344
      %v1013 = vsel %vm1012, %v1009, %v1011
      %v1017 = vmul.f32 %v415, %v1009
      %v1018 = vmul.f32 %v411, %v1013
      %v1019 = vmul.f32 %v416, %v1011
      %v1020 = vlaneseq
      %v1021 = vshrl.u32 %v1020, 7
      %v1022 = vsub.s32 4, %v1021
      %v1023 = vrot.slane %v394, %v1022
      %v1024 = vlaneseq
      %v1025 = vshrl.u32 %v1024, 7
      %v1026 = vsub.s32 4, %v1025
      %v1027 = vrot.slane %v395, %v1026
      %1030 = vrot.lane.b32.xlu0 %v1023, 64
      %v1031 = vpop.permute.xlu0 %1030
      %1032 = vrot.lane.b32.xlu0 %v1027, 64
      %v1033 = vpop.permute.xlu0 %1032
      %vm1034 = vcmask 523264
      %v1035 = vsel %vm1034, %v1031, %v1033
      %v1039 = vmul.f32 %v415, %v1031
      %v1040 = vmul.f32 %v411, %v1035
      %v1041 = vmul.f32 %v416, %v1033
      %v1042 = vlaneseq
      %v1043 = vshrl.u32 %v1042, 7
      %v1044 = vsub.s32 5, %v1043
      %v1045 = vrot.slane %v394, %v1044
      %v1046 = vlaneseq
      %v1047 = vshrl.u32 %v1046, 7
      %v1048 = vsub.s32 5, %v1047
      %v1049 = vrot.slane %v395, %v1048
      %1052 = vrot.lane.b32.xlu0 %v1045, 65
      %v1053 = vpop.permute.xlu0 %1052
      %1054 = vrot.lane.b32.xlu0 %v1049, 65
      %v1055 = vpop.permute.xlu0 %1054
      %vm1056 = vcmask 531456
      %v1057 = vsel %vm1056, %v1053, %v1055
      %v1061 = vmul.f32 %v415, %v1053
      %v1062 = vmul.f32 %v411, %v1057
      %v1063 = vmul.f32 %v416, %v1055
      %v1064 = vlaneseq
      %v1065 = vshrl.u32 %v1064, 7
      %v1066 = vsub.s32 6, %v1065
      %v1067 = vrot.slane %v394, %v1066
      %v1068 = vlaneseq
      %v1069 = vshrl.u32 %v1068, 7
      %v1070 = vsub.s32 6, %v1069
      %v1071 = vrot.slane %v395, %v1070
      %1074 = vrot.lane.b32.xlu0 %v1067, 66
      %v1075 = vpop.permute.xlu0 %1074
      %1076 = vrot.lane.b32.xlu0 %v1071, 66
      %v1077 = vpop.permute.xlu0 %1076
      %vm1078 = vcmask 539648
      %v1079 = vsel %vm1078, %v1075, %v1077
      %v1083 = vmul.f32 %v415, %v1075
      %v1084 = vmul.f32 %v411, %v1079
      %v1085 = vmul.f32 %v416, %v1077
      %v1086 = vlaneseq
      %v1087 = vshrl.u32 %v1086, 7
      %v1088 = vsub.s32 7, %v1087
      %v1089 = vrot.slane %v394, %v1088
      %v1090 = vlaneseq
      %v1091 = vshrl.u32 %v1090, 7
      %v1092 = vsub.s32 7, %v1091
      %v1093 = vrot.slane %v395, %v1092
      %1096 = vrot.lane.b32.xlu0 %v1089, 67
      %v1097 = vpop.permute.xlu0 %1096
      %1098 = vrot.lane.b32.xlu0 %v1093, 67
      %v1099 = vpop.permute.xlu0 %1098
      %vm1100 = vcmask 547840
      %v1101 = vsel %vm1100, %v1097, %v1099
      %v1105 = vmul.f32 %v415, %v1097
      %v1106 = vmul.f32 %v411, %v1101
      %v1107 = vmul.f32 %v416, %v1099
      %v1108 = vlaneseq
      %v1109 = vshrl.u32 %v1108, 7
      %v1110 = vsub.s32 0, %v1109
      %v1111 = vrot.slane %v396, %v1110
      %v1112 = vlaneseq
      %v1113 = vshrl.u32 %v1112, 7
      %v1114 = vsub.s32 0, %v1113
      %v1115 = vrot.slane %v397, %v1114
      %1118 = vrot.lane.b32.xlu0 %v1111, 68
      %v1119 = vpop.permute.xlu0 %1118
      %1120 = vrot.lane.b32.xlu0 %v1115, 68
      %v1121 = vpop.permute.xlu0 %1120
      %vm1122 = vcmask 556032
      %v1123 = vsel %vm1122, %v1119, %v1121
      %v1127 = vmul.f32 %v415, %v1119
      %v1128 = vmul.f32 %v411, %v1123
      %v1129 = vmul.f32 %v416, %v1121
      %v1130 = vlaneseq
      %v1131 = vshrl.u32 %v1130, 7
      %v1132 = vsub.s32 1, %v1131
      %v1133 = vrot.slane %v396, %v1132
      %v1134 = vlaneseq
      %v1135 = vshrl.u32 %v1134, 7
      %v1136 = vsub.s32 1, %v1135
      %v1137 = vrot.slane %v397, %v1136
      %1140 = vrot.lane.b32.xlu0 %v1133, 69
      %v1141 = vpop.permute.xlu0 %1140
      %1142 = vrot.lane.b32.xlu0 %v1137, 69
      %v1143 = vpop.permute.xlu0 %1142
      %vm1144 = vcmask 564224
      %v1145 = vsel %vm1144, %v1141, %v1143
      %v1149 = vmul.f32 %v415, %v1141
      %v1150 = vmul.f32 %v411, %v1145
      %v1151 = vmul.f32 %v416, %v1143
      %v1152 = vlaneseq
      %v1153 = vshrl.u32 %v1152, 7
      %v1154 = vsub.s32 2, %v1153
      %v1155 = vrot.slane %v396, %v1154
      %v1156 = vlaneseq
      %v1157 = vshrl.u32 %v1156, 7
      %v1158 = vsub.s32 2, %v1157
      %v1159 = vrot.slane %v397, %v1158
      %1162 = vrot.lane.b32.xlu0 %v1155, 70
      %v1163 = vpop.permute.xlu0 %1162
      %1164 = vrot.lane.b32.xlu0 %v1159, 70
      %v1165 = vpop.permute.xlu0 %1164
      %vm1166 = vcmask 572416
      %v1167 = vsel %vm1166, %v1163, %v1165
      %v1171 = vmul.f32 %v415, %v1163
      %v1172 = vmul.f32 %v411, %v1167
      %v1173 = vmul.f32 %v416, %v1165
      %v1174 = vlaneseq
      %v1175 = vshrl.u32 %v1174, 7
      %v1176 = vsub.s32 3, %v1175
      %v1177 = vrot.slane %v396, %v1176
      %v1178 = vlaneseq
      %v1179 = vshrl.u32 %v1178, 7
      %v1180 = vsub.s32 3, %v1179
      %v1181 = vrot.slane %v397, %v1180
      %1184 = vrot.lane.b32.xlu0 %v1177, 80
      %v1185 = vpop.permute.xlu0 %1184
      %1186 = vrot.lane.b32.xlu0 %v1181, 80
      %v1187 = vpop.permute.xlu0 %1186
      %vm1188 = vcmask 654336
      %v1189 = vsel %vm1188, %v1185, %v1187
      %v1193 = vmul.f32 %v415, %v1185
      %v1194 = vmul.f32 %v411, %v1189
      %v1195 = vmul.f32 %v416, %v1187
      %v1196 = vlaneseq
      %v1197 = vshrl.u32 %v1196, 7
      %v1198 = vsub.s32 4, %v1197
      %v1199 = vrot.slane %v396, %v1198
      %v1200 = vlaneseq
      %v1201 = vshrl.u32 %v1200, 7
      %v1202 = vsub.s32 4, %v1201
      %v1203 = vrot.slane %v397, %v1202
      %1206 = vrot.lane.b32.xlu0 %v1199, 81
      %v1207 = vpop.permute.xlu0 %1206
      %1208 = vrot.lane.b32.xlu0 %v1203, 81
      %v1209 = vpop.permute.xlu0 %1208
      %vm1210 = vcmask 662528
      %v1211 = vsel %vm1210, %v1207, %v1209
      %v1215 = vmul.f32 %v415, %v1207
      %v1216 = vmul.f32 %v411, %v1211
      %v1217 = vmul.f32 %v416, %v1209
      %v1218 = vlaneseq
      %v1219 = vshrl.u32 %v1218, 7
      %v1220 = vsub.s32 5, %v1219
      %v1221 = vrot.slane %v396, %v1220
      %v1222 = vlaneseq
      %v1223 = vshrl.u32 %v1222, 7
      %v1224 = vsub.s32 5, %v1223
      %v1225 = vrot.slane %v397, %v1224
      %1228 = vrot.lane.b32.xlu0 %v1221, 82
      %v1229 = vpop.permute.xlu0 %1228
      %1230 = vrot.lane.b32.xlu0 %v1225, 82
      %v1231 = vpop.permute.xlu0 %1230
      %vm1232 = vcmask 670720
      %v1233 = vsel %vm1232, %v1229, %v1231
      %v1237 = vmul.f32 %v415, %v1229
      %v1238 = vmul.f32 %v411, %v1233
      %v1239 = vmul.f32 %v416, %v1231
      %v1240 = vlaneseq
      %v1241 = vshrl.u32 %v1240, 7
      %v1242 = vsub.s32 6, %v1241
      %v1243 = vrot.slane %v396, %v1242
      %v1244 = vlaneseq
      %v1245 = vshrl.u32 %v1244, 7
      %v1246 = vsub.s32 6, %v1245
      %v1247 = vrot.slane %v397, %v1246
      %1250 = vrot.lane.b32.xlu0 %v1243, 83
      %v1251 = vpop.permute.xlu0 %1250
      %1252 = vrot.lane.b32.xlu0 %v1247, 83
      %v1253 = vpop.permute.xlu0 %1252
      %vm1254 = vcmask 678912
      %v1255 = vsel %vm1254, %v1251, %v1253
      %v1259 = vmul.f32 %v415, %v1251
      %v1260 = vmul.f32 %v411, %v1255
      %v1261 = vmul.f32 %v416, %v1253
      %v1262 = vlaneseq
      %v1263 = vshrl.u32 %v1262, 7
      %v1264 = vsub.s32 7, %v1263
      %v1265 = vrot.slane %v396, %v1264
      %v1266 = vlaneseq
      %v1267 = vshrl.u32 %v1266, 7
      %v1268 = vsub.s32 7, %v1267
      %v1269 = vrot.slane %v397, %v1268
      %1272 = vrot.lane.b32.xlu0 %v1265, 84
      %v1273 = vpop.permute.xlu0 %1272
      %1274 = vrot.lane.b32.xlu0 %v1269, 84
      %v1275 = vpop.permute.xlu0 %1274
      %vm1276 = vcmask 687104
      %v1277 = vsel %vm1276, %v1273, %v1275
      %v1281 = vmul.f32 %v415, %v1273
      %v1282 = vmul.f32 %v411, %v1277
      %v1283 = vmul.f32 %v416, %v1275
      %v1284 = vlaneseq
      %v1285 = vshrl.u32 %v1284, 7
      %v1286 = vsub.s32 0, %v1285
      %v1287 = vrot.slane %v398, %v1286
      %v1288 = vlaneseq
      %v1289 = vshrl.u32 %v1288, 7
      %v1290 = vsub.s32 0, %v1289
      %v1291 = vrot.slane %v399, %v1290
      %1294 = vrot.lane.b32.xlu0 %v1287, 85
      %v1295 = vpop.permute.xlu0 %1294
      %1296 = vrot.lane.b32.xlu0 %v1291, 85
      %v1297 = vpop.permute.xlu0 %1296
      %vm1298 = vcmask 695296
      %v1299 = vsel %vm1298, %v1295, %v1297
      %v1303 = vmul.f32 %v415, %v1295
      %v1304 = vmul.f32 %v411, %v1299
      %v1305 = vmul.f32 %v416, %v1297
      %v1306 = vlaneseq
      %v1307 = vshrl.u32 %v1306, 7
      %v1308 = vsub.s32 1, %v1307
      %v1309 = vrot.slane %v398, %v1308
      %v1310 = vlaneseq
      %v1311 = vshrl.u32 %v1310, 7
      %v1312 = vsub.s32 1, %v1311
      %v1313 = vrot.slane %v399, %v1312
      %1316 = vrot.lane.b32.xlu0 %v1309, 86
      %v1317 = vpop.permute.xlu0 %1316
      %1318 = vrot.lane.b32.xlu0 %v1313, 86
      %v1319 = vpop.permute.xlu0 %1318
      %vm1320 = vcmask 703488
      %v1321 = vsel %vm1320, %v1317, %v1319
      %v1325 = vmul.f32 %v415, %v1317
      %v1326 = vmul.f32 %v411, %v1321
      %v1327 = vmul.f32 %v416, %v1319
      %v1328 = vlaneseq
      %v1329 = vshrl.u32 %v1328, 7
      %v1330 = vsub.s32 2, %v1329
      %v1331 = vrot.slane %v398, %v1330
      %v1332 = vlaneseq
      %v1333 = vshrl.u32 %v1332, 7
      %v1334 = vsub.s32 2, %v1333
      %v1335 = vrot.slane %v399, %v1334
      %1338 = vrot.lane.b32.xlu0 %v1331, 96
      %v1339 = vpop.permute.xlu0 %1338
      %1340 = vrot.lane.b32.xlu0 %v1335, 96
      %v1341 = vpop.permute.xlu0 %1340
      %vm1342 = vcmask 785408
      %v1343 = vsel %vm1342, %v1339, %v1341
      %v1347 = vmul.f32 %v415, %v1339
      %v1348 = vmul.f32 %v411, %v1343
      %v1349 = vmul.f32 %v416, %v1341
      %v1350 = vlaneseq
      %v1351 = vshrl.u32 %v1350, 7
      %v1352 = vsub.s32 3, %v1351
      %v1353 = vrot.slane %v398, %v1352
      %v1354 = vlaneseq
      %v1355 = vshrl.u32 %v1354, 7
      %v1356 = vsub.s32 3, %v1355
      %v1357 = vrot.slane %v399, %v1356
      %1360 = vrot.lane.b32.xlu0 %v1353, 97
      %v1361 = vpop.permute.xlu0 %1360
      %1362 = vrot.lane.b32.xlu0 %v1357, 97
      %v1363 = vpop.permute.xlu0 %1362
      %vm1364 = vcmask 793600
      %v1365 = vsel %vm1364, %v1361, %v1363
      %v1369 = vmul.f32 %v415, %v1361
      %v1370 = vmul.f32 %v411, %v1365
      %v1371 = vmul.f32 %v416, %v1363
      %v1372 = vlaneseq
      %v1373 = vshrl.u32 %v1372, 7
      %v1374 = vsub.s32 4, %v1373
      %v1375 = vrot.slane %v398, %v1374
      %v1376 = vlaneseq
      %v1377 = vshrl.u32 %v1376, 7
      %v1378 = vsub.s32 4, %v1377
      %v1379 = vrot.slane %v399, %v1378
      %1382 = vrot.lane.b32.xlu0 %v1375, 98
      %v1383 = vpop.permute.xlu0 %1382
      %1384 = vrot.lane.b32.xlu0 %v1379, 98
      %v1385 = vpop.permute.xlu0 %1384
      %vm1386 = vcmask 801792
      %v1387 = vsel %vm1386, %v1383, %v1385
      %v1391 = vmul.f32 %v415, %v1383
      %v1392 = vmul.f32 %v411, %v1387
      %v1393 = vmul.f32 %v416, %v1385
      %v1394 = vlaneseq
      %v1395 = vshrl.u32 %v1394, 7
      %v1396 = vsub.s32 5, %v1395
      %v1397 = vrot.slane %v398, %v1396
      %v1398 = vlaneseq
      %v1399 = vshrl.u32 %v1398, 7
      %v1400 = vsub.s32 5, %v1399
      %v1401 = vrot.slane %v399, %v1400
      %1404 = vrot.lane.b32.xlu0 %v1397, 99
      %v1405 = vpop.permute.xlu0 %1404
      %1406 = vrot.lane.b32.xlu0 %v1401, 99
      %v1407 = vpop.permute.xlu0 %1406
      %vm1408 = vcmask 809984
      %v1409 = vsel %vm1408, %v1405, %v1407
      %v1413 = vmul.f32 %v415, %v1405
      %v1414 = vmul.f32 %v411, %v1409
      %v1415 = vmul.f32 %v416, %v1407
      %v1416 = vlaneseq
      %v1417 = vshrl.u32 %v1416, 7
      %v1418 = vsub.s32 6, %v1417
      %v1419 = vrot.slane %v398, %v1418
      %v1420 = vlaneseq
      %v1421 = vshrl.u32 %v1420, 7
      %v1422 = vsub.s32 6, %v1421
      %v1423 = vrot.slane %v399, %v1422
      %1426 = vrot.lane.b32.xlu0 %v1419, 100
      %v1427 = vpop.permute.xlu0 %1426
      %1428 = vrot.lane.b32.xlu0 %v1423, 100
      %v1429 = vpop.permute.xlu0 %1428
      %vm1430 = vcmask 818176
      %v1431 = vsel %vm1430, %v1427, %v1429
      %v1435 = vmul.f32 %v415, %v1427
      %v1436 = vmul.f32 %v411, %v1431
      %v1437 = vmul.f32 %v416, %v1429
      %v1438 = vlaneseq
      %v1439 = vshrl.u32 %v1438, 7
      %v1440 = vsub.s32 7, %v1439
      %v1441 = vrot.slane %v398, %v1440
      %v1442 = vlaneseq
      %v1443 = vshrl.u32 %v1442, 7
      %v1444 = vsub.s32 7, %v1443
      %v1445 = vrot.slane %v399, %v1444
      %1448 = vrot.lane.b32.xlu0 %v1441, 101
      %v1449 = vpop.permute.xlu0 %1448
      %1450 = vrot.lane.b32.xlu0 %v1445, 101
      %v1451 = vpop.permute.xlu0 %1450
      %vm1452 = vcmask 826368
      %v1453 = vsel %vm1452, %v1449, %v1451
      %v1457 = vmul.f32 %v415, %v1449
      %v1458 = vmul.f32 %v411, %v1453
      %v1459 = vmul.f32 %v416, %v1451
      %v1460 = vlaneseq
      %v1461 = vshrl.u32 %v1460, 7
      %v1462 = vsub.s32 0, %v1461
      %v1463 = vrot.slane %v400, %v1462
      %v1464 = vlaneseq
      %v1465 = vshrl.u32 %v1464, 7
      %v1466 = vsub.s32 0, %v1465
      %v1467 = vrot.slane %v401, %v1466
      %1470 = vrot.lane.b32.xlu0 %v1463, 102
      %v1471 = vpop.permute.xlu0 %1470
      %1472 = vrot.lane.b32.xlu0 %v1467, 102
      %v1473 = vpop.permute.xlu0 %1472
      %vm1474 = vcmask 834560
      %v1475 = vsel %vm1474, %v1471, %v1473
      %v1479 = vmul.f32 %v415, %v1471
      %v1480 = vmul.f32 %v411, %v1475
      %v1481 = vmul.f32 %v416, %v1473
      %v1485 = vrot.slane %v446, 5
      %v1486 = vrot.slane %v447, 5
      %v1487 = vrot.slane %v448, 5
      %1488 = vrot.lane.b32.xlu0 %v1485, 127
      %v1489 = vpop.permute.xlu0 %1488
      %1490 = vrot.lane.b32.xlu0 %v1486, 127
      %v1491 = vpop.permute.xlu0 %1490
      %1492 = vrot.lane.b32.xlu0 %v1487, 127
      %v1493 = vpop.permute.xlu0 %1492
      %vm1494 = vcmask 1039360
      %v1495 = vsel %vm1494, %v1489, %v1491
      %v1496 = vsel %vm1494, %v1491, %v1493
      %v1502 = vrot.slane %v468, 2
      %v1503 = vrot.slane %v469, 2
      %v1504 = vrot.slane %v470, 2
      %1505 = vrot.lane.b32.xlu0 %v1502, 126
      %v1506 = vpop.permute.xlu0 %1505
      %1507 = vrot.lane.b32.xlu0 %v1503, 126
      %v1508 = vpop.permute.xlu0 %1507
      %1509 = vrot.lane.b32.xlu0 %v1504, 126
      %v1510 = vpop.permute.xlu0 %1509
      %vm1511 = vcmask 1031168
      %v1512 = vsel %vm1511, %v1506, %v1508
      %v1513 = vsel %vm1511, %v1508, %v1510
      %v1519 = vrot.slane %v490, 7
      %v1520 = vrot.slane %v491, 7
      %v1521 = vrot.slane %v492, 7
      %1522 = vrot.lane.b32.xlu0 %v1519, 125
      %v1523 = vpop.permute.xlu0 %1522
      %1524 = vrot.lane.b32.xlu0 %v1520, 125
      %v1525 = vpop.permute.xlu0 %1524
      %1526 = vrot.lane.b32.xlu0 %v1521, 125
      %v1527 = vpop.permute.xlu0 %1526
      %vm1528 = vcmask 1022976
      %v1529 = vsel %vm1528, %v1523, %v1525
      %v1530 = vsel %vm1528, %v1525, %v1527
      %v1536 = vrot.slane %v512, 4
      %v1537 = vrot.slane %v513, 4
      %v1538 = vrot.slane %v514, 4
      %1539 = vrot.lane.b32.xlu0 %v1536, 124
      %v1540 = vpop.permute.xlu0 %1539
      %1541 = vrot.lane.b32.xlu0 %v1537, 124
      %v1542 = vpop.permute.xlu0 %1541
      %1543 = vrot.lane.b32.xlu0 %v1538, 124
      %v1544 = vpop.permute.xlu0 %1543
      %vm1545 = vcmask 1014784
      %v1546 = vsel %vm1545, %v1540, %v1542
      %v1547 = vsel %vm1545, %v1542, %v1544
      %v1553 = vrot.slane %v534, 1
      %v1554 = vrot.slane %v535, 1
      %v1555 = vrot.slane %v536, 1
      %1556 = vrot.lane.b32.xlu0 %v1553, 123
      %v1557 = vpop.permute.xlu0 %1556
      %1558 = vrot.lane.b32.xlu0 %v1554, 123
      %v1559 = vpop.permute.xlu0 %1558
      %1560 = vrot.lane.b32.xlu0 %v1555, 123
      %v1561 = vpop.permute.xlu0 %1560
      %vm1562 = vcmask 1006592
      %v1563 = vsel %vm1562, %v1557, %v1559
      %v1564 = vsel %vm1562, %v1559, %v1561
      %v1570 = vrot.slane %v556, 6
      %v1571 = vrot.slane %v557, 6
      %v1572 = vrot.slane %v558, 6
      %1573 = vrot.lane.b32.xlu0 %v1570, 122
      %v1574 = vpop.permute.xlu0 %1573
      %1575 = vrot.lane.b32.xlu0 %v1571, 122
      %v1576 = vpop.permute.xlu0 %1575
      %1577 = vrot.lane.b32.xlu0 %v1572, 122
      %v1578 = vpop.permute.xlu0 %1577
      %vm1579 = vcmask 998400
      %v1580 = vsel %vm1579, %v1574, %v1576
      %v1581 = vsel %vm1579, %v1576, %v1578
      %v1587 = vrot.slane %v578, 3
      %v1588 = vrot.slane %v579, 3
      %v1589 = vrot.slane %v580, 3
      %1590 = vrot.lane.b32.xlu0 %v1587, 112
      %v1591 = vpop.permute.xlu0 %1590
      %1592 = vrot.lane.b32.xlu0 %v1588, 112
      %v1593 = vpop.permute.xlu0 %1592
      %1594 = vrot.lane.b32.xlu0 %v1589, 112
      %v1595 = vpop.permute.xlu0 %1594
      %vm1596 = vcmask 916480
      %v1597 = vsel %vm1596, %v1591, %v1593
      %v1598 = vsel %vm1596, %v1593, %v1595
      %1604 = vrot.lane.b32.xlu0 %v600, 111
      %v1605 = vpop.permute.xlu0 %1604
      %1606 = vrot.lane.b32.xlu0 %v601, 111
      %v1607 = vpop.permute.xlu0 %1606
      %1608 = vrot.lane.b32.xlu0 %v602, 111
      %v1609 = vpop.permute.xlu0 %1608
      %vm1610 = vcmask 908288
      %v1611 = vsel %vm1610, %v1605, %v1607
      %v1612 = vsel %vm1610, %v1607, %v1609
      %v1618 = vrot.slane %v622, 5
      %v1619 = vrot.slane %v623, 5
      %v1620 = vrot.slane %v624, 5
      %1621 = vrot.lane.b32.xlu0 %v1618, 110
      %v1622 = vpop.permute.xlu0 %1621
      %1623 = vrot.lane.b32.xlu0 %v1619, 110
      %v1624 = vpop.permute.xlu0 %1623
      %1625 = vrot.lane.b32.xlu0 %v1620, 110
      %v1626 = vpop.permute.xlu0 %1625
      %vm1627 = vcmask 900096
      %v1628 = vsel %vm1627, %v1622, %v1624
      %v1629 = vsel %vm1627, %v1624, %v1626
      %v1635 = vrot.slane %v644, 2
      %v1636 = vrot.slane %v645, 2
      %v1637 = vrot.slane %v646, 2
      %1638 = vrot.lane.b32.xlu0 %v1635, 109
      %v1639 = vpop.permute.xlu0 %1638
      %1640 = vrot.lane.b32.xlu0 %v1636, 109
      %v1641 = vpop.permute.xlu0 %1640
      %1642 = vrot.lane.b32.xlu0 %v1637, 109
      %v1643 = vpop.permute.xlu0 %1642
      %vm1644 = vcmask 891904
      %v1645 = vsel %vm1644, %v1639, %v1641
      %v1646 = vsel %vm1644, %v1641, %v1643
      %v1652 = vrot.slane %v666, 7
      %v1653 = vrot.slane %v667, 7
      %v1654 = vrot.slane %v668, 7
      %1655 = vrot.lane.b32.xlu0 %v1652, 108
      %v1656 = vpop.permute.xlu0 %1655
      %1657 = vrot.lane.b32.xlu0 %v1653, 108
      %v1658 = vpop.permute.xlu0 %1657
      %1659 = vrot.lane.b32.xlu0 %v1654, 108
      %v1660 = vpop.permute.xlu0 %1659
      %vm1661 = vcmask 883712
      %v1662 = vsel %vm1661, %v1656, %v1658
      %v1663 = vsel %vm1661, %v1658, %v1660
      %v1669 = vrot.slane %v688, 4
      %v1670 = vrot.slane %v689, 4
      %v1671 = vrot.slane %v690, 4
      %1672 = vrot.lane.b32.xlu0 %v1669, 107
      %v1673 = vpop.permute.xlu0 %1672
      %1674 = vrot.lane.b32.xlu0 %v1670, 107
      %v1675 = vpop.permute.xlu0 %1674
      %1676 = vrot.lane.b32.xlu0 %v1671, 107
      %v1677 = vpop.permute.xlu0 %1676
      %vm1678 = vcmask 875520
      %v1679 = vsel %vm1678, %v1673, %v1675
      %v1680 = vsel %vm1678, %v1675, %v1677
      %v1686 = vrot.slane %v710, 1
      %v1687 = vrot.slane %v711, 1
      %v1688 = vrot.slane %v712, 1
      %1689 = vrot.lane.b32.xlu0 %v1686, 106
      %v1690 = vpop.permute.xlu0 %1689
      %1691 = vrot.lane.b32.xlu0 %v1687, 106
      %v1692 = vpop.permute.xlu0 %1691
      %1693 = vrot.lane.b32.xlu0 %v1688, 106
      %v1694 = vpop.permute.xlu0 %1693
      %vm1695 = vcmask 867328
      %v1696 = vsel %vm1695, %v1690, %v1692
      %v1697 = vsel %vm1695, %v1692, %v1694
      %v1703 = vrot.slane %v732, 6
      %v1704 = vrot.slane %v733, 6
      %v1705 = vrot.slane %v734, 6
      %1706 = vrot.lane.b32.xlu0 %v1703, 96
      %v1707 = vpop.permute.xlu0 %1706
      %1708 = vrot.lane.b32.xlu0 %v1704, 96
      %v1709 = vpop.permute.xlu0 %1708
      %1710 = vrot.lane.b32.xlu0 %v1705, 96
      %v1711 = vpop.permute.xlu0 %1710
      %v1712 = vsel %vm1342, %v1707, %v1709
      %v1713 = vsel %vm1342, %v1709, %v1711
      %v1719 = vrot.slane %v754, 3
      %v1720 = vrot.slane %v755, 3
      %v1721 = vrot.slane %v756, 3
      %1722 = vrot.lane.b32.xlu0 %v1719, 95
      %v1723 = vpop.permute.xlu0 %1722
      %1724 = vrot.lane.b32.xlu0 %v1720, 95
      %v1725 = vpop.permute.xlu0 %1724
      %1726 = vrot.lane.b32.xlu0 %v1721, 95
      %v1727 = vpop.permute.xlu0 %1726
      %vm1728 = vcmask 777216
      %v1729 = vsel %vm1728, %v1723, %v1725
      %v1730 = vsel %vm1728, %v1725, %v1727
      %vm1733 = vcmask 1042432
      %v1734 = vsel %vm1733, %v425, %v1495
      %v1735 = vsel %vm1733, %v426, %v1496
      %vm1736 = vcmask 1045504
      %v1737 = vsel %vm1736, %v1734, %v1512
      %v1738 = vsel %vm1736, %v1735, %v1513
      %vm1739 = vcmask 1040384
      %v1740 = vsel %vm1739, %v1512, %v1529
      %v1741 = vsel %vm1739, %v1513, %v1530
      %vm1742 = vcmask 1043456
      %v1743 = vsel %vm1742, %v1740, %v1546
      %v1744 = vsel %vm1742, %v1741, %v1547
      %vm1745 = vcmask 1046528
      %v1746 = vsel %vm1745, %v1743, %v1563
      %v1747 = vsel %vm1745, %v1744, %v1564
      %vm1748 = vcmask 1041408
      %v1749 = vsel %vm1748, %v1563, %v1580
      %v1750 = vsel %vm1748, %v1564, %v1581
      %vm1751 = vcmask 1044480
      %v1752 = vsel %vm1751, %v1749, %v1597
      %v1753 = vsel %vm1751, %v1750, %v1598
      %v1754 = vsel %vm1733, %v1611, %v1628
      %v1755 = vsel %vm1733, %v1612, %v1629
      %v1756 = vsel %vm1736, %v1754, %v1645
      %v1757 = vsel %vm1736, %v1755, %v1646
      %v1758 = vsel %vm1739, %v1645, %v1662
      %v1759 = vsel %vm1739, %v1646, %v1663
      %v1760 = vsel %vm1742, %v1758, %v1679
      %v1761 = vsel %vm1742, %v1759, %v1680
      %v1762 = vsel %vm1745, %v1760, %v1696
      %v1763 = vsel %vm1745, %v1761, %v1697
      %v1764 = vsel %vm1748, %v1696, %v1712
      %v1765 = vsel %vm1748, %v1697, %v1713
      %v1766 = vsel %vm1751, %v1764, %v1729
      %v1767 = vsel %vm1751, %v1765, %v1730
      %v1771 = vrot.slane %v798, 5
      %v1772 = vrot.slane %v799, 5
      %v1773 = vrot.slane %v800, 5
      %1774 = vrot.lane.b32.xlu0 %v1771, 127
      %v1775 = vpop.permute.xlu0 %1774
      %1776 = vrot.lane.b32.xlu0 %v1772, 127
      %v1777 = vpop.permute.xlu0 %1776
      %1778 = vrot.lane.b32.xlu0 %v1773, 127
      %v1779 = vpop.permute.xlu0 %1778
      %v1780 = vsel %vm1494, %v1775, %v1777
      %v1781 = vsel %vm1494, %v1777, %v1779
      %v1788 = vrot.slane %v820, 2
      %v1789 = vrot.slane %v821, 2
      %v1790 = vrot.slane %v822, 2
      %1791 = vrot.lane.b32.xlu0 %v1788, 126
      %v1792 = vpop.permute.xlu0 %1791
      %1793 = vrot.lane.b32.xlu0 %v1789, 126
      %v1794 = vpop.permute.xlu0 %1793
      %1795 = vrot.lane.b32.xlu0 %v1790, 126
      %v1796 = vpop.permute.xlu0 %1795
      %v1797 = vsel %vm1511, %v1792, %v1794
      %v1798 = vsel %vm1511, %v1794, %v1796
      %v1805 = vrot.slane %v842, 7
      %v1806 = vrot.slane %v843, 7
      %v1807 = vrot.slane %v844, 7
      %1808 = vrot.lane.b32.xlu0 %v1805, 125
      %v1809 = vpop.permute.xlu0 %1808
      %1810 = vrot.lane.b32.xlu0 %v1806, 125
      %v1811 = vpop.permute.xlu0 %1810
      %1812 = vrot.lane.b32.xlu0 %v1807, 125
      %v1813 = vpop.permute.xlu0 %1812
      %v1814 = vsel %vm1528, %v1809, %v1811
      %v1815 = vsel %vm1528, %v1811, %v1813
      %v1822 = vrot.slane %v864, 4
      %v1823 = vrot.slane %v865, 4
      %v1824 = vrot.slane %v866, 4
      %1825 = vrot.lane.b32.xlu0 %v1822, 124
      %v1826 = vpop.permute.xlu0 %1825
      %1827 = vrot.lane.b32.xlu0 %v1823, 124
      %v1828 = vpop.permute.xlu0 %1827
      %1829 = vrot.lane.b32.xlu0 %v1824, 124
      %v1830 = vpop.permute.xlu0 %1829
      %v1831 = vsel %vm1545, %v1826, %v1828
      %v1832 = vsel %vm1545, %v1828, %v1830
      %v1839 = vrot.slane %v886, 1
      %v1840 = vrot.slane %v887, 1
      %v1841 = vrot.slane %v888, 1
      %1842 = vrot.lane.b32.xlu0 %v1839, 114
      %v1843 = vpop.permute.xlu0 %1842
      %1844 = vrot.lane.b32.xlu0 %v1840, 114
      %v1845 = vpop.permute.xlu0 %1844
      %1846 = vrot.lane.b32.xlu0 %v1841, 114
      %v1847 = vpop.permute.xlu0 %1846
      %vm1848 = vcmask 932864
      %v1849 = vsel %vm1848, %v1843, %v1845
      %v1850 = vsel %vm1848, %v1845, %v1847
      %v1857 = vrot.slane %v908, 6
      %v1858 = vrot.slane %v909, 6
      %v1859 = vrot.slane %v910, 6
      %1860 = vrot.lane.b32.xlu0 %v1857, 113
      %v1861 = vpop.permute.xlu0 %1860
      %1862 = vrot.lane.b32.xlu0 %v1858, 113
      %v1863 = vpop.permute.xlu0 %1862
      %1864 = vrot.lane.b32.xlu0 %v1859, 113
      %v1865 = vpop.permute.xlu0 %1864
      %vm1866 = vcmask 924672
      %v1867 = vsel %vm1866, %v1861, %v1863
      %v1868 = vsel %vm1866, %v1863, %v1865
      %v1875 = vrot.slane %v930, 3
      %v1876 = vrot.slane %v931, 3
      %v1877 = vrot.slane %v932, 3
      %1878 = vrot.lane.b32.xlu0 %v1875, 112
      %v1879 = vpop.permute.xlu0 %1878
      %1880 = vrot.lane.b32.xlu0 %v1876, 112
      %v1881 = vpop.permute.xlu0 %1880
      %1882 = vrot.lane.b32.xlu0 %v1877, 112
      %v1883 = vpop.permute.xlu0 %1882
      %v1884 = vsel %vm1596, %v1879, %v1881
      %v1885 = vsel %vm1596, %v1881, %v1883
      %1892 = vrot.lane.b32.xlu0 %v951, 111
      %v1893 = vpop.permute.xlu0 %1892
      %1894 = vrot.lane.b32.xlu0 %v952, 111
      %v1895 = vpop.permute.xlu0 %1894
      %1896 = vrot.lane.b32.xlu0 %v953, 111
      %v1897 = vpop.permute.xlu0 %1896
      %v1898 = vsel %vm1610, %v1893, %v1895
      %v1899 = vsel %vm1610, %v1895, %v1897
      %v1906 = vrot.slane %v973, 5
      %v1907 = vrot.slane %v974, 5
      %v1908 = vrot.slane %v975, 5
      %1909 = vrot.lane.b32.xlu0 %v1906, 110
      %v1910 = vpop.permute.xlu0 %1909
      %1911 = vrot.lane.b32.xlu0 %v1907, 110
      %v1912 = vpop.permute.xlu0 %1911
      %1913 = vrot.lane.b32.xlu0 %v1908, 110
      %v1914 = vpop.permute.xlu0 %1913
      %v1915 = vsel %vm1627, %v1910, %v1912
      %v1916 = vsel %vm1627, %v1912, %v1914
      %v1923 = vrot.slane %v995, 2
      %v1924 = vrot.slane %v996, 2
      %v1925 = vrot.slane %v997, 2
      %1926 = vrot.lane.b32.xlu0 %v1923, 109
      %v1927 = vpop.permute.xlu0 %1926
      %1928 = vrot.lane.b32.xlu0 %v1924, 109
      %v1929 = vpop.permute.xlu0 %1928
      %1930 = vrot.lane.b32.xlu0 %v1925, 109
      %v1931 = vpop.permute.xlu0 %1930
      %v1932 = vsel %vm1644, %v1927, %v1929
      %v1933 = vsel %vm1644, %v1929, %v1931
      %v1940 = vrot.slane %v1017, 7
      %v1941 = vrot.slane %v1018, 7
      %v1942 = vrot.slane %v1019, 7
      %1943 = vrot.lane.b32.xlu0 %v1940, 108
      %v1944 = vpop.permute.xlu0 %1943
      %1945 = vrot.lane.b32.xlu0 %v1941, 108
      %v1946 = vpop.permute.xlu0 %1945
      %1947 = vrot.lane.b32.xlu0 %v1942, 108
      %v1948 = vpop.permute.xlu0 %1947
      %v1949 = vsel %vm1661, %v1944, %v1946
      %v1950 = vsel %vm1661, %v1946, %v1948
      %v1957 = vrot.slane %v1039, 4
      %v1958 = vrot.slane %v1040, 4
      %v1959 = vrot.slane %v1041, 4
      %1960 = vrot.lane.b32.xlu0 %v1957, 98
      %v1961 = vpop.permute.xlu0 %1960
      %1962 = vrot.lane.b32.xlu0 %v1958, 98
      %v1963 = vpop.permute.xlu0 %1962
      %1964 = vrot.lane.b32.xlu0 %v1959, 98
      %v1965 = vpop.permute.xlu0 %1964
      %v1966 = vsel %vm1386, %v1961, %v1963
      %v1967 = vsel %vm1386, %v1963, %v1965
      %v1974 = vrot.slane %v1061, 1
      %v1975 = vrot.slane %v1062, 1
      %v1976 = vrot.slane %v1063, 1
      %1977 = vrot.lane.b32.xlu0 %v1974, 97
      %v1978 = vpop.permute.xlu0 %1977
      %1979 = vrot.lane.b32.xlu0 %v1975, 97
      %v1980 = vpop.permute.xlu0 %1979
      %1981 = vrot.lane.b32.xlu0 %v1976, 97
      %v1982 = vpop.permute.xlu0 %1981
      %v1983 = vsel %vm1364, %v1978, %v1980
      %v1984 = vsel %vm1364, %v1980, %v1982
      %v1991 = vrot.slane %v1083, 6
      %v1992 = vrot.slane %v1084, 6
      %v1993 = vrot.slane %v1085, 6
      %1994 = vrot.lane.b32.xlu0 %v1991, 96
      %v1995 = vpop.permute.xlu0 %1994
      %1996 = vrot.lane.b32.xlu0 %v1992, 96
      %v1997 = vpop.permute.xlu0 %1996
      %1998 = vrot.lane.b32.xlu0 %v1993, 96
      %v1999 = vpop.permute.xlu0 %1998
      %v2000 = vsel %vm1342, %v1995, %v1997
      %v2001 = vsel %vm1342, %v1997, %v1999
      %v2008 = vrot.slane %v1105, 3
      %v2009 = vrot.slane %v1106, 3
      %v2010 = vrot.slane %v1107, 3
      %2011 = vrot.lane.b32.xlu0 %v2008, 95
      %v2012 = vpop.permute.xlu0 %2011
      %2013 = vrot.lane.b32.xlu0 %v2009, 95
      %v2014 = vpop.permute.xlu0 %2013
      %2015 = vrot.lane.b32.xlu0 %v2010, 95
      %v2016 = vpop.permute.xlu0 %2015
      %v2017 = vsel %vm1728, %v2012, %v2014
      %v2018 = vsel %vm1728, %v2014, %v2016
      %v2022 = vsel %vm1733, %v776, %v1780
      %v2023 = vsel %vm1733, %v777, %v1781
      %v2024 = vsel %vm1733, %v778, %v1779
      %v2025 = vsel %vm1736, %v2022, %v1797
      %v2026 = vsel %vm1736, %v2023, %v1798
      %v2027 = vsel %vm1736, %v2024, %v1796
      %v2028 = vsel %vm1739, %v1797, %v1814
      %v2029 = vsel %vm1739, %v1798, %v1815
      %v2030 = vsel %vm1739, %v1796, %v1813
      %v2031 = vsel %vm1742, %v2028, %v1831
      %v2032 = vsel %vm1742, %v2029, %v1832
      %v2033 = vsel %vm1742, %v2030, %v1830
      %v2034 = vsel %vm1745, %v2031, %v1849
      %v2035 = vsel %vm1745, %v2032, %v1850
      %v2036 = vsel %vm1745, %v2033, %v1847
      %v2037 = vsel %vm1748, %v1849, %v1867
      %v2038 = vsel %vm1748, %v1850, %v1868
      %v2039 = vsel %vm1748, %v1847, %v1865
      %v2040 = vsel %vm1751, %v2037, %v1884
      %v2041 = vsel %vm1751, %v2038, %v1885
      %v2042 = vsel %vm1751, %v2039, %v1883
      %v2043 = vsel %vm1733, %v1898, %v1915
      %v2044 = vsel %vm1733, %v1899, %v1916
      %v2045 = vsel %vm1733, %v1897, %v1914
      %v2046 = vsel %vm1736, %v2043, %v1932
      %v2047 = vsel %vm1736, %v2044, %v1933
      %v2048 = vsel %vm1736, %v2045, %v1931
      %v2049 = vsel %vm1739, %v1932, %v1949
      %v2050 = vsel %vm1739, %v1933, %v1950
      %v2051 = vsel %vm1739, %v1931, %v1948
      %v2052 = vsel %vm1742, %v2049, %v1966
      %v2053 = vsel %vm1742, %v2050, %v1967
      %v2054 = vsel %vm1742, %v2051, %v1965
      %v2055 = vsel %vm1745, %v2052, %v1983
      %v2056 = vsel %vm1745, %v2053, %v1984
      %v2057 = vsel %vm1745, %v2054, %v1982
      %v2058 = vsel %vm1748, %v1983, %v2000
      %v2059 = vsel %vm1748, %v1984, %v2001
      %v2060 = vsel %vm1748, %v1982, %v1999
      %v2061 = vsel %vm1751, %v2058, %v2017
      %v2062 = vsel %vm1751, %v2059, %v2018
      %v2063 = vsel %vm1751, %v2060, %v2016
      %v2067 = vrot.slane %v1149, 5
      %v2068 = vrot.slane %v1150, 5
      %v2069 = vrot.slane %v1151, 5
      %2070 = vrot.lane.b32.xlu0 %v2067, 127
      %v2071 = vpop.permute.xlu0 %2070
      %2072 = vrot.lane.b32.xlu0 %v2068, 127
      %v2073 = vpop.permute.xlu0 %2072
      %2074 = vrot.lane.b32.xlu0 %v2069, 127
      %v2075 = vpop.permute.xlu0 %2074
      %v2076 = vsel %vm1494, %v2071, %v2073
      %v2077 = vsel %vm1494, %v2073, %v2075
      %v2084 = vrot.slane %v1171, 2
      %v2085 = vrot.slane %v1172, 2
      %v2086 = vrot.slane %v1173, 2
      %2087 = vrot.lane.b32.xlu0 %v2084, 126
      %v2088 = vpop.permute.xlu0 %2087
      %2089 = vrot.lane.b32.xlu0 %v2085, 126
      %v2090 = vpop.permute.xlu0 %2089
      %2091 = vrot.lane.b32.xlu0 %v2086, 126
      %v2092 = vpop.permute.xlu0 %2091
      %v2093 = vsel %vm1511, %v2088, %v2090
      %v2094 = vsel %vm1511, %v2090, %v2092
      %v2101 = vrot.slane %v1193, 7
      %v2102 = vrot.slane %v1194, 7
      %v2103 = vrot.slane %v1195, 7
      %2104 = vrot.lane.b32.xlu0 %v2101, 116
      %v2105 = vpop.permute.xlu0 %2104
      %2106 = vrot.lane.b32.xlu0 %v2102, 116
      %v2107 = vpop.permute.xlu0 %2106
      %2108 = vrot.lane.b32.xlu0 %v2103, 116
      %v2109 = vpop.permute.xlu0 %2108
      %vm2110 = vcmask 949248
      %v2111 = vsel %vm2110, %v2105, %v2107
      %v2112 = vsel %vm2110, %v2107, %v2109
      %v2119 = vrot.slane %v1215, 4
      %v2120 = vrot.slane %v1216, 4
      %v2121 = vrot.slane %v1217, 4
      %2122 = vrot.lane.b32.xlu0 %v2119, 115
      %v2123 = vpop.permute.xlu0 %2122
      %2124 = vrot.lane.b32.xlu0 %v2120, 115
      %v2125 = vpop.permute.xlu0 %2124
      %2126 = vrot.lane.b32.xlu0 %v2121, 115
      %v2127 = vpop.permute.xlu0 %2126
      %vm2128 = vcmask 941056
      %v2129 = vsel %vm2128, %v2123, %v2125
      %v2130 = vsel %vm2128, %v2125, %v2127
      %v2137 = vrot.slane %v1237, 1
      %v2138 = vrot.slane %v1238, 1
      %v2139 = vrot.slane %v1239, 1
      %2140 = vrot.lane.b32.xlu0 %v2137, 114
      %v2141 = vpop.permute.xlu0 %2140
      %2142 = vrot.lane.b32.xlu0 %v2138, 114
      %v2143 = vpop.permute.xlu0 %2142
      %2144 = vrot.lane.b32.xlu0 %v2139, 114
      %v2145 = vpop.permute.xlu0 %2144
      %v2146 = vsel %vm1848, %v2141, %v2143
      %v2147 = vsel %vm1848, %v2143, %v2145
      %v2154 = vrot.slane %v1259, 6
      %v2155 = vrot.slane %v1260, 6
      %v2156 = vrot.slane %v1261, 6
      %2157 = vrot.lane.b32.xlu0 %v2154, 113
      %v2158 = vpop.permute.xlu0 %2157
      %2159 = vrot.lane.b32.xlu0 %v2155, 113
      %v2160 = vpop.permute.xlu0 %2159
      %2161 = vrot.lane.b32.xlu0 %v2156, 113
      %v2162 = vpop.permute.xlu0 %2161
      %v2163 = vsel %vm1866, %v2158, %v2160
      %v2164 = vsel %vm1866, %v2160, %v2162
      %v2171 = vrot.slane %v1281, 3
      %v2172 = vrot.slane %v1282, 3
      %v2173 = vrot.slane %v1283, 3
      %2174 = vrot.lane.b32.xlu0 %v2171, 112
      %v2175 = vpop.permute.xlu0 %2174
      %2176 = vrot.lane.b32.xlu0 %v2172, 112
      %v2177 = vpop.permute.xlu0 %2176
      %2178 = vrot.lane.b32.xlu0 %v2173, 112
      %v2179 = vpop.permute.xlu0 %2178
      %v2180 = vsel %vm1596, %v2175, %v2177
      %v2181 = vsel %vm1596, %v2177, %v2179
      %2188 = vrot.lane.b32.xlu0 %v1303, 111
      %v2189 = vpop.permute.xlu0 %2188
      %2190 = vrot.lane.b32.xlu0 %v1304, 111
      %v2191 = vpop.permute.xlu0 %2190
      %2192 = vrot.lane.b32.xlu0 %v1305, 111
      %v2193 = vpop.permute.xlu0 %2192
      %v2194 = vsel %vm1610, %v2189, %v2191
      %v2195 = vsel %vm1610, %v2191, %v2193
      %v2202 = vrot.slane %v1325, 5
      %v2203 = vrot.slane %v1326, 5
      %v2204 = vrot.slane %v1327, 5
      %2205 = vrot.lane.b32.xlu0 %v2202, 110
      %v2206 = vpop.permute.xlu0 %2205
      %2207 = vrot.lane.b32.xlu0 %v2203, 110
      %v2208 = vpop.permute.xlu0 %2207
      %2209 = vrot.lane.b32.xlu0 %v2204, 110
      %v2210 = vpop.permute.xlu0 %2209
      %v2211 = vsel %vm1627, %v2206, %v2208
      %v2212 = vsel %vm1627, %v2208, %v2210
      %v2219 = vrot.slane %v1347, 2
      %v2220 = vrot.slane %v1348, 2
      %v2221 = vrot.slane %v1349, 2
      %2222 = vrot.lane.b32.xlu0 %v2219, 100
      %v2223 = vpop.permute.xlu0 %2222
      %2224 = vrot.lane.b32.xlu0 %v2220, 100
      %v2225 = vpop.permute.xlu0 %2224
      %2226 = vrot.lane.b32.xlu0 %v2221, 100
      %v2227 = vpop.permute.xlu0 %2226
      %v2228 = vsel %vm1430, %v2223, %v2225
      %v2229 = vsel %vm1430, %v2225, %v2227
      %v2236 = vrot.slane %v1369, 7
      %v2237 = vrot.slane %v1370, 7
      %v2238 = vrot.slane %v1371, 7
      %2239 = vrot.lane.b32.xlu0 %v2236, 99
      %v2240 = vpop.permute.xlu0 %2239
      %2241 = vrot.lane.b32.xlu0 %v2237, 99
      %v2242 = vpop.permute.xlu0 %2241
      %2243 = vrot.lane.b32.xlu0 %v2238, 99
      %v2244 = vpop.permute.xlu0 %2243
      %v2245 = vsel %vm1408, %v2240, %v2242
      %v2246 = vsel %vm1408, %v2242, %v2244
      %v2253 = vrot.slane %v1391, 4
      %v2254 = vrot.slane %v1392, 4
      %v2255 = vrot.slane %v1393, 4
      %2256 = vrot.lane.b32.xlu0 %v2253, 98
      %v2257 = vpop.permute.xlu0 %2256
      %2258 = vrot.lane.b32.xlu0 %v2254, 98
      %v2259 = vpop.permute.xlu0 %2258
      %2260 = vrot.lane.b32.xlu0 %v2255, 98
      %v2261 = vpop.permute.xlu0 %2260
      %v2262 = vsel %vm1386, %v2257, %v2259
      %v2263 = vsel %vm1386, %v2259, %v2261
      %v2270 = vrot.slane %v1413, 1
      %v2271 = vrot.slane %v1414, 1
      %v2272 = vrot.slane %v1415, 1
      %2273 = vrot.lane.b32.xlu0 %v2270, 97
      %v2274 = vpop.permute.xlu0 %2273
      %2275 = vrot.lane.b32.xlu0 %v2271, 97
      %v2276 = vpop.permute.xlu0 %2275
      %2277 = vrot.lane.b32.xlu0 %v2272, 97
      %v2278 = vpop.permute.xlu0 %2277
      %v2279 = vsel %vm1364, %v2274, %v2276
      %v2280 = vsel %vm1364, %v2276, %v2278
      %v2287 = vrot.slane %v1435, 6
      %v2288 = vrot.slane %v1436, 6
      %v2289 = vrot.slane %v1437, 6
      %2290 = vrot.lane.b32.xlu0 %v2287, 96
      %v2291 = vpop.permute.xlu0 %2290
      %2292 = vrot.lane.b32.xlu0 %v2288, 96
      %v2293 = vpop.permute.xlu0 %2292
      %2294 = vrot.lane.b32.xlu0 %v2289, 96
      %v2295 = vpop.permute.xlu0 %2294
      %v2296 = vsel %vm1342, %v2291, %v2293
      %v2297 = vsel %vm1342, %v2293, %v2295
      %v2304 = vrot.slane %v1457, 3
      %v2305 = vrot.slane %v1458, 3
      %v2306 = vrot.slane %v1459, 3
      %2307 = vrot.lane.b32.xlu0 %v2304, 95
      %v2308 = vpop.permute.xlu0 %2307
      %2309 = vrot.lane.b32.xlu0 %v2305, 95
      %v2310 = vpop.permute.xlu0 %2309
      %2311 = vrot.lane.b32.xlu0 %v2306, 95
      %v2312 = vpop.permute.xlu0 %2311
      %v2313 = vsel %vm1728, %v2308, %v2310
      %v2314 = vsel %vm1728, %v2310, %v2312
      %v2318 = vsel %vm1733, %v1127, %v2076
      %v2319 = vsel %vm1733, %v1128, %v2077
      %v2320 = vsel %vm1733, %v1129, %v2075
      %v2321 = vsel %vm1736, %v2318, %v2093
      %v2322 = vsel %vm1736, %v2319, %v2094
      %v2323 = vsel %vm1736, %v2320, %v2092
      %v2324 = vsel %vm1739, %v2093, %v2111
      %v2325 = vsel %vm1739, %v2094, %v2112
      %v2326 = vsel %vm1739, %v2092, %v2109
      %v2327 = vsel %vm1742, %v2324, %v2129
      %v2328 = vsel %vm1742, %v2325, %v2130
      %v2329 = vsel %vm1742, %v2326, %v2127
      %v2330 = vsel %vm1745, %v2327, %v2146
      %v2331 = vsel %vm1745, %v2328, %v2147
      %v2332 = vsel %vm1745, %v2329, %v2145
      %v2333 = vsel %vm1748, %v2146, %v2163
      %v2334 = vsel %vm1748, %v2147, %v2164
      %v2335 = vsel %vm1748, %v2145, %v2162
      %v2336 = vsel %vm1751, %v2333, %v2180
      %v2337 = vsel %vm1751, %v2334, %v2181
      %v2338 = vsel %vm1751, %v2335, %v2179
      %v2339 = vsel %vm1733, %v2194, %v2211
      %v2340 = vsel %vm1733, %v2195, %v2212
      %v2341 = vsel %vm1733, %v2193, %v2210
      %v2342 = vsel %vm1736, %v2339, %v2228
      %v2343 = vsel %vm1736, %v2340, %v2229
      %v2344 = vsel %vm1736, %v2341, %v2227
      %v2345 = vsel %vm1739, %v2228, %v2245
      %v2346 = vsel %vm1739, %v2229, %v2246
      %v2347 = vsel %vm1739, %v2227, %v2244
      %v2348 = vsel %vm1742, %v2345, %v2262
      %v2349 = vsel %vm1742, %v2346, %v2263
      %v2350 = vsel %vm1742, %v2347, %v2261
      %v2351 = vsel %vm1745, %v2348, %v2279
      %v2352 = vsel %vm1745, %v2349, %v2280
      %v2353 = vsel %vm1745, %v2350, %v2278
      %v2354 = vsel %vm1748, %v2279, %v2296
      %v2355 = vsel %vm1748, %v2280, %v2297
      %v2356 = vsel %vm1748, %v2278, %v2295
      %v2357 = vsel %vm1751, %v2354, %v2313
      %v2358 = vsel %vm1751, %v2355, %v2314
      %v2359 = vsel %vm1751, %v2356, %v2312
      %2378 = vrot.lane.b32.xlu0 %v2025, 94
      %v2379 = vpop.permute.xlu0 %2378
      %2380 = vrot.lane.b32.xlu0 %v2026, 94
      %v2381 = vpop.permute.xlu0 %2380
      %2382 = vrot.lane.b32.xlu0 %v2027, 94
      %v2383 = vpop.permute.xlu0 %2382
      %2384 = vrot.lane.b32.xlu0 %v2034, 94
      %v2385 = vpop.permute.xlu0 %2384
      %2386 = vrot.lane.b32.xlu0 %v2035, 94
      %v2387 = vpop.permute.xlu0 %2386
      %2388 = vrot.lane.b32.xlu0 %v2036, 94
      %v2389 = vpop.permute.xlu0 %2388
      %2390 = vrot.lane.b32.xlu0 %v2040, 94
      %v2391 = vpop.permute.xlu0 %2390
      %2392 = vrot.lane.b32.xlu0 %v2041, 94
      %v2393 = vpop.permute.xlu0 %2392
      %2394 = vrot.lane.b32.xlu0 %v2042, 94
      %v2395 = vpop.permute.xlu0 %2394
      %2396 = vrot.lane.b32.xlu0 %v2046, 94
      %v2397 = vpop.permute.xlu0 %2396
      %2398 = vrot.lane.b32.xlu0 %v2047, 94
      %v2399 = vpop.permute.xlu0 %2398
      %2400 = vrot.lane.b32.xlu0 %v2048, 94
      %v2401 = vpop.permute.xlu0 %2400
      %2402 = vrot.lane.b32.xlu0 %v2055, 94
      %v2403 = vpop.permute.xlu0 %2402
      %2404 = vrot.lane.b32.xlu0 %v2056, 94
      %v2405 = vpop.permute.xlu0 %2404
      %2406 = vrot.lane.b32.xlu0 %v2057, 94
      %v2407 = vpop.permute.xlu0 %2406
      %2408 = vrot.lane.b32.xlu0 %v2061, 94
      %v2409 = vpop.permute.xlu0 %2408
      %2410 = vrot.lane.b32.xlu0 %v2062, 94
      %v2411 = vpop.permute.xlu0 %2410
      %2412 = vrot.lane.b32.xlu0 %v2063, 94
      %v2413 = vpop.permute.xlu0 %2412
      %vm2414 = vcmask 769024
      %v2415 = vsel %vm2414, %v2379, %v2381
      %v2416 = vsel %vm2414, %v2381, %v2383
      %v2417 = vsel %vm2414, %v2385, %v2387
      %v2418 = vsel %vm2414, %v2387, %v2389
      %v2419 = vsel %vm2414, %v2391, %v2393
      %v2420 = vsel %vm2414, %v2393, %v2395
      %v2421 = vsel %vm2414, %v2397, %v2399
      %v2422 = vsel %vm2414, %v2399, %v2401
      %v2423 = vsel %vm2414, %v2403, %v2405
      %v2424 = vsel %vm2414, %v2405, %v2407
      %v2425 = vsel %vm2414, %v2409, %v2411
      %v2426 = vsel %vm2414, %v2411, %v2413
      %2457 = vrot.lane.b32.xlu0 %v2321, 60
      %v2458 = vpop.permute.xlu0 %2457
      %2459 = vrot.lane.b32.xlu0 %v2322, 60
      %v2460 = vpop.permute.xlu0 %2459
      %2461 = vrot.lane.b32.xlu0 %v2323, 60
      %v2462 = vpop.permute.xlu0 %2461
      %2463 = vrot.lane.b32.xlu0 %v2330, 60
      %v2464 = vpop.permute.xlu0 %2463
      %2465 = vrot.lane.b32.xlu0 %v2331, 60
      %v2466 = vpop.permute.xlu0 %2465
      %2467 = vrot.lane.b32.xlu0 %v2332, 60
      %v2468 = vpop.permute.xlu0 %2467
      %2469 = vrot.lane.b32.xlu0 %v2336, 60
      %v2470 = vpop.permute.xlu0 %2469
      %2471 = vrot.lane.b32.xlu0 %v2337, 60
      %v2472 = vpop.permute.xlu0 %2471
      %2473 = vrot.lane.b32.xlu0 %v2338, 60
      %v2474 = vpop.permute.xlu0 %2473
      %2475 = vrot.lane.b32.xlu0 %v2342, 60
      %v2476 = vpop.permute.xlu0 %2475
      %2477 = vrot.lane.b32.xlu0 %v2343, 60
      %v2478 = vpop.permute.xlu0 %2477
      %2479 = vrot.lane.b32.xlu0 %v2344, 60
      %v2480 = vpop.permute.xlu0 %2479
      %2481 = vrot.lane.b32.xlu0 %v2351, 60
      %v2482 = vpop.permute.xlu0 %2481
      %2483 = vrot.lane.b32.xlu0 %v2352, 60
      %v2484 = vpop.permute.xlu0 %2483
      %2485 = vrot.lane.b32.xlu0 %v2353, 60
      %v2486 = vpop.permute.xlu0 %2485
      %2487 = vrot.lane.b32.xlu0 %v2357, 60
      %v2488 = vpop.permute.xlu0 %2487
      %2489 = vrot.lane.b32.xlu0 %v2358, 60
      %v2490 = vpop.permute.xlu0 %2489
      %2491 = vrot.lane.b32.xlu0 %v2359, 60
      %v2492 = vpop.permute.xlu0 %2491
      %vm2493 = vcmask 490496
      %v2494 = vsel %vm2493, %v2458, %v2460
      %v2495 = vsel %vm2493, %v2460, %v2462
      %v2496 = vsel %vm2493, %v2464, %v2466
      %v2497 = vsel %vm2493, %v2466, %v2468
      %v2498 = vsel %vm2493, %v2470, %v2472
      %v2499 = vsel %vm2493, %v2472, %v2474
      %v2500 = vsel %vm2493, %v2476, %v2478
      %v2501 = vsel %vm2493, %v2478, %v2480
      %v2502 = vsel %vm2493, %v2482, %v2484
      %v2503 = vsel %vm2493, %v2484, %v2486
      %v2504 = vsel %vm2493, %v2488, %v2490
      %v2505 = vsel %vm2493, %v2490, %v2492
      %2521 = vrot.lane.b32.xlu0 %v1479, 26
      %v2522 = vpop.permute.xlu0 %2521
      %2523 = vrot.lane.b32.xlu0 %v1480, 26
      %v2524 = vpop.permute.xlu0 %2523
      %2525 = vrot.lane.b32.xlu0 %v1481, 26
      %v2526 = vpop.permute.xlu0 %2525
      %vm2527 = vcmask 211968
      %v2528 = vsel %vm2527, %v2522, %v2524
      %v2529 = vsel %vm2527, %v2524, %v2526
      %v2531 = vsel %vm639, %v403, 0
      %v2533 = vsel %vm1733, %v2528, 0
      %v2535 = vsel %vm1733, %v2529, 0
      %2537 = vmatprep.subr.mxu0 %v2501
      %2538 = vmatpush1.msra.mxu0 %v2500
      %2539 = vmatprep.subr.mxu0 %v2499
      %2540 = vmatpush1.msra.mxu0 %v2498
      %2541 = vmatprep.subr.mxu0 %v2497
      %2542 = vmatpush1.msra.mxu0 %v2496
      %2543 = vmatprep.subr.mxu0 %v2495
      %2544 = vmatpush1.msra.mxu0 %v2494
      %2545 = vmatprep.subr.mxu0 %v2426
      %2546 = vmatpush1.msra.mxu0 %v2425
      %2547 = vmatprep.subr.mxu0 %v2424
      %2548 = vmatpush1.msra.mxu0 %v2423
      %2549 = vmatprep.subr.mxu0 %v2422
      %2550 = vmatpush1.msra.mxu0 %v2421
      %2551 = vmatprep.subr.mxu0 %v2420
      %2552 = vmatpush1.msra.mxu0 %v2419
      %2553 = vmatprep.subr.mxu0 %v2418
      %2554 = vmatpush1.msra.mxu0 %v2417
      %2555 = vmatprep.subr.mxu0 %v2416
      %2556 = vmatpush1.msra.mxu0 %v2415
      %2557 = vmatprep.subr.mxu0 %v1767
      %2558 = vmatpush1.msra.mxu0 %v1766
      %2559 = vmatprep.subr.mxu0 %v1763
      %2560 = vmatpush1.msra.mxu0 %v1762
      %2561 = vmatprep.subr.mxu0 %v1757
      %2562 = vmatpush1.msra.mxu0 %v1756
      %2563 = vmatprep.subr.mxu0 %v1753
      %2564 = vmatpush1.msra.mxu0 %v1752
      %2565 = vmatprep.subr.mxu0 %v1747
      %2566 = vmatpush1.msra.mxu0 %v1746
      %2567 = vmatprep.subr.mxu0 %v1738
      %2568 = vmatpush1.msra.mxu0 %v1737
      %2569 = vmatprep.subr.mxu0 0.0
      %2570 = vmatpush2.msra.mxu0 0.0
      %2571 = vmatprep.subr.mxu0 0.0
      %2572 = vmatpush2.msra.mxu0 0.0
      %2573 = vmatprep.subr.mxu0 0.0
      %2574 = vmatpush2.msra.mxu0 0.0
      %2575 = vmatprep.subr.mxu0 0.0
      %2576 = vmatpush2.msra.mxu0 0.0
      %2577 = vmatprep.subr.mxu0 0.0
      %2578 = vmatpush2.msra.mxu0 0.0
      %2579 = vmatprep.subr.mxu0 0.0
      %2580 = vmatpush2.msra.mxu0 0.0
      %2581 = vmatprep.subr.mxu0 0.0
      %2582 = vmatpush2.msra.mxu0 0.0
      %2583 = vmatprep.subr.mxu0 0.0
      %2584 = vmatpush2.msra.mxu0 0.0
      %2585 = vmatprep.subr.mxu0 0.0
      %2586 = vmatpush2.msra.mxu0 0.0
      %2587 = vmatprep.subr.mxu0 0.0
      %2588 = vmatpush2.msra.mxu0 0.0
      %2589 = vmatprep.subr.mxu0 0.0
      %2590 = vmatpush2.msra.mxu0 0.0
      %2591 = vmatprep.subr.mxu0 0.0
      %2592 = vmatpush2.msra.mxu0 0.0
      %2593 = vmatprep.subr.mxu0 0.0
      %2594 = vmatpush2.msra.mxu0 0.0
      %2595 = vmatprep.subr.mxu0 %v2535
      %2596 = vmatpush2.msra.mxu0 %v2533
      %2597 = vmatprep.subr.mxu0 %v2505
      %2598 = vmatpush2.msra.mxu0 %v2504
      %2599 = vmatprep.subr.mxu0 %v2503
      %2600 = vmatpush2.msra.mxu0 %v2502
      %2601 = vmatprep.mubr.f32.mxu0 %v2531
      %2602 = vmatmul.mubr.f32.gmra.mxu0 %v402
      %v2603 = vpop.f32.mrf.mxu0
      %v2604 = vadd.f32 0.0, %v2603
      %v2605 = vpop.f32.mrf.mxu0
      %v2606 = vadd.f32 0.0, %v2605
      %2607 = vdwg.mxu0
      %v2608 = vld [vmem:[%s7] sm:$0xff]
      %v2609 = vld [vmem:[%s7 + $0x8] sm:$0xff]
      %v2610 = vld [vmem:[%s7 + $0x10] sm:$0x1]
      %v2611 = vld [vmem:[%s7 + $0x18] sm:$0x1]
      %v2612 = vld [vmem:[%s2] sm:$0xff]
      %2615 = vrot.lane.b32.xlu0 %v2604, 17
      %v2616 = vpop.permute.xlu0 %2615
      %2617 = vrot.lane.b32.xlu0 %v2606, 17
      %v2618 = vpop.permute.xlu0 %2617
      %v2619 = vsel %vm595, %v2616, %v2618
      %v2623 = vsel %vm595, 0.0, %v2616
      %v2624 = vsel %vm595, %v2618, 0.0
      %v2625 = vlaneseq
      %v2626 = vshrl.u32 %v2625, 7
      %v2627 = vsub.s32 0, %v2626
      %v2628 = vrot.slane %v2608, %v2627
      %v2629 = vlaneseq
      %v2630 = vshrl.u32 %v2629, 7
      %v2631 = vsub.s32 0, %v2630
      %v2632 = vrot.slane %v2609, %v2631
      %v2633 = vmul.f32 %v2623, %v2628
      %v2634 = vmul.f32 %v2619, %v2632
      %v2635 = vlaneseq
      %v2636 = vshrl.u32 %v2635, 7
      %v2637 = vsub.s32 1, %v2636
      %v2638 = vrot.slane %v2608, %v2637
      %v2639 = vlaneseq
      %v2640 = vshrl.u32 %v2639, 7
      %v2641 = vsub.s32 1, %v2640
      %v2642 = vrot.slane %v2609, %v2641
      %2645 = vrot.lane.b32.xlu0 %v2638, 1
      %v2646 = vpop.permute.xlu0 %2645
      %2647 = vrot.lane.b32.xlu0 %v2642, 1
      %v2648 = vpop.permute.xlu0 %2647
      %v2649 = vsel %vm441, %v2646, %v2648
      %v2653 = vmul.f32 %v2623, %v2646
      %v2654 = vmul.f32 %v2619, %v2649
      %v2655 = vmul.f32 %v2624, %v2648
      %v2656 = vlaneseq
      %v2657 = vshrl.u32 %v2656, 7
      %v2658 = vsub.s32 2, %v2657
      %v2659 = vrot.slane %v2608, %v2658
      %v2660 = vlaneseq
      %v2661 = vshrl.u32 %v2660, 7
      %v2662 = vsub.s32 2, %v2661
      %v2663 = vrot.slane %v2609, %v2662
      %2666 = vrot.lane.b32.xlu0 %v2659, 2
      %v2667 = vpop.permute.xlu0 %2666
      %2668 = vrot.lane.b32.xlu0 %v2663, 2
      %v2669 = vpop.permute.xlu0 %2668
      %v2670 = vsel %vm463, %v2667, %v2669
      %v2674 = vmul.f32 %v2623, %v2667
      %v2675 = vmul.f32 %v2619, %v2670
      %v2676 = vmul.f32 %v2624, %v2669
      %v2677 = vlaneseq
      %v2678 = vshrl.u32 %v2677, 7
      %v2679 = vsub.s32 3, %v2678
      %v2680 = vrot.slane %v2608, %v2679
      %v2681 = vlaneseq
      %v2682 = vshrl.u32 %v2681, 7
      %v2683 = vsub.s32 3, %v2682
      %v2684 = vrot.slane %v2609, %v2683
      %2687 = vrot.lane.b32.xlu0 %v2680, 16
      %v2688 = vpop.permute.xlu0 %2687
      %2689 = vrot.lane.b32.xlu0 %v2684, 16
      %v2690 = vpop.permute.xlu0 %2689
      %v2691 = vsel %vm573, %v2688, %v2690
      %v2695 = vmul.f32 %v2623, %v2688
      %v2696 = vmul.f32 %v2619, %v2691
      %v2697 = vmul.f32 %v2624, %v2690
      %v2698 = vlaneseq
      %v2699 = vshrl.u32 %v2698, 7
      %v2700 = vsub.s32 4, %v2699
      %v2701 = vrot.slane %v2608, %v2700
      %v2702 = vlaneseq
      %v2703 = vshrl.u32 %v2702, 7
      %v2704 = vsub.s32 4, %v2703
      %v2705 = vrot.slane %v2609, %v2704
      %2708 = vrot.lane.b32.xlu0 %v2701, 17
      %v2709 = vpop.permute.xlu0 %2708
      %2710 = vrot.lane.b32.xlu0 %v2705, 17
      %v2711 = vpop.permute.xlu0 %2710
      %v2712 = vsel %vm595, %v2709, %v2711
      %v2716 = vmul.f32 %v2623, %v2709
      %v2717 = vmul.f32 %v2619, %v2712
      %v2718 = vmul.f32 %v2624, %v2711
      %v2719 = vlaneseq
      %v2720 = vshrl.u32 %v2719, 7
      %v2721 = vsub.s32 5, %v2720
      %v2722 = vrot.slane %v2608, %v2721
      %v2723 = vlaneseq
      %v2724 = vshrl.u32 %v2723, 7
      %v2725 = vsub.s32 5, %v2724
      %v2726 = vrot.slane %v2609, %v2725
      %2729 = vrot.lane.b32.xlu0 %v2722, 18
      %v2730 = vpop.permute.xlu0 %2729
      %2731 = vrot.lane.b32.xlu0 %v2726, 18
      %v2732 = vpop.permute.xlu0 %2731
      %v2733 = vsel %vm617, %v2730, %v2732
      %v2737 = vmul.f32 %v2623, %v2730
      %v2738 = vmul.f32 %v2619, %v2733
      %v2739 = vmul.f32 %v2624, %v2732
      %v2740 = vlaneseq
      %v2741 = vshrl.u32 %v2740, 7
      %v2742 = vsub.s32 6, %v2741
      %v2743 = vrot.slane %v2608, %v2742
      %v2744 = vlaneseq
      %v2745 = vshrl.u32 %v2744, 7
      %v2746 = vsub.s32 6, %v2745
      %v2747 = vrot.slane %v2609, %v2746
      %2750 = vrot.lane.b32.xlu0 %v2743, 32
      %v2751 = vpop.permute.xlu0 %2750
      %2752 = vrot.lane.b32.xlu0 %v2747, 32
      %v2753 = vpop.permute.xlu0 %2752
      %v2754 = vsel %vm727, %v2751, %v2753
      %v2758 = vmul.f32 %v2623, %v2751
      %v2759 = vmul.f32 %v2619, %v2754
      %v2760 = vmul.f32 %v2624, %v2753
      %v2761 = vlaneseq
      %v2762 = vshrl.u32 %v2761, 7
      %v2763 = vsub.s32 7, %v2762
      %v2764 = vrot.slane %v2608, %v2763
      %v2765 = vlaneseq
      %v2766 = vshrl.u32 %v2765, 7
      %v2767 = vsub.s32 7, %v2766
      %v2768 = vrot.slane %v2609, %v2767
      %2771 = vrot.lane.b32.xlu0 %v2764, 33
      %v2772 = vpop.permute.xlu0 %2771
      %2773 = vrot.lane.b32.xlu0 %v2768, 33
      %v2774 = vpop.permute.xlu0 %2773
      %v2775 = vsel %vm749, %v2772, %v2774
      %v2779 = vmul.f32 %v2623, %v2772
      %v2780 = vmul.f32 %v2619, %v2775
      %v2781 = vmul.f32 %v2624, %v2774
      %v2782 = vlaneseq
      %v2783 = vshrl.u32 %v2782, 7
      %v2784 = vsub.s32 0, %v2783
      %v2785 = vrot.slane %v2610, %v2784
      %v2786 = vlaneseq
      %v2787 = vshrl.u32 %v2786, 7
      %v2788 = vsub.s32 0, %v2787
      %v2789 = vrot.slane %v2611, %v2788
      %2792 = vrot.lane.b32.xlu0 %v2785, 34
      %v2793 = vpop.permute.xlu0 %2792
      %2794 = vrot.lane.b32.xlu0 %v2789, 34
      %v2795 = vpop.permute.xlu0 %2794
      %v2796 = vsel %vm771, %v2793, %v2795
      %v2800 = vmul.f32 %v2623, %v2793
      %v2801 = vmul.f32 %v2619, %v2796
      %v2802 = vmul.f32 %v2624, %v2795
      %2806 = vrot.lane.b32.xlu0 %v2653, 127
      %v2807 = vpop.permute.xlu0 %2806
      %2808 = vrot.lane.b32.xlu0 %v2654, 127
      %v2809 = vpop.permute.xlu0 %2808
      %2810 = vrot.lane.b32.xlu0 %v2655, 127
      %v2811 = vpop.permute.xlu0 %2810
      %v2812 = vsel %vm1494, %v2807, %v2809
      %v2813 = vsel %vm1494, %v2809, %v2811
      %2819 = vrot.lane.b32.xlu0 %v2674, 126
      %v2820 = vpop.permute.xlu0 %2819
      %2821 = vrot.lane.b32.xlu0 %v2675, 126
      %v2822 = vpop.permute.xlu0 %2821
      %2823 = vrot.lane.b32.xlu0 %v2676, 126
      %v2824 = vpop.permute.xlu0 %2823
      %v2825 = vsel %vm1511, %v2820, %v2822
      %v2826 = vsel %vm1511, %v2822, %v2824
      %2832 = vrot.lane.b32.xlu0 %v2695, 112
      %v2833 = vpop.permute.xlu0 %2832
      %2834 = vrot.lane.b32.xlu0 %v2696, 112
      %v2835 = vpop.permute.xlu0 %2834
      %2836 = vrot.lane.b32.xlu0 %v2697, 112
      %v2837 = vpop.permute.xlu0 %2836
      %v2838 = vsel %vm1596, %v2833, %v2835
      %v2839 = vsel %vm1596, %v2835, %v2837
      %2845 = vrot.lane.b32.xlu0 %v2716, 111
      %v2846 = vpop.permute.xlu0 %2845
      %2847 = vrot.lane.b32.xlu0 %v2717, 111
      %v2848 = vpop.permute.xlu0 %2847
      %2849 = vrot.lane.b32.xlu0 %v2718, 111
      %v2850 = vpop.permute.xlu0 %2849
      %v2851 = vsel %vm1610, %v2846, %v2848
      %v2852 = vsel %vm1610, %v2848, %v2850
      %2858 = vrot.lane.b32.xlu0 %v2737, 110
      %v2859 = vpop.permute.xlu0 %2858
      %2860 = vrot.lane.b32.xlu0 %v2738, 110
      %v2861 = vpop.permute.xlu0 %2860
      %2862 = vrot.lane.b32.xlu0 %v2739, 110
      %v2863 = vpop.permute.xlu0 %2862
      %v2864 = vsel %vm1627, %v2859, %v2861
      %v2865 = vsel %vm1627, %v2861, %v2863
      %2871 = vrot.lane.b32.xlu0 %v2758, 96
      %v2872 = vpop.permute.xlu0 %2871
      %2873 = vrot.lane.b32.xlu0 %v2759, 96
      %v2874 = vpop.permute.xlu0 %2873
      %2875 = vrot.lane.b32.xlu0 %v2760, 96
      %v2876 = vpop.permute.xlu0 %2875
      %v2877 = vsel %vm1342, %v2872, %v2874
      %v2878 = vsel %vm1342, %v2874, %v2876
      %2884 = vrot.lane.b32.xlu0 %v2779, 95
      %v2885 = vpop.permute.xlu0 %2884
      %2886 = vrot.lane.b32.xlu0 %v2780, 95
      %v2887 = vpop.permute.xlu0 %2886
      %2888 = vrot.lane.b32.xlu0 %v2781, 95
      %v2889 = vpop.permute.xlu0 %2888
      %v2890 = vsel %vm1728, %v2885, %v2887
      %v2891 = vsel %vm1728, %v2887, %v2889
      %2897 = vrot.lane.b32.xlu0 %v2800, 94
      %v2898 = vpop.permute.xlu0 %2897
      %2899 = vrot.lane.b32.xlu0 %v2801, 94
      %v2900 = vpop.permute.xlu0 %2899
      %2901 = vrot.lane.b32.xlu0 %v2802, 94
      %v2902 = vpop.permute.xlu0 %2901
      %v2903 = vsel %vm2414, %v2898, %v2900
      %v2904 = vsel %vm2414, %v2900, %v2902
      %vm2907 = vcmask 588800
      %v2909 = vsel %vm2907, %v2612, 0
      %2911 = vmatprep.subr.mxu0 0.0
      %2912 = vmatpush1.msra.mxu0 0.0
      %2913 = vmatprep.subr.mxu0 0.0
      %2914 = vmatpush1.msra.mxu0 0.0
      %2915 = vmatprep.subr.mxu0 0.0
      %2916 = vmatpush1.msra.mxu0 0.0
      %2917 = vmatprep.subr.mxu0 0.0
      %2918 = vmatpush1.msra.mxu0 0.0
      %2919 = vmatprep.subr.mxu0 0.0
      %2920 = vmatpush1.msra.mxu0 0.0
      %2921 = vmatprep.subr.mxu0 0.0
      %2922 = vmatpush1.msra.mxu0 0.0
      %2923 = vmatprep.subr.mxu0 0.0
      %2924 = vmatpush1.msra.mxu0 0.0
      %2925 = vmatprep.subr.mxu0 %v2904
      %2926 = vmatpush1.msra.mxu0 %v2903
      %2927 = vmatprep.subr.mxu0 %v2891
      %2928 = vmatpush1.msra.mxu0 %v2890
      %2929 = vmatprep.subr.mxu0 %v2878
      %2930 = vmatpush1.msra.mxu0 %v2877
      %2931 = vmatprep.subr.mxu0 %v2865
      %2932 = vmatpush1.msra.mxu0 %v2864
      %2933 = vmatprep.subr.mxu0 %v2852
      %2934 = vmatpush1.msra.mxu0 %v2851
      %2935 = vmatprep.subr.mxu0 %v2839
      %2936 = vmatpush1.msra.mxu0 %v2838
      %2937 = vmatprep.subr.mxu0 %v2826
      %2938 = vmatpush1.msra.mxu0 %v2825
      %2939 = vmatprep.subr.mxu0 %v2813
      %2940 = vmatpush1.msra.mxu0 %v2812
      %2941 = vmatprep.subr.mxu0 %v2634
      %2942 = vmatpush1.msra.mxu0 %v2633
      %2943 = vmatprep.subr.mxu0 0.0
      %2944 = vmatpush2.msra.mxu0 0.0
      %2945 = vmatprep.subr.mxu0 0.0
      %2946 = vmatpush2.msra.mxu0 0.0
      %2947 = vmatprep.subr.mxu0 0.0
      %2948 = vmatpush2.msra.mxu0 0.0
      %2949 = vmatprep.subr.mxu0 0.0
      %2950 = vmatpush2.msra.mxu0 0.0
      %2951 = vmatprep.subr.mxu0 0.0
      %2952 = vmatpush2.msra.mxu0 0.0
      %2953 = vmatprep.subr.mxu0 0.0
      %2954 = vmatpush2.msra.mxu0 0.0
      %2955 = vmatprep.subr.mxu0 0.0
      %2956 = vmatpush2.msra.mxu0 0.0
      %2957 = vmatprep.subr.mxu0 0.0
      %2958 = vmatpush2.msra.mxu0 0.0
      %2959 = vmatprep.subr.mxu0 0.0
      %2960 = vmatpush2.msra.mxu0 0.0
      %2961 = vmatprep.subr.mxu0 0.0
      %2962 = vmatpush2.msra.mxu0 0.0
      %2963 = vmatprep.subr.mxu0 0.0
      %2964 = vmatpush2.msra.mxu0 0.0
      %2965 = vmatprep.subr.mxu0 0.0
      %2966 = vmatpush2.msra.mxu0 0.0
      %2967 = vmatprep.subr.mxu0 0.0
      %2968 = vmatpush2.msra.mxu0 0.0
      %2969 = vmatprep.subr.mxu0 0.0
      %2970 = vmatpush2.msra.mxu0 0.0
      %2971 = vmatprep.subr.mxu0 0.0
      %2972 = vmatpush2.msra.mxu0 0.0
      %2973 = vmatprep.subr.mxu0 0.0
      %2974 = vmatpush2.msra.mxu0 0.0
      %2975 = vmatprep.mubr.f32.mxu0 0.0
      %2976 = vmatmul.mubr.f32.gmra.mxu0 %v2909
      %v2977 = vpop.f32.mrf.mxu0
      %v2978 = vadd.f32 0.0, %v2977
      %v2979 = vpop.f32.mrf.mxu0
      %v2980 = vadd.f32 0.0, %v2979
      %2981 = vdwg.mxu0
      %vm2982 = vcmp.ge.f32.partialorder %v2978, 0.0
      %vm2983 = vcmp.ge.f32.partialorder %v2980, 0.0
      %v2984 = vmul.f32 %v2978, 0.25
      %v2985 = vmul.f32 %v2980, 0.25
      %v2986 = vsel %vm2982, %v2978, %v2984
      %v2987 = vsel %vm2983, %v2980, %v2985
      %v2988 = vadd.f32 %v2986, %v2604
      %v2989 = vadd.f32 %v2987, %v2606
      %v2990 = vld [vmem:[%s8] sm:$0xff]
      %v2991 = vld [vmem:[%s8 + $0x8] sm:$0xff]
      %v2992 = vld [vmem:[%s8 + $0x10] sm:$0xff]
      %v2993 = vld [vmem:[%s8 + $0x18] sm:$0xff]
      %v2994 = vld [vmem:[%s8 + $0x20] sm:$0xff]
      %v2995 = vld [vmem:[%s8 + $0x28] sm:$0xff]
      %v2996 = vld [vmem:[%s8 + $0x30] sm:$0xff]
      %v2997 = vld [vmem:[%s8 + $0x38] sm:$0xff]
      %v2998 = vld [vmem:[%s8 + $0x40] sm:$0xff]
      %v2999 = vld [vmem:[%s8 + $0x48] sm:$0xff]
      %v3000 = vld [vmem:[%s8 + $0x50] sm:$0xff]
      %v3001 = vld [vmem:[%s8 + $0x58] sm:$0xff]
      %v3002 = vld [vmem:[%s8 + $0x60] sm:$0xff]
      %v3003 = vld [vmem:[%s8 + $0x68] sm:$0xff]
      %v3004 = vld [vmem:[%s8 + $0x70] sm:$0xff]
      %v3005 = vld [vmem:[%s8 + $0x78] sm:$0xff]
      %v3006 = vld [vmem:[%s8 + $0x80] sm:$0xff]
      %v3007 = vld [vmem:[%s8 + $0x88] sm:$0xff]
      %v3008 = vld [vmem:[%s8 + $0x90] sm:$0xff]
      %v3009 = vld [vmem:[%s8 + $0x98] sm:$0xff]
      %v3010 = vld [vmem:[%s8 + $0xa0] sm:$0xff]
      %v3011 = vld [vmem:[%s8 + $0xa8] sm:$0xff]
      %v3012 = vld [vmem:[%s8 + $0xb0] sm:$0xff]
      %v3013 = vld [vmem:[%s8 + $0xb8] sm:$0xff]
      %v3014 = vld [vmem:[%s8 + $0xc0] sm:$0xff]
      %v3015 = vld [vmem:[%s8 + $0xc8] sm:$0xff]
      %v3016 = vld [vmem:[%s8 + $0xd0] sm:$0xff]
      %v3017 = vld [vmem:[%s8 + $0xd8] sm:$0xff]
      %v3018 = vld [vmem:[%s8 + $0xe0] sm:$0xff]
      %v3019 = vld [vmem:[%s8 + $0xe8] sm:$0xff]
      %v3020 = vld [vmem:[%s8 + $0xf0] sm:$0xff]
      %v3021 = vld [vmem:[%s8 + $0xf8] sm:$0xff]
      %3024 = vrot.lane.b32.xlu0 %v2988, 127
      %v3025 = vpop.permute.xlu0 %3024
      %3026 = vrot.lane.b32.xlu0 %v2989, 127
      %v3027 = vpop.permute.xlu0 %3026
      %v3028 = vsel %vm1494, %v3025, %v3027
      %v3031 = vsel %vm1494, %v3027, %v2989
      %v3032 = vmax.f32 %v2988, %v3028
      %v3033 = vmax.f32 %v2989, %v3031
      %3036 = vrot.lane.b32.xlu0 %v3032, 112
      %v3037 = vpop.permute.xlu0 %3036
      %3038 = vrot.lane.b32.xlu0 %v3033, 112
      %v3039 = vpop.permute.xlu0 %3038
      %v3040 = vsel %vm1596, %v3037, %v3039
      %v3043 = vsel %vm1596, %v3039, %v3033
      %v3044 = vmax.f32 %v3032, %v3040
      %v3045 = vmax.f32 %v3033, %v3043
      %3046 = vmatprep.subr.mxu0 0.0
      %3047 = vmatpush1.msra.mxu0 %v3005
      %3048 = vmatprep.subr.mxu0 0.0
      %3049 = vmatpush1.msra.mxu0 %v3004
      %3050 = vmatprep.subr.mxu0 0.0
      %3051 = vmatpush1.msra.mxu0 %v3003
      %3052 = vmatprep.subr.mxu0 0.0
      %3053 = vmatpush1.msra.mxu0 %v3002
      %3054 = vmatprep.subr.mxu0 0.0
      %3055 = vmatpush1.msra.mxu0 %v3001
      %3056 = vmatprep.subr.mxu0 0.0
      %3057 = vmatpush1.msra.mxu0 %v3000
      %3058 = vmatprep.subr.mxu0 0.0
      %3059 = vmatpush1.msra.mxu0 %v2999
      %3060 = vmatprep.subr.mxu0 0.0
      %3061 = vmatpush1.msra.mxu0 %v2998
      %3062 = vmatprep.subr.mxu0 0.0
      %3063 = vmatpush1.msra.mxu0 %v2997
      %3064 = vmatprep.subr.mxu0 0.0
      %3065 = vmatpush1.msra.mxu0 %v2996
      %3066 = vmatprep.subr.mxu0 0.0
      %3067 = vmatpush1.msra.mxu0 %v2995
      %3068 = vmatprep.subr.mxu0 0.0
      %3069 = vmatpush1.msra.mxu0 %v2994
      %3070 = vmatprep.subr.mxu0 0.0
      %3071 = vmatpush1.msra.mxu0 %v2993
      %3072 = vmatprep.subr.mxu0 0.0
      %3073 = vmatpush1.msra.mxu0 %v2992
      %3074 = vmatprep.subr.mxu0 0.0
      %3075 = vmatpush1.msra.mxu0 %v2991
      %3076 = vmatprep.subr.mxu0 0.0
      %3077 = vmatpush1.msra.mxu0 %v2990
      %3078 = vmatprep.subr.mxu0 0.0
      %3079 = vmatpush2.msra.mxu0 %v3021
      %3080 = vmatprep.subr.mxu0 0.0
      %3081 = vmatpush2.msra.mxu0 %v3020
      %3082 = vmatprep.subr.mxu0 0.0
      %3083 = vmatpush2.msra.mxu0 %v3019
      %3084 = vmatprep.subr.mxu0 0.0
      %3085 = vmatpush2.msra.mxu0 %v3018
      %3086 = vmatprep.subr.mxu0 0.0
      %3087 = vmatpush2.msra.mxu0 %v3017
      %3088 = vmatprep.subr.mxu0 0.0
      %3089 = vmatpush2.msra.mxu0 %v3016
      %3090 = vmatprep.subr.mxu0 0.0
      %3091 = vmatpush2.msra.mxu0 %v3015
      %3092 = vmatprep.subr.mxu0 0.0
      %3093 = vmatpush2.msra.mxu0 %v3014
      %3094 = vmatprep.subr.mxu0 0.0
      %3095 = vmatpush2.msra.mxu0 %v3013
      %3096 = vmatprep.subr.mxu0 0.0
      %3097 = vmatpush2.msra.mxu0 %v3012
      %3098 = vmatprep.subr.mxu0 0.0
      %3099 = vmatpush2.msra.mxu0 %v3011
      %3100 = vmatprep.subr.mxu0 0.0
      %3101 = vmatpush2.msra.mxu0 %v3010
      %3102 = vmatprep.subr.mxu0 0.0
      %3103 = vmatpush2.msra.mxu0 %v3009
      %3104 = vmatprep.subr.mxu0 0.0
      %3105 = vmatpush2.msra.mxu0 %v3008
      %3106 = vmatprep.subr.mxu0 0.0
      %3107 = vmatpush2.msra.mxu0 %v3007
      %3108 = vmatprep.subr.mxu0 0.0
      %3109 = vmatpush2.msra.mxu0 %v3006
      %3110 = vmatprep.mubr.f32.mxu0 %v3045
      %3111 = vmatmul.mubr.f32.gmra.mxu0 %v3044
      %v3112 = vpop.f32.mrf.mxu0
      %v3113 = vadd.f32 0.0, %v3112
      %v3114 = vpop.f32.mrf.mxu0
      %3115 = vdwg.mxu0
      %v3116 = vld [vmem:[%s9] sm:$0xff]
      %v3117 = vld [vmem:[%s9 + $0x8] sm:$0x1]
      %v3118 = vld [vmem:[%s3] sm:$0xff]
      %v3119 = vld [vmem:[%s3 + $0x8] sm:$0xff]
      %3121 = vrot.lane.b32.xlu0 %v3113, 9
      %v3122 = vpop.permute.xlu0 %3121
      %vm3124 = vcmask 72704
      %v3125 = vsel %vm3124, 0.0, %v3122
      %vm3126 = vcmask 596992
      %v3127 = vsel %vm3126, %v3125, 0.0
      %v3128 = vlaneseq
      %v3129 = vshrl.u32 %v3128, 7
      %v3130 = vsub.s32 0, %v3129
      %v3131 = vrot.slane %v3116, %v3130
      %v3132 = vmul.f32 %v3127, %v3131
      %v3133 = vlaneseq
      %v3134 = vshrl.u32 %v3133, 7
      %v3135 = vsub.s32 1, %v3134
      %v3136 = vrot.slane %v3116, %v3135
      %3138 = vrot.lane.b32.xlu0 %v3136, 1
      %v3139 = vpop.permute.xlu0 %3138
      %v3141 = vmul.f32 %v3127, %v3139
      %v3142 = vlaneseq
      %v3143 = vshrl.u32 %v3142, 7
      %v3144 = vsub.s32 2, %v3143
      %v3145 = vrot.slane %v3116, %v3144
      %3147 = vrot.lane.b32.xlu0 %v3145, 2
      %v3148 = vpop.permute.xlu0 %3147
      %v3150 = vmul.f32 %v3127, %v3148
      %v3151 = vlaneseq
      %v3152 = vshrl.u32 %v3151, 7
      %v3153 = vsub.s32 3, %v3152
      %v3154 = vrot.slane %v3116, %v3153
      %3156 = vrot.lane.b32.xlu0 %v3154, 8
      %v3157 = vpop.permute.xlu0 %3156
      %v3159 = vmul.f32 %v3127, %v3157
      %v3160 = vlaneseq
      %v3161 = vshrl.u32 %v3160, 7
      %v3162 = vsub.s32 4, %v3161
      %v3163 = vrot.slane %v3116, %v3162
      %3165 = vrot.lane.b32.xlu0 %v3163, 9
      %v3166 = vpop.permute.xlu0 %3165
      %v3168 = vmul.f32 %v3127, %v3166
      %v3169 = vlaneseq
      %v3170 = vshrl.u32 %v3169, 7
      %v3171 = vsub.s32 5, %v3170
      %v3172 = vrot.slane %v3116, %v3171
      %3174 = vrot.lane.b32.xlu0 %v3172, 10
      %v3175 = vpop.permute.xlu0 %3174
      %v3177 = vmul.f32 %v3127, %v3175
      %v3178 = vlaneseq
      %v3179 = vshrl.u32 %v3178, 7
      %v3180 = vsub.s32 6, %v3179
      %v3181 = vrot.slane %v3116, %v3180
      %3183 = vrot.lane.b32.xlu0 %v3181, 16
      %v3184 = vpop.permute.xlu0 %3183
      %v3186 = vmul.f32 %v3127, %v3184
      %v3187 = vlaneseq
      %v3188 = vshrl.u32 %v3187, 7
      %v3189 = vsub.s32 7, %v3188
      %v3190 = vrot.slane %v3116, %v3189
      %3192 = vrot.lane.b32.xlu0 %v3190, 17
      %v3193 = vpop.permute.xlu0 %3192
      %v3195 = vmul.f32 %v3127, %v3193
      %v3196 = vlaneseq
      %v3197 = vshrl.u32 %v3196, 7
      %v3198 = vsub.s32 0, %v3197
      %v3199 = vrot.slane %v3117, %v3198
      %3201 = vrot.lane.b32.xlu0 %v3199, 18
      %v3202 = vpop.permute.xlu0 %3201
      %v3204 = vmul.f32 %v3127, %v3202
      %3206 = vrot.lane.b32.xlu0 %v3141, 127
      %v3207 = vpop.permute.xlu0 %3206
      %3210 = vrot.lane.b32.xlu0 %v3150, 126
      %v3211 = vpop.permute.xlu0 %3210
      %3214 = vrot.lane.b32.xlu0 %v3159, 120
      %v3215 = vpop.permute.xlu0 %3214
      %3218 = vrot.lane.b32.xlu0 %v3168, 119
      %v3219 = vpop.permute.xlu0 %3218
      %3222 = vrot.lane.b32.xlu0 %v3177, 118
      %v3223 = vpop.permute.xlu0 %3222
      %3226 = vrot.lane.b32.xlu0 %v3186, 112
      %v3227 = vpop.permute.xlu0 %3226
      %3230 = vrot.lane.b32.xlu0 %v3195, 111
      %v3231 = vpop.permute.xlu0 %3230
      %3234 = vrot.lane.b32.xlu0 %v3204, 110
      %v3235 = vpop.permute.xlu0 %3234
      %v3238 = vsel %vm2907, %v3118, 0
      %v3241 = vsel %vm2907, %v3119, 0
      %3243 = vmatprep.subr.mxu0 0.0
      %3244 = vmatpush1.msra.mxu0 0.0
      %3245 = vmatprep.subr.mxu0 0.0
      %3246 = vmatpush1.msra.mxu0 0.0
      %3247 = vmatprep.subr.mxu0 0.0
      %3248 = vmatpush1.msra.mxu0 0.0
      %3249 = vmatprep.subr.mxu0 0.0
      %3250 = vmatpush1.msra.mxu0 0.0
      %3251 = vmatprep.subr.mxu0 0.0
      %3252 = vmatpush1.msra.mxu0 0.0
      %3253 = vmatprep.subr.mxu0 0.0
      %3254 = vmatpush1.msra.mxu0 0.0
      %3255 = vmatprep.subr.mxu0 0.0
      %3256 = vmatpush1.msra.mxu0 0.0
      %3257 = vmatprep.subr.mxu0 0.0
      %3258 = vmatpush1.msra.mxu0 %v3235
      %3259 = vmatprep.subr.mxu0 0.0
      %3260 = vmatpush1.msra.mxu0 %v3231
      %3261 = vmatprep.subr.mxu0 0.0
      %3262 = vmatpush1.msra.mxu0 %v3227
      %3263 = vmatprep.subr.mxu0 0.0
      %3264 = vmatpush1.msra.mxu0 %v3223
      %3265 = vmatprep.subr.mxu0 0.0
      %3266 = vmatpush1.msra.mxu0 %v3219
      %3267 = vmatprep.subr.mxu0 0.0
      %3268 = vmatpush1.msra.mxu0 %v3215
      %3269 = vmatprep.subr.mxu0 0.0
      %3270 = vmatpush1.msra.mxu0 %v3211
      %3271 = vmatprep.subr.mxu0 0.0
      %3272 = vmatpush1.msra.mxu0 %v3207
      %3273 = vmatprep.subr.mxu0 0.0
      %3274 = vmatpush1.msra.mxu0 %v3132
      %3275 = vmatprep.subr.mxu0 0.0
      %3276 = vmatpush2.msra.mxu0 0.0
      %3277 = vmatprep.subr.mxu0 0.0
      %3278 = vmatpush2.msra.mxu0 0.0
      %3279 = vmatprep.subr.mxu0 0.0
      %3280 = vmatpush2.msra.mxu0 0.0
      %3281 = vmatprep.subr.mxu0 0.0
      %3282 = vmatpush2.msra.mxu0 0.0
      %3283 = vmatprep.subr.mxu0 0.0
      %3284 = vmatpush2.msra.mxu0 0.0
      %3285 = vmatprep.subr.mxu0 0.0
      %3286 = vmatpush2.msra.mxu0 0.0
      %3287 = vmatprep.subr.mxu0 0.0
      %3288 = vmatpush2.msra.mxu0 0.0
      %3289 = vmatprep.subr.mxu0 0.0
      %3290 = vmatpush2.msra.mxu0 0.0
      %3291 = vmatprep.subr.mxu0 0.0
      %3292 = vmatpush2.msra.mxu0 0.0
      %3293 = vmatprep.subr.mxu0 0.0
      %3294 = vmatpush2.msra.mxu0 0.0
      %3295 = vmatprep.subr.mxu0 0.0
      %3296 = vmatpush2.msra.mxu0 0.0
      %3297 = vmatprep.subr.mxu0 0.0
      %3298 = vmatpush2.msra.mxu0 0.0
      %3299 = vmatprep.subr.mxu0 0.0
      %3300 = vmatpush2.msra.mxu0 0.0
      %3301 = vmatprep.subr.mxu0 0.0
      %3302 = vmatpush2.msra.mxu0 0.0
      %3303 = vmatprep.subr.mxu0 0.0
      %3304 = vmatpush2.msra.mxu0 0.0
      %3305 = vmatprep.subr.mxu0 0.0
      %3306 = vmatpush2.msra.mxu0 0.0
      %3307 = vmatprep.mubr.f32.mxu0 0.0
      %3308 = vmatmul.mubr.f32.gmra.mxu0 %v3238
      %v3309 = vpop.f32.mrf.mxu0
      %v3310 = vadd.f32 0.0, %v3309
      %v3311 = vpop.f32.mrf.mxu0
      %3312 = vmatprep.mubr.f32.mxu0 0.0
      %3313 = vmatmul.mubr.f32.gmra.mxu0 %v3241
      %v3314 = vpop.f32.mrf.mxu0
      %v3315 = vadd.f32 0.0, %v3314
      %v3316 = vpop.f32.mrf.mxu0
      %3317 = vdwg.mxu0
      %vm3318 = vcmp.ge.f32.partialorder %v3310, 0.0
      %vm3319 = vcmp.ge.f32.partialorder %v3315, 0.0
      %v3320 = vmul.f32 %v3310, 0.25
      %v3321 = vmul.f32 %v3315, 0.25
      %v3322 = vsel %vm3318, %v3310, %v3320
      %v3323 = vsel %vm3319, %v3315, %v3321
      %v3324 = vld [vmem:[%s10] sm:$0xff]
      %v3325 = vld [vmem:[%s10 + $0x8] sm:$0xff]
      %v3326 = vld [vmem:[%s10 + $0x10] sm:$0xff]
      %v3327 = vld [vmem:[%s10 + $0x18] sm:$0xff]
      %v3328 = vld [vmem:[%s10 + $0x20] sm:$0xff]
      %v3329 = vld [vmem:[%s10 + $0x28] sm:$0xff]
      %v3330 = vld [vmem:[%s10 + $0x30] sm:$0xff]
      %v3331 = vld [vmem:[%s10 + $0x38] sm:$0xff]
      %v3332 = vld [vmem:[%s10 + $0x40] sm:$0xff]
      %v3333 = vld [vmem:[%s10 + $0x48] sm:$0xff]
      %v3334 = vld [vmem:[%s10 + $0x50] sm:$0xff]
      %v3335 = vld [vmem:[%s10 + $0x58] sm:$0xff]
      %v3336 = vld [vmem:[%s10 + $0x60] sm:$0xff]
      %v3337 = vld [vmem:[%s10 + $0x68] sm:$0xff]
      %v3338 = vld [vmem:[%s10 + $0x70] sm:$0xff]
      %v3339 = vld [vmem:[%s10 + $0x78] sm:$0xff]
      %v3341 = vsel %vm1034, %v3322, 0
      %v3344 = vsel %vm1034, %v3323, 0
      %3346 = vmatprep.subr.mxu0 0.0
      %3347 = vmatpush1.msra.mxu0 0.0
      %3348 = vmatprep.subr.mxu0 0.0
      %3349 = vmatpush1.msra.mxu0 0.0
      %3350 = vmatprep.subr.mxu0 0.0
      %3351 = vmatpush1.msra.mxu0 0.0
      %3352 = vmatprep.subr.mxu0 0.0
      %3353 = vmatpush1.msra.mxu0 0.0
      %3354 = vmatprep.subr.mxu0 0.0
      %3355 = vmatpush1.msra.mxu0 0.0
      %3356 = vmatprep.subr.mxu0 0.0
      %3357 = vmatpush1.msra.mxu0 0.0
      %3358 = vmatprep.subr.mxu0 0.0
      %3359 = vmatpush1.msra.mxu0 0.0
      %3360 = vmatprep.subr.mxu0 0.0
      %3361 = vmatpush1.msra.mxu0 0.0
      %3362 = vmatprep.subr.mxu0 %v3339
      %3363 = vmatpush1.msra.mxu0 %v3338
      %3364 = vmatprep.subr.mxu0 %v3337
      %3365 = vmatpush1.msra.mxu0 %v3336
      %3366 = vmatprep.subr.mxu0 %v3335
      %3367 = vmatpush1.msra.mxu0 %v3334
      %3368 = vmatprep.subr.mxu0 %v3333
      %3369 = vmatpush1.msra.mxu0 %v3332
      %3370 = vmatprep.subr.mxu0 %v3331
      %3371 = vmatpush1.msra.mxu0 %v3330
      %3372 = vmatprep.subr.mxu0 %v3329
      %3373 = vmatpush1.msra.mxu0 %v3328
      %3374 = vmatprep.subr.mxu0 %v3327
      %3375 = vmatpush1.msra.mxu0 %v3326
      %3376 = vmatprep.subr.mxu0 %v3325
      %3377 = vmatpush1.msra.mxu0 %v3324
      %3378 = vmatprep.subr.mxu0 0.0
      %3379 = vmatpush2.msra.mxu0 0.0
      %3380 = vmatprep.subr.mxu0 0.0
      %3381 = vmatpush2.msra.mxu0 0.0
      %3382 = vmatprep.subr.mxu0 0.0
      %3383 = vmatpush2.msra.mxu0 0.0
      %3384 = vmatprep.subr.mxu0 0.0
      %3385 = vmatpush2.msra.mxu0 0.0
      %3386 = vmatprep.subr.mxu0 0.0
      %3387 = vmatpush2.msra.mxu0 0.0
      %3388 = vmatprep.subr.mxu0 0.0
      %3389 = vmatpush2.msra.mxu0 0.0
      %3390 = vmatprep.subr.mxu0 0.0
      %3391 = vmatpush2.msra.mxu0 0.0
      %3392 = vmatprep.subr.mxu0 0.0
      %3393 = vmatpush2.msra.mxu0 0.0
      %3394 = vmatprep.subr.mxu0 0.0
      %3395 = vmatpush2.msra.mxu0 0.0
      %3396 = vmatprep.subr.mxu0 0.0
      %3397 = vmatpush2.msra.mxu0 0.0
      %3398 = vmatprep.subr.mxu0 0.0
      %3399 = vmatpush2.msra.mxu0 0.0
      %3400 = vmatprep.subr.mxu0 0.0
      %3401 = vmatpush2.msra.mxu0 0.0
      %3402 = vmatprep.subr.mxu0 0.0
      %3403 = vmatpush2.msra.mxu0 0.0
      %3404 = vmatprep.subr.mxu0 0.0
      %3405 = vmatpush2.msra.mxu0 0.0
      %3406 = vmatprep.subr.mxu0 0.0
      %3407 = vmatpush2.msra.mxu0 0.0
      %3408 = vmatprep.subr.mxu0 0.0
      %3409 = vmatpush2.msra.mxu0 0.0
      %3410 = vmatprep.mubr.f32.mxu0 0.0
      %3411 = vmatmul.mubr.f32.gmra.mxu0 %v3341
      %v3412 = vpop.f32.mrf.mxu0
      %v3413 = vadd.f32 0.0, %v3412
      %v3414 = vpop.f32.mrf.mxu0
      %v3415 = vadd.f32 0.0, %v3414
      %3416 = vmatprep.mubr.f32.mxu0 0.0
      %3417 = vmatmul.mubr.f32.gmra.mxu0 %v3344
      %v3418 = vpop.f32.mrf.mxu0
      %v3419 = vadd.f32 0.0, %v3418
      %v3420 = vpop.f32.mrf.mxu0
      %v3421 = vadd.f32 0.0, %v3420
      %3422 = vdwg.mxu0
      %v3423 = vld [vmem:[%s4] sm:$0xff]
      %v3424 = vld [vmem:[%s4 + $0x8] sm:$0xff]
      %3429 = vrot.lane.b32.xlu0 %v3413, 17
      %v3430 = vpop.permute.xlu0 %3429
      %3431 = vrot.lane.b32.xlu0 %v3415, 17
      %v3432 = vpop.permute.xlu0 %3431
      %3433 = vrot.lane.b32.xlu0 %v3419, 17
      %v3434 = vpop.permute.xlu0 %3433
      %3435 = vrot.lane.b32.xlu0 %v3421, 17
      %v3436 = vpop.permute.xlu0 %3435
      %3437 = vrot.lane.b32.xlu0 %v2988, 17
      %v3438 = vpop.permute.xlu0 %3437
      %3439 = vrot.lane.b32.xlu0 %v2989, 17
      %v3440 = vpop.permute.xlu0 %3439
      %v3441 = vsel %vm595, %v3430, %v3432
      %v3442 = vsel %vm595, %v3434, %v3436
      %v3443 = vsel %vm595, %v3438, %v3440
      %v3453 = vsel %vm595, 0.0, %v3430
      %v3454 = vsel %vm595, 0.0, %v3434
      %v3455 = vsel %vm595, 0.0, %v3438
      %v3456 = vsel %vm595, %v3432, 0.0
      %v3457 = vsel %vm595, %v3436, 0.0
      %v3458 = vsel %vm595, %v3440, 0.0
      %v3459 = vmul.f32 %v3453, %v2628
      %v3460 = vmul.f32 %v3441, %v2632
      %v3461 = vmul.f32 %v3454, %v2628
      %v3462 = vmul.f32 %v3442, %v2632
      %v3463 = vmul.f32 %v3455, %v2628
      %v3464 = vmul.f32 %v3443, %v2632
      %v3465 = vmul.f32 %v3453, %v2646
      %v3466 = vmul.f32 %v3441, %v2649
      %v3467 = vmul.f32 %v3456, %v2648
      %v3468 = vmul.f32 %v3454, %v2646
      %v3469 = vmul.f32 %v3442, %v2649
      %v3470 = vmul.f32 %v3457, %v2648
      %v3471 = vmul.f32 %v3455, %v2646
      %v3472 = vmul.f32 %v3443, %v2649
      %v3473 = vmul.f32 %v3458, %v2648
      %v3474 = vmul.f32 %v3453, %v2667
      %v3475 = vmul.f32 %v3441, %v2670
      %v3476 = vmul.f32 %v3456, %v2669
      %v3477 = vmul.f32 %v3454, %v2667
      %v3478 = vmul.f32 %v3442, %v2670
      %v3479 = vmul.f32 %v3457, %v2669
      %v3480 = vmul.f32 %v3455, %v2667
      %v3481 = vmul.f32 %v3443, %v2670
      %v3482 = vmul.f32 %v3458, %v2669
      %v3483 = vmul.f32 %v3453, %v2688
      %v3484 = vmul.f32 %v3441, %v2691
      %v3485 = vmul.f32 %v3456, %v2690
      %v3486 = vmul.f32 %v3454, %v2688
      %v3487 = vmul.f32 %v3442, %v2691
      %v3488 = vmul.f32 %v3457, %v2690
      %v3489 = vmul.f32 %v3455, %v2688
      %v3490 = vmul.f32 %v3443, %v2691
      %v3491 = vmul.f32 %v3458, %v2690
      %v3492 = vmul.f32 %v3453, %v2709
      %v3493 = vmul.f32 %v3441, %v2712
      %v3494 = vmul.f32 %v3456, %v2711
      %v3495 = vmul.f32 %v3454, %v2709
      %v3496 = vmul.f32 %v3442, %v2712
      %v3497 = vmul.f32 %v3457, %v2711
      %v3498 = vmul.f32 %v3455, %v2709
      %v3499 = vmul.f32 %v3443, %v2712
      %v3500 = vmul.f32 %v3458, %v2711
      %v3501 = vmul.f32 %v3453, %v2730
      %v3502 = vmul.f32 %v3441, %v2733
      %v3503 = vmul.f32 %v3456, %v2732
      %v3504 = vmul.f32 %v3454, %v2730
      %v3505 = vmul.f32 %v3442, %v2733
      %v3506 = vmul.f32 %v3457, %v2732
      %v3507 = vmul.f32 %v3455, %v2730
      %v3508 = vmul.f32 %v3443, %v2733
      %v3509 = vmul.f32 %v3458, %v2732
      %v3510 = vmul.f32 %v3453, %v2751
      %v3511 = vmul.f32 %v3441, %v2754
      %v3512 = vmul.f32 %v3456, %v2753
      %v3513 = vmul.f32 %v3454, %v2751
      %v3514 = vmul.f32 %v3442, %v2754
      %v3515 = vmul.f32 %v3457, %v2753
      %v3516 = vmul.f32 %v3455, %v2751
      %v3517 = vmul.f32 %v3443, %v2754
      %v3518 = vmul.f32 %v3458, %v2753
      %v3519 = vmul.f32 %v3453, %v2772
      %v3520 = vmul.f32 %v3441, %v2775
      %v3521 = vmul.f32 %v3456, %v2774
      %v3522 = vmul.f32 %v3454, %v2772
      %v3523 = vmul.f32 %v3442, %v2775
      %v3524 = vmul.f32 %v3457, %v2774
      %v3525 = vmul.f32 %v3455, %v2772
      %v3526 = vmul.f32 %v3443, %v2775
      %v3527 = vmul.f32 %v3458, %v2774
      %v3528 = vmul.f32 %v3453, %v2793
      %v3529 = vmul.f32 %v3441, %v2796
      %v3530 = vmul.f32 %v3456, %v2795
      %v3531 = vmul.f32 %v3454, %v2793
      %v3532 = vmul.f32 %v3442, %v2796
      %v3533 = vmul.f32 %v3457, %v2795
      %v3534 = vmul.f32 %v3455, %v2793
      %v3535 = vmul.f32 %v3443, %v2796
      %v3536 = vmul.f32 %v3458, %v2795
      %3546 = vrot.lane.b32.xlu0 %v3465, 127
      %v3547 = vpop.permute.xlu0 %3546
      %3548 = vrot.lane.b32.xlu0 %v3466, 127
      %v3549 = vpop.permute.xlu0 %3548
      %3550 = vrot.lane.b32.xlu0 %v3467, 127
      %v3551 = vpop.permute.xlu0 %3550
      %3552 = vrot.lane.b32.xlu0 %v3468, 127
      %v3553 = vpop.permute.xlu0 %3552
      %3554 = vrot.lane.b32.xlu0 %v3469, 127
      %v3555 = vpop.permute.xlu0 %3554
      %3556 = vrot.lane.b32.xlu0 %v3470, 127
      %v3557 = vpop.permute.xlu0 %3556
      %3558 = vrot.lane.b32.xlu0 %v3471, 127
      %v3559 = vpop.permute.xlu0 %3558
      %3560 = vrot.lane.b32.xlu0 %v3472, 127
      %v3561 = vpop.permute.xlu0 %3560
      %3562 = vrot.lane.b32.xlu0 %v3473, 127
      %v3563 = vpop.permute.xlu0 %3562
      %v3564 = vsel %vm1494, %v3547, %v3549
      %v3565 = vsel %vm1494, %v3549, %v3551
      %v3566 = vsel %vm1494, %v3553, %v3555
      %v3567 = vsel %vm1494, %v3555, %v3557
      %v3568 = vsel %vm1494, %v3559, %v3561
      %v3569 = vsel %vm1494, %v3561, %v3563
      %3585 = vrot.lane.b32.xlu0 %v3474, 126
      %v3586 = vpop.permute.xlu0 %3585
      %3587 = vrot.lane.b32.xlu0 %v3475, 126
      %v3588 = vpop.permute.xlu0 %3587
      %3589 = vrot.lane.b32.xlu0 %v3476, 126
      %v3590 = vpop.permute.xlu0 %3589
      %3591 = vrot.lane.b32.xlu0 %v3477, 126
      %v3592 = vpop.permute.xlu0 %3591
      %3593 = vrot.lane.b32.xlu0 %v3478, 126
      %v3594 = vpop.permute.xlu0 %3593
      %3595 = vrot.lane.b32.xlu0 %v3479, 126
      %v3596 = vpop.permute.xlu0 %3595
      %3597 = vrot.lane.b32.xlu0 %v3480, 126
      %v3598 = vpop.permute.xlu0 %3597
      %3599 = vrot.lane.b32.xlu0 %v3481, 126
      %v3600 = vpop.permute.xlu0 %3599
      %3601 = vrot.lane.b32.xlu0 %v3482, 126
      %v3602 = vpop.permute.xlu0 %3601
      %v3603 = vsel %vm1511, %v3586, %v3588
      %v3604 = vsel %vm1511, %v3588, %v3590
      %v3605 = vsel %vm1511, %v3592, %v3594
      %v3606 = vsel %vm1511, %v3594, %v3596
      %v3607 = vsel %vm1511, %v3598, %v3600
      %v3608 = vsel %vm1511, %v3600, %v3602
      %3624 = vrot.lane.b32.xlu0 %v3483, 112
      %v3625 = vpop.permute.xlu0 %3624
      %3626 = vrot.lane.b32.xlu0 %v3484, 112
      %v3627 = vpop.permute.xlu0 %3626
      %3628 = vrot.lane.b32.xlu0 %v3485, 112
      %v3629 = vpop.permute.xlu0 %3628
      %3630 = vrot.lane.b32.xlu0 %v3486, 112
      %v3631 = vpop.permute.xlu0 %3630
      %3632 = vrot.lane.b32.xlu0 %v3487, 112
      %v3633 = vpop.permute.xlu0 %3632
      %3634 = vrot.lane.b32.xlu0 %v3488, 112
      %v3635 = vpop.permute.xlu0 %3634
      %3636 = vrot.lane.b32.xlu0 %v3489, 112
      %v3637 = vpop.permute.xlu0 %3636
      %3638 = vrot.lane.b32.xlu0 %v3490, 112
      %v3639 = vpop.permute.xlu0 %3638
      %3640 = vrot.lane.b32.xlu0 %v3491, 112
      %v3641 = vpop.permute.xlu0 %3640
      %v3642 = vsel %vm1596, %v3625, %v3627
      %v3643 = vsel %vm1596, %v3627, %v3629
      %v3644 = vsel %vm1596, %v3631, %v3633
      %v3645 = vsel %vm1596, %v3633, %v3635
      %v3646 = vsel %vm1596, %v3637, %v3639
      %v3647 = vsel %vm1596, %v3639, %v3641
      %3663 = vrot.lane.b32.xlu0 %v3492, 111
      %v3664 = vpop.permute.xlu0 %3663
      %3665 = vrot.lane.b32.xlu0 %v3493, 111
      %v3666 = vpop.permute.xlu0 %3665
      %3667 = vrot.lane.b32.xlu0 %v3494, 111
      %v3668 = vpop.permute.xlu0 %3667
      %3669 = vrot.lane.b32.xlu0 %v3495, 111
      %v3670 = vpop.permute.xlu0 %3669
      %3671 = vrot.lane.b32.xlu0 %v3496, 111
      %v3672 = vpop.permute.xlu0 %3671
      %3673 = vrot.lane.b32.xlu0 %v3497, 111
      %v3674 = vpop.permute.xlu0 %3673
      %3675 = vrot.lane.b32.xlu0 %v3498, 111
      %v3676 = vpop.permute.xlu0 %3675
      %3677 = vrot.lane.b32.xlu0 %v3499, 111
      %v3678 = vpop.permute.xlu0 %3677
      %3679 = vrot.lane.b32.xlu0 %v3500, 111
      %v3680 = vpop.permute.xlu0 %3679
      %v3681 = vsel %vm1610, %v3664, %v3666
      %v3682 = vsel %vm1610, %v3666, %v3668
      %v3683 = vsel %vm1610, %v3670, %v3672
      %v3684 = vsel %vm1610, %v3672, %v3674
      %v3685 = vsel %vm1610, %v3676, %v3678
      %v3686 = vsel %vm1610, %v3678, %v3680
      %3702 = vrot.lane.b32.xlu0 %v3501, 110
      %v3703 = vpop.permute.xlu0 %3702
      %3704 = vrot.lane.b32.xlu0 %v3502, 110
      %v3705 = vpop.permute.xlu0 %3704
      %3706 = vrot.lane.b32.xlu0 %v3503, 110
      %v3707 = vpop.permute.xlu0 %3706
      %3708 = vrot.lane.b32.xlu0 %v3504, 110
      %v3709 = vpop.permute.xlu0 %3708
      %3710 = vrot.lane.b32.xlu0 %v3505, 110
      %v3711 = vpop.permute.xlu0 %3710
      %3712 = vrot.lane.b32.xlu0 %v3506, 110
      %v3713 = vpop.permute.xlu0 %3712
      %3714 = vrot.lane.b32.xlu0 %v3507, 110
      %v3715 = vpop.permute.xlu0 %3714
      %3716 = vrot.lane.b32.xlu0 %v3508, 110
      %v3717 = vpop.permute.xlu0 %3716
      %3718 = vrot.lane.b32.xlu0 %v3509, 110
      %v3719 = vpop.permute.xlu0 %3718
      %v3720 = vsel %vm1627, %v3703, %v3705
      %v3721 = vsel %vm1627, %v3705, %v3707
      %v3722 = vsel %vm1627, %v3709, %v3711
      %v3723 = vsel %vm1627, %v3711, %v3713
      %v3724 = vsel %vm1627, %v3715, %v3717
      %v3725 = vsel %vm1627, %v3717, %v3719
      %3741 = vrot.lane.b32.xlu0 %v3510, 96
      %v3742 = vpop.permute.xlu0 %3741
      %3743 = vrot.lane.b32.xlu0 %v3511, 96
      %v3744 = vpop.permute.xlu0 %3743
      %3745 = vrot.lane.b32.xlu0 %v3512, 96
      %v3746 = vpop.permute.xlu0 %3745
      %3747 = vrot.lane.b32.xlu0 %v3513, 96
      %v3748 = vpop.permute.xlu0 %3747
      %3749 = vrot.lane.b32.xlu0 %v3514, 96
      %v3750 = vpop.permute.xlu0 %3749
      %3751 = vrot.lane.b32.xlu0 %v3515, 96
      %v3752 = vpop.permute.xlu0 %3751
      %3753 = vrot.lane.b32.xlu0 %v3516, 96
      %v3754 = vpop.permute.xlu0 %3753
      %3755 = vrot.lane.b32.xlu0 %v3517, 96
      %v3756 = vpop.permute.xlu0 %3755
      %3757 = vrot.lane.b32.xlu0 %v3518, 96
      %v3758 = vpop.permute.xlu0 %3757
      %v3759 = vsel %vm1342, %v3742, %v3744
      %v3760 = vsel %vm1342, %v3744, %v3746
      %v3761 = vsel %vm1342, %v3748, %v3750
      %v3762 = vsel %vm1342, %v3750, %v3752
      %v3763 = vsel %vm1342, %v3754, %v3756
      %v3764 = vsel %vm1342, %v3756, %v3758
      %3780 = vrot.lane.b32.xlu0 %v3519, 95
      %v3781 = vpop.permute.xlu0 %3780
      %3782 = vrot.lane.b32.xlu0 %v3520, 95
      %v3783 = vpop.permute.xlu0 %3782
      %3784 = vrot.lane.b32.xlu0 %v3521, 95
      %v3785 = vpop.permute.xlu0 %3784
      %3786 = vrot.lane.b32.xlu0 %v3522, 95
      %v3787 = vpop.permute.xlu0 %3786
      %3788 = vrot.lane.b32.xlu0 %v3523, 95
      %v3789 = vpop.permute.xlu0 %3788
      %3790 = vrot.lane.b32.xlu0 %v3524, 95
      %v3791 = vpop.permute.xlu0 %3790
      %3792 = vrot.lane.b32.xlu0 %v3525, 95
      %v3793 = vpop.permute.xlu0 %3792
      %3794 = vrot.lane.b32.xlu0 %v3526, 95
      %v3795 = vpop.permute.xlu0 %3794
      %3796 = vrot.lane.b32.xlu0 %v3527, 95
      %v3797 = vpop.permute.xlu0 %3796
      %v3798 = vsel %vm1728, %v3781, %v3783
      %v3799 = vsel %vm1728, %v3783, %v3785
      %v3800 = vsel %vm1728, %v3787, %v3789
      %v3801 = vsel %vm1728, %v3789, %v3791
      %v3802 = vsel %vm1728, %v3793, %v3795
      %v3803 = vsel %vm1728, %v3795, %v3797
      %3819 = vrot.lane.b32.xlu0 %v3528, 94
      %v3820 = vpop.permute.xlu0 %3819
      %3821 = vrot.lane.b32.xlu0 %v3529, 94
      %v3822 = vpop.permute.xlu0 %3821
      %3823 = vrot.lane.b32.xlu0 %v3530, 94
      %v3824 = vpop.permute.xlu0 %3823
      %3825 = vrot.lane.b32.xlu0 %v3531, 94
      %v3826 = vpop.permute.xlu0 %3825
      %3827 = vrot.lane.b32.xlu0 %v3532, 94
      %v3828 = vpop.permute.xlu0 %3827
      %3829 = vrot.lane.b32.xlu0 %v3533, 94
      %v3830 = vpop.permute.xlu0 %3829
      %3831 = vrot.lane.b32.xlu0 %v3534, 94
      %v3832 = vpop.permute.xlu0 %3831
      %3833 = vrot.lane.b32.xlu0 %v3535, 94
      %v3834 = vpop.permute.xlu0 %3833
      %3835 = vrot.lane.b32.xlu0 %v3536, 94
      %v3836 = vpop.permute.xlu0 %3835
      %v3837 = vsel %vm2414, %v3820, %v3822
      %v3838 = vsel %vm2414, %v3822, %v3824
      %v3839 = vsel %vm2414, %v3826, %v3828
      %v3840 = vsel %vm2414, %v3828, %v3830
      %v3841 = vsel %vm2414, %v3832, %v3834
      %v3842 = vsel %vm2414, %v3834, %v3836
      %vm3849 = vcmask 719872
      %v3851 = vsel %vm3849, %v3424, 0
      %3853 = vmatprep.subr.mxu0 %v3721
      %3854 = vmatpush1.msra.mxu0 %v3720
      %3855 = vmatprep.subr.mxu0 %v3686
      %3856 = vmatpush1.msra.mxu0 %v3685
      %3857 = vmatprep.subr.mxu0 %v3684
      %3858 = vmatpush1.msra.mxu0 %v3683
      %3859 = vmatprep.subr.mxu0 %v3682
      %3860 = vmatpush1.msra.mxu0 %v3681
      %3861 = vmatprep.subr.mxu0 %v3647
      %3862 = vmatpush1.msra.mxu0 %v3646
      %3863 = vmatprep.subr.mxu0 %v3645
      %3864 = vmatpush1.msra.mxu0 %v3644
      %3865 = vmatprep.subr.mxu0 %v3643
      %3866 = vmatpush1.msra.mxu0 %v3642
      %3867 = vmatprep.subr.mxu0 %v3608
      %3868 = vmatpush1.msra.mxu0 %v3607
      %3869 = vmatprep.subr.mxu0 %v3606
      %3870 = vmatpush1.msra.mxu0 %v3605
      %3871 = vmatprep.subr.mxu0 %v3604
      %3872 = vmatpush1.msra.mxu0 %v3603
      %3873 = vmatprep.subr.mxu0 %v3569
      %3874 = vmatpush1.msra.mxu0 %v3568
      %3875 = vmatprep.subr.mxu0 %v3567
      %3876 = vmatpush1.msra.mxu0 %v3566
      %3877 = vmatprep.subr.mxu0 %v3565
      %3878 = vmatpush1.msra.mxu0 %v3564
      %3879 = vmatprep.subr.mxu0 %v3464
      %3880 = vmatpush1.msra.mxu0 %v3463
      %3881 = vmatprep.subr.mxu0 %v3462
      %3882 = vmatpush1.msra.mxu0 %v3461
      %3883 = vmatprep.subr.mxu0 %v3460
      %3884 = vmatpush1.msra.mxu0 %v3459
      %3885 = vmatprep.subr.mxu0 0.0
      %3886 = vmatpush2.msra.mxu0 0.0
      %3887 = vmatprep.subr.mxu0 0.0
      %3888 = vmatpush2.msra.mxu0 0.0
      %3889 = vmatprep.subr.mxu0 0.0
      %3890 = vmatpush2.msra.mxu0 0.0
      %3891 = vmatprep.subr.mxu0 0.0
      %3892 = vmatpush2.msra.mxu0 0.0
      %3893 = vmatprep.subr.mxu0 0.0
      %3894 = vmatpush2.msra.mxu0 0.0
      %3895 = vmatprep.subr.mxu0 %v3842
      %3896 = vmatpush2.msra.mxu0 %v3841
      %3897 = vmatprep.subr.mxu0 %v3840
      %3898 = vmatpush2.msra.mxu0 %v3839
      %3899 = vmatprep.subr.mxu0 %v3838
      %3900 = vmatpush2.msra.mxu0 %v3837
      %3901 = vmatprep.subr.mxu0 %v3803
      %3902 = vmatpush2.msra.mxu0 %v3802
      %3903 = vmatprep.subr.mxu0 %v3801
      %3904 = vmatpush2.msra.mxu0 %v3800
      %3905 = vmatprep.subr.mxu0 %v3799
      %3906 = vmatpush2.msra.mxu0 %v3798
      %3907 = vmatprep.subr.mxu0 %v3764
      %3908 = vmatpush2.msra.mxu0 %v3763
      %3909 = vmatprep.subr.mxu0 %v3762
      %3910 = vmatpush2.msra.mxu0 %v3761
      %3911 = vmatprep.subr.mxu0 %v3760
      %3912 = vmatpush2.msra.mxu0 %v3759
      %3913 = vmatprep.subr.mxu0 %v3725
      %3914 = vmatpush2.msra.mxu0 %v3724
      %3915 = vmatprep.subr.mxu0 %v3723
      %3916 = vmatpush2.msra.mxu0 %v3722
      %3917 = vmatprep.mubr.f32.mxu0 %v3851
      %3918 = vmatmul.mubr.f32.gmra.mxu0 %v3423
      %v3919 = vpop.f32.mrf.mxu0
      %v3920 = vadd.f32 0.0, %v3919
      %v3921 = vpop.f32.mrf.mxu0
      %v3922 = vadd.f32 0.0, %v3921
      %3923 = vdwg.mxu0
      %vm3924 = vcmp.ge.f32.partialorder %v3920, 0.0
      %vm3925 = vcmp.ge.f32.partialorder %v3922, 0.0
      %v3926 = vmul.f32 %v3920, 0.25
      %v3927 = vmul.f32 %v3922, 0.25
      %v3928 = vsel %vm3924, %v3920, %v3926
      %v3929 = vsel %vm3925, %v3922, %v3927
      %v3930 = vld [vmem:[%s5] sm:$0x7]
      %vm3932 = vcmask 64512
      %v3934 = vsel %vm3932, %v3930, 0
      %3936 = vmatprep.subr.mxu0 0.0
      %3937 = vmatpush1.msra.mxu0 0.0
      %3938 = vmatprep.subr.mxu0 0.0
      %3939 = vmatpush1.msra.mxu0 0.0
      %3940 = vmatprep.subr.mxu0 0.0
      %3941 = vmatpush1.msra.mxu0 0.0
      %3942 = vmatprep.subr.mxu0 0.0
      %3943 = vmatpush1.msra.mxu0 0.0
      %3944 = vmatprep.subr.mxu0 0.0
      %3945 = vmatpush1.msra.mxu0 0.0
      %3946 = vmatprep.subr.mxu0 0.0
      %3947 = vmatpush1.msra.mxu0 0.0
      %3948 = vmatprep.subr.mxu0 0.0
      %3949 = vmatpush1.msra.mxu0 0.0
      %3950 = vmatprep.subr.mxu0 0.0
      %3951 = vmatpush1.msra.mxu0 0.0
      %3952 = vmatprep.subr.mxu0 0.0
      %3953 = vmatpush1.msra.mxu0 0.0
      %3954 = vmatprep.subr.mxu0 0.0
      %3955 = vmatpush1.msra.mxu0 0.0
      %3956 = vmatprep.subr.mxu0 0.0
      %3957 = vmatpush1.msra.mxu0 0.0
      %3958 = vmatprep.subr.mxu0 0.0
      %3959 = vmatpush1.msra.mxu0 0.0
      %3960 = vmatprep.subr.mxu0 0.0
      %3961 = vmatpush1.msra.mxu0 0.0
      %3962 = vmatprep.subr.mxu0 0.0
      %3963 = vmatpush1.msra.mxu0 0.0
      %3964 = vmatprep.subr.mxu0 0.0
      %3965 = vmatpush1.msra.mxu0 0.0
      %3966 = vmatprep.subr.mxu0 %v3929
      %3967 = vmatpush1.msra.mxu0 %v3928
      %3968 = vmatprep.subr.mxu0 0.0
      %3969 = vmatpush2.msra.mxu0 0.0
      %3970 = vmatprep.subr.mxu0 0.0
      %3971 = vmatpush2.msra.mxu0 0.0
      %3972 = vmatprep.subr.mxu0 0.0
      %3973 = vmatpush2.msra.mxu0 0.0
      %3974 = vmatprep.subr.mxu0 0.0
      %3975 = vmatpush2.msra.mxu0 0.0
      %3976 = vmatprep.subr.mxu0 0.0
      %3977 = vmatpush2.msra.mxu0 0.0
      %3978 = vmatprep.subr.mxu0 0.0
      %3979 = vmatpush2.msra.mxu0 0.0
      %3980 = vmatprep.subr.mxu0 0.0
      %3981 = vmatpush2.msra.mxu0 0.0
      %3982 = vmatprep.subr.mxu0 0.0
      %3983 = vmatpush2.msra.mxu0 0.0
      %3984 = vmatprep.subr.mxu0 0.0
      %3985 = vmatpush2.msra.mxu0 0.0
      %3986 = vmatprep.subr.mxu0 0.0
      %3987 = vmatpush2.msra.mxu0 0.0
      %3988 = vmatprep.subr.mxu0 0.0
      %3989 = vmatpush2.msra.mxu0 0.0
      %3990 = vmatprep.subr.mxu0 0.0
      %3991 = vmatpush2.msra.mxu0 0.0
      %3992 = vmatprep.subr.mxu0 0.0
      %3993 = vmatpush2.msra.mxu0 0.0
      %3994 = vmatprep.subr.mxu0 0.0
      %3995 = vmatpush2.msra.mxu0 0.0
      %3996 = vmatprep.subr.mxu0 0.0
      %3997 = vmatpush2.msra.mxu0 0.0
      %3998 = vmatprep.subr.mxu0 0.0
      %3999 = vmatpush2.msra.mxu0 0.0
      %4000 = vmatprep.mubr.f32.mxu0 0.0
      %4001 = vmatmul.mubr.f32.gmra.mxu0 %v3934
      %v4002 = vpop.f32.mrf.mxu0
      %v4003 = vadd.f32 %v387, %v4002
      %v4004 = vpop.f32.mrf.mxu0
      %v4005 = vadd.f32 %v405, %v4004
      %4006 = vdwg.mxu0
      %v4009 = vcombine.low %v4003, %v4005
      %4011 = vst [vmem:[%s386] sm:$0x77] %v4009
      %p4012 = scmp.lt.s32.totalorder %s22, 1
      %s4013 = scalar_select %p4012, %s22, 1
      %s4014 = smul.addr %s4013, 2
      %s4015 = smul.addr %s4014, 4
      %s4016 = scalar_lea.vmem %s11, %s4015
      // Predicated region
      $region65: #{tpu_custom_call.1} parent=63 // pred_check
        %p4017 = pneg %p276
      $region66: #{tpu_custom_call.1} parent=63 // pred_check_branch
        %4019 = sbr.rel (%p4017) target = $region68
      $region67: #{tpu_custom_call.1} parent=63 // pred_region
        _
      $region68: #{tpu_custom_call.1} parent=63 // pred_fallthru
        _
    $region64: #{tpu_custom_call.1} parent=5 // pred_fallthru
      _
    %p4020 = scmp.le.s32.totalorder 2, %s17
    // Predicated region
    $region69: #{tpu_custom_call.1} parent=5 // pred_check
      %p4021 = pneg %p4020
    $region70: #{tpu_custom_call.1} parent=5 // pred_check_branch
      %4023 = sbr.rel (%p4021) target = $region72
    $region71: #{tpu_custom_call.1} parent=5 // pred_region
      %s4024 = ssub.s32 %s17, 2
      // Predicated region
      $region73: #{tpu_custom_call.1} parent=71 // pred_check
        %p4025 = pneg %p282
      $region74: #{tpu_custom_call.1} parent=71 // pred_check_branch
        %4027 = sbr.rel (%p4025) target = $region76
      $region75: #{tpu_custom_call.1} parent=71 // pred_region
        %p4028 = scmp.lt.s32.totalorder %s23, 1
        %s4029 = scalar_select %p4028, %s23, 1
        %s4030 = smul.addr %s4029, 2
        %s4031 = smul.addr %s4030, 4
        %s4032 = scalar_lea.vmem %s11, %s4031
      $region76: #{tpu_custom_call.1} parent=71 // pred_fallthru
        _
    $region72: #{tpu_custom_call.1} parent=5 // pred_fallthru
      _
  $region6: #{tpu_custom_call.1} parent=0 // loop_footer
    %s21 = sadd.s32 1, %s17
  $region7: #{tpu_custom_call.1} parent=0 // loop_footer_branch
    %16 = sbr.rel target = $region3
  $region8: #{tpu_custom_call.1} parent=0 // loop_exit
    _

</llo_original>
